<compile_context>
chip_gen: v7x
topology: tpu7x:2x2x1
jax: 0.10.0
libtpu: 0.0.40
codegen_flags: <defaults>
</compile_context>

<pallas_src>
import functools

import jax
import jax.numpy as jnp
from jax.experimental import pallas as pl
from jax.experimental.pallas import tpu as pltpu

EPS = 1e-5
_F32 = 4  # bytes per f32


def _spatial_tile(n, cap=512):
    """Largest multiple of 128 that divides n and is <= cap (else full n)."""
    t = min(cap, n)
    t -= t % 128
    while t >= 128:
        if n % t == 0:
            return t
        t -= 128
    return n


def _mosaic_params(semantics, est_bytes):
    # 4x headroom for double-buffering + in-kernel intermediates; clamp so the
    # budget stays sane on v5e (16 MiB default scoped) and v7x (64 MiB phys).
    budget = int(min(max(4 * est_bytes, 16 * 1024 * 1024), 48 * 1024 * 1024))
    return pltpu.CompilerParams(dimension_semantics=semantics,
                                vmem_limit_bytes=budget)


# ----------------------------------------------------------------------------
# Kernel 1: 1x1 conv (channel matmul, transpose folded into the MXU) +
#           per-channel sum / sum-of-squares for the BatchNorm2d statistics.
# grid = (B, N//TN); stats revisited only across the spatial-tile axis.
# ----------------------------------------------------------------------------
def conv_stats_kernel(x_ref, w_ref, s_ref, q_ref, *, dot_dtype):
    @pl.when(pl.program_id(1) == 0)
    def _init():
        s_ref[...] = jnp.zeros_like(s_ref)
        q_ref[...] = jnp.zeros_like(q_ref)

    x_cn = x_ref[0]                                               # (C, TN)
    xw = jax.lax.dot_general(
        x_cn.astype(dot_dtype), w_ref[...].astype(dot_dtype),
        (((0,), (0,)), ((), ())),
        preferred_element_type=jnp.float32)                       # (TN, Cout)
    # NOTE: E[x^2]-E[x]^2 variance in f32; fine for well-scaled conv inputs.
    s_ref[0] += jnp.sum(xw, axis=0, keepdims=True)                # (1, Cout)
    q_ref[0] += jnp.sum(xw * xw, axis=0, keepdims=True)           # (1, Cout)


# ----------------------------------------------------------------------------
# Kernel 2: 1x1 conv recompute (no xw HBM round-trip) + BN2d + ReLU +
#           Encoding (scaled-L2 distances, softmax over codes, residual
#           aggregation).  Accumulates per-batch  sum_i attn[i,k] * x_i  and
#           the lane-dense attention column-sums; the `- asum * codewords`
#           correction is applied once in the (tiny) wrapper epilogue.
# ----------------------------------------------------------------------------
def encoding_kernel(x_ref, w_ref, a2_ref, b2_ref, cw_ref, sc_ref, c2_ref,
                    e_ref, asum_ref, *, dot_dtype):
    @pl.when(pl.program_id(1) == 0)
    def _init():
        e_ref[...] = jnp.zeros_like(e_ref)
        asum_ref[...] = jnp.zeros_like(asum_ref)

    x_cn = x_ref[0]                                               # (C, TN)
    xw = jax.lax.dot_general(
        x_cn.astype(dot_dtype), w_ref[...].astype(dot_dtype),
        (((0,), (0,)), ((), ())),
        preferred_element_type=jnp.float32)                       # (TN, C)
    xn = jnp.maximum(xw * a2_ref[...] + b2_ref[...], 0.0)         # (TN, C)
    xn_d = xn.astype(dot_dtype)
    cw_d = cw_ref[...].astype(dot_dtype)                          # (K, C)

    # scaled L2: sl[i,k] = scale[k] * ||x_i - c_k||^2
    x2 = jnp.sum(xn * xn, axis=-1, keepdims=True)                 # (TN, 1)
    xc = jax.lax.dot_general(xn_d, cw_d, (((1,), (1,)), ((), ())),
                             preferred_element_type=jnp.float32)  # (TN, K)
    sl = sc_ref[...] * (x2 - 2.0 * xc + c2_ref[...])              # (TN, K)

    # softmax over the K codewords (divide moved to the EUP slot)
    m = jnp.max(sl, axis=-1, keepdims=True)
    p = jnp.exp(sl - m)
    attn = p * pl.reciprocal(jnp.sum(p, axis=-1, keepdims=True), approx=True)

    # residual aggregation (partial, per spatial tile)
    ax = jax.lax.dot_general(attn.astype(dot_dtype), xn_d,
                             (((0,), (0,)), ((), ())),
                             preferred_element_type=jnp.float32)  # (K, C)
    e_ref[0] += ax
    asum_ref[0] += jnp.sum(attn, axis=0, keepdims=True)           # (1, K)


# ----------------------------------------------------------------------------
# Kernel 3: output modulation relu(x + x*gamma) = relu(x*(1+gamma)),
#           streamed directly in NCHW layout; gamma broadcast over N.
# ----------------------------------------------------------------------------
def modulate_kernel(x_ref, g_ref, o_ref):
    o_ref[0] = jnp.maximum(x_ref[0] * (1.0 + g_ref[0]), 0.0)


# ----------------------------------------------------------------------------
# Wrapper
# ----------------------------------------------------------------------------
def enc_module_forward(x, params, *, tile_n=512, dot_dtype=jnp.float32):
    B, C, H, W = x.shape
    N = H * W
    K = params["codewords"].shape[0]

    TN = _spatial_tile(N, tile_n)
    NT = N // TN

    x_cn = x.reshape(B, C, N)              # pure view of NCHW, no transpose
    w_io = params["conv_w"].T              # (C_in, C_out)

    # --- pass 1: 1x1 conv + BN2d batch statistics (no activation writeback) -
    k1_vmem = _F32 * (2 * C * TN + C * C + 4 * C + 2 * TN * C)
    s2, q2 = pl.pallas_call(
        functools.partial(conv_stats_kernel, dot_dtype=dot_dtype),
        grid=(B, NT),
        in_specs=[
            pl.BlockSpec((1, C, TN), lambda b, n: (b, 0, n)),
            pl.BlockSpec((C, C), lambda b, n: (0, 0)),
        ],
        out_specs=[
            pl.BlockSpec((1, 1, C), lambda b, n: (b, 0, 0)),
            pl.BlockSpec((1, 1, C), lambda b, n: (b, 0, 0)),
        ],
        out_shape=[
            jax.ShapeDtypeStruct((B, 1, C), jnp.float32),
            jax.ShapeDtypeStruct((B, 1, C), jnp.float32),
        ],
        compiler_params=_mosaic_params(("parallel", "arbitrary"), k1_vmem),
    )(x_cn, w_io)

    cnt2 = float(B * N)
    mean2 = jnp.sum(s2[:, 0, :], axis=0) / cnt2
    var2 = jnp.sum(q2[:, 0, :], axis=0) / cnt2 - mean2 * mean2
    a2 = params["bn2_w"] * jax.lax.rsqrt(var2 + EPS)
    b2 = params["bn2_b"] - mean2 * a2

    # --- pass 2: conv recompute + BN2d + ReLU + Encoding aggregate ----------
    c2_row = jnp.sum(params["codewords"] ** 2, axis=1)[None, :]   # (1, K)
    k2_vmem = _F32 * (2 * C * TN + C * C + 4 * C + 2 * K * C + 4 * K
                      + 2 * TN * C + 2 * TN * K)
    e_raw, asum = pl.pallas_call(
        functools.partial(encoding_kernel, dot_dtype=dot_dtype),
        grid=(B, NT),
        in_specs=[
            pl.BlockSpec((1, C, TN), lambda b, n: (b, 0, n)),
            pl.BlockSpec((C, C), lambda b, n: (0, 0)),
            pl.BlockSpec((1, C), lambda b, n: (0, 0)),
            pl.BlockSpec((1, C), lambda b, n: (0, 0)),
            pl.BlockSpec((K, C), lambda b, n: (0, 0)),
            pl.BlockSpec((1, K), lambda b, n: (0, 0)),
            pl.BlockSpec((1, K), lambda b, n: (0, 0)),
        ],
        out_specs=[
            pl.BlockSpec((1, K, C), lambda b, n: (b, 0, 0)),
            pl.BlockSpec((1, 1, K), lambda b, n: (b, 0, 0)),
        ],
        out_shape=[
            jax.ShapeDtypeStruct((B, K, C), jnp.float32),
            jax.ShapeDtypeStruct((B, 1, K), jnp.float32),
        ],
        compiler_params=_mosaic_params(("parallel", "arbitrary"), k2_vmem),
    )(x_cn, w_io, a2[None, :], b2[None, :], params["codewords"],
      params["scale"][None, :], c2_row)

    # E[b,k,:] = sum_i A[i,k]*(x_i - c_k) = e_raw - (sum_i A[i,k]) * c_k
    e = e_raw - asum[:, 0, :, None] * params["codewords"][None, :, :]  # (B,K,C)

    # --- head (tiny tensors) in plain JAX: BN1d + ReLU + mean + fc + selayer
    mean1 = jnp.mean(e, axis=(0, 2))
    var1 = jnp.var(e, axis=(0, 2))
    a1 = params["bn1_w"] * jax.lax.rsqrt(var1 + EPS)
    b1 = params["bn1_b"] - mean1 * a1
    en = jnp.mean(jnp.maximum(e * a1[None, :, None] + b1[None, :, None], 0.0),
                  axis=1)                                              # (B, C)
    hi = jax.lax.Precision.HIGHEST
    gamma = jax.nn.sigmoid(jnp.dot(en, params["fc_w"].T, precision=hi)
                           + params["fc_b"])                           # (B, C)
    se = jnp.dot(en, params["se_w"].T, precision=hi) + params["se_b"]

    # --- pass 3: relu(x * (1 + gamma)), streamed in native NCHW layout ------
    k3_vmem = _F32 * (4 * C * TN + 2 * C)
    out_cn = pl.pallas_call(
        modulate_kernel,
        grid=(B, NT),
        in_specs=[
            pl.BlockSpec((1, C, TN), lambda b, n: (b, 0, n)),
            pl.BlockSpec((1, C, 1), lambda b, n: (b, 0, 0)),
        ],
        out_specs=pl.BlockSpec((1, C, TN), lambda b, n: (b, 0, n)),
        out_shape=jax.ShapeDtypeStruct((B, C, N), jnp.float32),
        compiler_params=_mosaic_params(("parallel", "parallel"), k3_vmem),
    )(x_cn, gamma[:, :, None])

    return out_cn.reshape(B, C, H, W), se


# ----------------------------------------------------------------------------
# Deterministic parameter init (shapes from EncModule.__init__)
# ----------------------------------------------------------------------------
def init_params(key, C, K, nclass):
    ks = jax.random.split(key, 10)
    std_c = 1.0 / jnp.sqrt(float(C))
    std_e = 1.0 / jnp.sqrt(float(K * C))
    return {
        "conv_w": jax.random.uniform(ks[0], (C, C), jnp.float32, -std_c, std_c),
        "bn2_w": jax.random.uniform(ks[1], (C,), jnp.float32, 0.5, 1.5),
        "bn2_b": jax.random.uniform(ks[2], (C,), jnp.float32, -0.1, 0.1),
        "codewords": jax.random.uniform(ks[3], (K, C), jnp.float32, -std_e, std_e),
        "scale": jax.random.uniform(ks[4], (K,), jnp.float32, -1.0, 0.0),
        "bn1_w": jax.random.uniform(ks[5], (K,), jnp.float32, 0.5, 1.5),
        "bn1_b": jax.random.uniform(ks[6], (K,), jnp.float32, -0.1, 0.1),
        "fc_w": jax.random.uniform(ks[7], (C, C), jnp.float32, -std_c, std_c),
        "fc_b": jnp.zeros((C,), jnp.float32),
        "se_w": jax.random.uniform(ks[8], (nclass, C), jnp.float32, -std_c, std_c),
        "se_b": jax.random.uniform(ks[9], (nclass,), jnp.float32, -std_c, std_c),
    }


# ----------------------------------------------------------------------------
# Pure-JAX reference (mirrors the PyTorch forward, NCHW) for validation
# ----------------------------------------------------------------------------
def reference_forward(x, p):
    B, C, H, W = x.shape
    hi = jax.lax.Precision.HIGHEST
    xw = jnp.einsum("bchw,oc->bohw", x, p["conv_w"], precision=hi)
    mean = xw.mean(axis=(0, 2, 3))
    var = xw.var(axis=(0, 2, 3))
    xn = (xw - mean[None, :, None, None]) / jnp.sqrt(var + EPS)[None, :, None, None]
    xn = xn * p["bn2_w"][None, :, None, None] + p["bn2_b"][None, :, None, None]
    xn = jax.nn.relu(xn)
    X = xn.reshape(B, C, -1).transpose(0, 2, 1)                          # (B, N, C)
    diff = X[:, :, None, :] - p["codewords"][None, None, :, :]           # (B,N,K,C)
    sl = p["scale"][None, None, :] * jnp.sum(diff * diff, axis=-1)       # (B,N,K)
    A = jax.nn.softmax(sl, axis=2)
    E = jnp.einsum("bnk,bnkd->bkd", A, diff, precision=hi)               # (B,K,C)
    mean1 = E.mean(axis=(0, 2))
    var1 = E.var(axis=(0, 2))
    En = (E - mean1[None, :, None]) / jnp.sqrt(var1 + EPS)[None, :, None]
    En = En * p["bn1_w"][None, :, None] + p["bn1_b"][None, :, None]
    En = jax.nn.relu(En)
    en = En.mean(axis=1)                                                 # (B, C)
    gamma = jax.nn.sigmoid(jnp.dot(en, p["fc_w"].T, precision=hi) + p["fc_b"])
    se = jnp.dot(en, p["se_w"].T, precision=hi) + p["se_b"]
    out = jax.nn.relu(x + x * gamma[:, :, None, None])
    return out, se


if __name__ == "__main__":
    B, C, H, W = 2, 16, 32, 32      # in_channels=16, N=1024 -> 2 spatial tiles
    K, NCLASS = 32, 8               # ncodes=32, nclass=8

    key = jax.random.PRNGKey(0)
    kx, kp = jax.random.split(key)
    x = jax.random.normal(kx, (B, C, H, W), jnp.float32)
    params = init_params(kp, C, K, NCLASS)

    out, se = jax.jit(enc_module_forward)(x, params)
    jax.block_until_ready((out, se))

    ref_out, ref_se = reference_forward(x, params)
    assert out.shape == (B, C, H, W) and se.shape == (B, NCLASS)
    assert jnp.allclose(out, ref_out, atol=2e-3, rtol=2e-3), \
        float(jnp.max(jnp.abs(out - ref_out)))
    assert jnp.allclose(se, ref_se, atol=2e-3, rtol=2e-3), \
        float(jnp.max(jnp.abs(se - ref_se)))
    print("KERNEL_OK")
</pallas_src>

<mosaic_0001>
module attributes {stable_mosaic.version = 11 : i64} {
  func.func @conv_stats_kernel(%arg0: i32, %arg1: i32, %arg2: memref<1x16x512xf32, #tpu.memory_space<vmem>>, %arg3: memref<16x16xf32, #tpu.memory_space<vmem>>, %arg4: memref<1x1x16xf32, #tpu.memory_space<vmem>>, %arg5: memref<1x1x16xf32, #tpu.memory_space<vmem>>) attributes {dimension_semantics = [#tpu.dimension_semantics<parallel>, #tpu.dimension_semantics<arbitrary>], iteration_bounds = array<i64: 2, 2>, scalar_prefetch = 0 : i64, scratch_operands = 0 : i64, tpu.core_type = #tpu.core_type<tc>, window_params = [{transform_indices = @transform_0, window_bounds = array<i64: 1, 16, 512>}, {pipeline_mode = #tpu.pipeline_mode<synchronous>, transform_indices = @transform_1, window_bounds = array<i64: 16, 16>}, {transform_indices = @transform_2, window_bounds = array<i64: 1, 1, 16>}, {transform_indices = @transform_3, window_bounds = array<i64: 1, 1, 16>}]} {
    %c0_i32 = arith.constant 0 : i32
    %0 = arith.cmpi eq, %arg1, %c0_i32 : i32
    %1 = arith.extui %0 : i1 to i32
    %c0_i32_0 = arith.constant 0 : i32
    %2 = arith.cmpi ne, %1, %c0_i32_0 : i32
    scf.if %2 {
      %cst_19 = arith.constant 0.000000e+00 : f32
      %24 = vector.broadcast %cst_19 : f32 to vector<1x1x16xf32>
      %c0_20 = arith.constant 0 : index
      %c0_21 = arith.constant 0 : index
      %c0_22 = arith.constant 0 : index
      %25 = vector.load %arg4[%c0_20, %c0_21, %c0_22] : memref<1x1x16xf32, #tpu.memory_space<vmem>>, vector<1x1x16xf32>
      tpu.vector_store %arg4[%c0_20, %c0_21, %c0_22], %24 {strides = array<i32>} : memref<1x1x16xf32, #tpu.memory_space<vmem>>, vector<1x1x16xf32>,
      %cst_23 = arith.constant 0.000000e+00 : f32
      %26 = vector.broadcast %cst_23 : f32 to vector<1x1x16xf32>
      %c0_24 = arith.constant 0 : index
      %c0_25 = arith.constant 0 : index
      %c0_26 = arith.constant 0 : index
      %27 = vector.load %arg5[%c0_24, %c0_25, %c0_26] : memref<1x1x16xf32, #tpu.memory_space<vmem>>, vector<1x1x16xf32>
      tpu.vector_store %arg5[%c0_24, %c0_25, %c0_26], %26 {strides = array<i32>} : memref<1x1x16xf32, #tpu.memory_space<vmem>>, vector<1x1x16xf32>,
    } else {
    }
    %c0 = arith.constant 0 : index
    %c0_1 = arith.constant 0 : index
    %c0_2 = arith.constant 0 : index
    %3 = vector.load %arg2[%c0, %c0_1, %c0_2] : memref<1x16x512xf32, #tpu.memory_space<vmem>>, vector<1x16x512xf32>
    %4 = vector.shape_cast %3 : vector<1x16x512xf32> to vector<16x512xf32>
    %c0_3 = arith.constant 0 : index
    %c0_4 = arith.constant 0 : index
    %5 = vector.load %arg3[%c0_3, %c0_4] : memref<16x16xf32, #tpu.memory_space<vmem>>, vector<16x16xf32>
    %cst = arith.constant dense<0.000000e+00> : vector<512x16xf32>
    %6 = tpu.matmul %4, %5, %cst {dimension_numbers = #tpu.dot_dimension_numbers<[0], [0], [1], [1], [0, 1, 1, 1], [], []>} : vector<16x512xf32>, vector<16x16xf32>, vector<512x16xf32> -> vector<512x16xf32>
    %c0_5 = arith.constant 0 : index
    %c0_6 = arith.constant 0 : index
    %c0_7 = arith.constant 0 : index
    %7 = vector.load %arg4[%c0_5, %c0_6, %c0_7] : memref<1x1x16xf32, #tpu.memory_space<vmem>>, vector<1x1x16xf32>
    %8 = vector.shape_cast %7 : vector<1x1x16xf32> to vector<1x16xf32>
    %cst_8 = arith.constant dense<0.000000e+00> : vector<16xf32>
    %9 = vector.multi_reduction <add>, %6, %cst_8 [0] : vector<512x16xf32> to vector<16xf32>
    %10 = vector.shape_cast %9 : vector<16xf32> to vector<1x16xf32>
    %11 = arith.addf %8, %10 : vector<1x16xf32>
    %c0_9 = arith.constant 0 : index
    %c0_10 = arith.constant 0 : index
    %c0_11 = arith.constant 0 : index
    %12 = vector.load %arg4[%c0_9, %c0_10, %c0_11] : memref<1x1x16xf32, #tpu.memory_space<vmem>>, vector<1x1x16xf32>
    %13 = vector.shape_cast %12 : vector<1x1x16xf32> to vector<1x16xf32>
    %14 = vector.shape_cast %11 : vector<1x16xf32> to vector<1x1x16xf32>
    tpu.vector_store %arg4[%c0_9, %c0_10, %c0_11], %14 {strides = array<i32>} : memref<1x1x16xf32, #tpu.memory_space<vmem>>, vector<1x1x16xf32>,
    %c0_12 = arith.constant 0 : index
    %c0_13 = arith.constant 0 : index
    %c0_14 = arith.constant 0 : index
    %15 = vector.load %arg5[%c0_12, %c0_13, %c0_14] : memref<1x1x16xf32, #tpu.memory_space<vmem>>, vector<1x1x16xf32>
    %16 = vector.shape_cast %15 : vector<1x1x16xf32> to vector<1x16xf32>
    %17 = arith.mulf %6, %6 : vector<512x16xf32>
    %cst_15 = arith.constant dense<0.000000e+00> : vector<16xf32>
    %18 = vector.multi_reduction <add>, %17, %cst_15 [0] : vector<512x16xf32> to vector<16xf32>
    %19 = vector.shape_cast %18 : vector<16xf32> to vector<1x16xf32>
    %20 = arith.addf %16, %19 : vector<1x16xf32>
    %c0_16 = arith.constant 0 : index
    %c0_17 = arith.constant 0 : index
    %c0_18 = arith.constant 0 : index
    %21 = vector.load %arg5[%c0_16, %c0_17, %c0_18] : memref<1x1x16xf32, #tpu.memory_space<vmem>>, vector<1x1x16xf32>
    %22 = vector.shape_cast %21 : vector<1x1x16xf32> to vector<1x16xf32>
    %23 = vector.shape_cast %20 : vector<1x16xf32> to vector<1x1x16xf32>
    tpu.vector_store %arg5[%c0_16, %c0_17, %c0_18], %23 {strides = array<i32>} : memref<1x1x16xf32, #tpu.memory_space<vmem>>, vector<1x1x16xf32>,
    return
  }
  func.func @transform_0(%arg0: i32, %arg1: i32) -> (i32, i32, i32) {
    %c0_i32 = arith.constant 0 : i32
    %c0_i32_0 = arith.constant 0 : i32
    return %arg0, %c0_i32, %arg1 : i32, i32, i32
  }
  func.func @transform_1(%arg0: i32, %arg1: i32) -> (i32, i32) {
    %c0_i32 = arith.constant 0 : i32
    %c0_i32_0 = arith.constant 0 : i32
    %c0_i32_1 = arith.constant 0 : i32
    return %c0_i32, %c0_i32_0 : i32, i32
  }
  func.func @transform_2(%arg0: i32, %arg1: i32) -> (i32, i32, i32) {
    %c0_i32 = arith.constant 0 : i32
    %c0_i32_0 = arith.constant 0 : i32
    %c0_i32_1 = arith.constant 0 : i32
    return %arg0, %c0_i32, %c0_i32_0 : i32, i32, i32
  }
  func.func @transform_3(%arg0: i32, %arg1: i32) -> (i32, i32, i32) {
    %c0_i32 = arith.constant 0 : i32
    %c0_i32_0 = arith.constant 0 : i32
    %c0_i32_1 = arith.constant 0 : i32
    return %arg0, %c0_i32, %c0_i32_0 : i32, i32, i32
  }
}

module attributes {stable_mosaic.version = 11 : i64} {
  func.func @encoding_kernel(%arg0: i32, %arg1: i32, %arg2: memref<1x16x512xf32, #tpu.memory_space<vmem>>, %arg3: memref<16x16xf32, #tpu.memory_space<vmem>>, %arg4: memref<1x16xf32, #tpu.memory_space<vmem>>, %arg5: memref<1x16xf32, #tpu.memory_space<vmem>>, %arg6: memref<32x16xf32, #tpu.memory_space<vmem>>, %arg7: memref<1x32xf32, #tpu.memory_space<vmem>>, %arg8: memref<1x32xf32, #tpu.memory_space<vmem>>, %arg9: memref<1x32x16xf32, #tpu.memory_space<vmem>>, %arg10: memref<1x1x32xf32, #tpu.memory_space<vmem>>) attributes {dimension_semantics = [#tpu.dimension_semantics<parallel>, #tpu.dimension_semantics<arbitrary>], iteration_bounds = array<i64: 2, 2>, scalar_prefetch = 0 : i64, scratch_operands = 0 : i64, tpu.core_type = #tpu.core_type<tc>, window_params = [{transform_indices = @transform_0, window_bounds = array<i64: 1, 16, 512>}, {pipeline_mode = #tpu.pipeline_mode<synchronous>, transform_indices = @transform_1, window_bounds = array<i64: 16, 16>}, {pipeline_mode = #tpu.pipeline_mode<synchronous>, transform_indices = @transform_2, window_bounds = array<i64: 1, 16>}, {pipeline_mode = #tpu.pipeline_mode<synchronous>, transform_indices = @transform_3, window_bounds = array<i64: 1, 16>}, {pipeline_mode = #tpu.pipeline_mode<synchronous>, transform_indices = @transform_4, window_bounds = array<i64: 32, 16>}, {pipeline_mode = #tpu.pipeline_mode<synchronous>, transform_indices = @transform_5, window_bounds = array<i64: 1, 32>}, {pipeline_mode = #tpu.pipeline_mode<synchronous>, transform_indices = @transform_6, window_bounds = array<i64: 1, 32>}, {transform_indices = @transform_7, window_bounds = array<i64: 1, 32, 16>}, {transform_indices = @transform_8, window_bounds = array<i64: 1, 1, 32>}]} {
    %c0_i32 = arith.constant 0 : i32
    %0 = arith.cmpi eq, %arg1, %c0_i32 : i32
    %1 = arith.extui %0 : i1 to i32
    %c0_i32_0 = arith.constant 0 : i32
    %2 = arith.cmpi ne, %1, %c0_i32_0 : i32
    scf.if %2 {
      %cst_35 = arith.constant 0.000000e+00 : f32
      %55 = vector.broadcast %cst_35 : f32 to vector<1x32x16xf32>
      %c0_36 = arith.constant 0 : index
      %c0_37 = arith.constant 0 : index
      %c0_38 = arith.constant 0 : index
      %56 = vector.load %arg9[%c0_36, %c0_37, %c0_38] : memref<1x32x16xf32, #tpu.memory_space<vmem>>, vector<1x32x16xf32>
      tpu.vector_store %arg9[%c0_36, %c0_37, %c0_38], %55 {strides = array<i32>} : memref<1x32x16xf32, #tpu.memory_space<vmem>>, vector<1x32x16xf32>,
      %cst_39 = arith.constant 0.000000e+00 : f32
      %57 = vector.broadcast %cst_39 : f32 to vector<1x1x32xf32>
      %c0_40 = arith.constant 0 : index
      %c0_41 = arith.constant 0 : index
      %c0_42 = arith.constant 0 : index
      %58 = vector.load %arg10[%c0_40, %c0_41, %c0_42] : memref<1x1x32xf32, #tpu.memory_space<vmem>>, vector<1x1x32xf32>
      tpu.vector_store %arg10[%c0_40, %c0_41, %c0_42], %57 {strides = array<i32>} : memref<1x1x32xf32, #tpu.memory_space<vmem>>, vector<1x1x32xf32>,
    } else {
    }
    %c0 = arith.constant 0 : index
    %c0_1 = arith.constant 0 : index
    %c0_2 = arith.constant 0 : index
    %3 = vector.load %arg2[%c0, %c0_1, %c0_2] : memref<1x16x512xf32, #tpu.memory_space<vmem>>, vector<1x16x512xf32>
    %4 = vector.shape_cast %3 : vector<1x16x512xf32> to vector<16x512xf32>
    %c0_3 = arith.constant 0 : index
    %c0_4 = arith.constant 0 : index
    %5 = vector.load %arg3[%c0_3, %c0_4] : memref<16x16xf32, #tpu.memory_space<vmem>>, vector<16x16xf32>
    %cst = arith.constant dense<0.000000e+00> : vector<512x16xf32>
    %6 = tpu.matmul %4, %5, %cst {dimension_numbers = #tpu.dot_dimension_numbers<[0], [0], [1], [1], [0, 1, 1, 1], [], []>} : vector<16x512xf32>, vector<16x16xf32>, vector<512x16xf32> -> vector<512x16xf32>
    %c0_5 = arith.constant 0 : index
    %c0_6 = arith.constant 0 : index
    %7 = vector.load %arg4[%c0_5, %c0_6] : memref<1x16xf32, #tpu.memory_space<vmem>>, vector<1x16xf32>
    %8 = vector.broadcast %7 : vector<1x16xf32> to vector<512x16xf32>
    %9 = arith.mulf %6, %8 : vector<512x16xf32>
    %c0_7 = arith.constant 0 : index
    %c0_8 = arith.constant 0 : index
    %10 = vector.load %arg5[%c0_7, %c0_8] : memref<1x16xf32, #tpu.memory_space<vmem>>, vector<1x16xf32>
    %11 = vector.broadcast %10 : vector<1x16xf32> to vector<512x16xf32>
    %12 = arith.addf %9, %11 : vector<512x16xf32>
    %cst_9 = arith.constant 0.000000e+00 : f32
    %13 = vector.broadcast %cst_9 : f32 to vector<512x16xf32>
    %14 = arith.maximumf %12, %13 : vector<512x16xf32>
    %c0_10 = arith.constant 0 : index
    %c0_11 = arith.constant 0 : index
    %15 = vector.load %arg6[%c0_10, %c0_11] : memref<32x16xf32, #tpu.memory_space<vmem>>, vector<32x16xf32>
    %16 = arith.mulf %14, %14 : vector<512x16xf32>
    %cst_12 = arith.constant dense<0.000000e+00> : vector<512xf32>
    %17 = vector.multi_reduction <add>, %16, %cst_12 [1] : vector<512x16xf32> to vector<512xf32>
    %18 = vector.shape_cast %17 : vector<512xf32> to vector<512x1xf32>
    %cst_13 = arith.constant dense<0.000000e+00> : vector<512x32xf32>
    %19 = tpu.matmul %14, %15, %cst_13 {dimension_numbers = #tpu.dot_dimension_numbers<[1], [1], [0], [0], [0, 0, 1, 0], [], []>} : vector<512x16xf32>, vector<32x16xf32>, vector<512x32xf32> -> vector<512x32xf32>
    %c0_14 = arith.constant 0 : index
    %c0_15 = arith.constant 0 : index
    %20 = vector.load %arg7[%c0_14, %c0_15] : memref<1x32xf32, #tpu.memory_space<vmem>>, vector<1x32xf32>
    %cst_16 = arith.constant 2.000000e+00 : f32
    %21 = vector.broadcast %cst_16 : f32 to vector<512x32xf32>
    %22 = arith.mulf %21, %19 : vector<512x32xf32>
    %23 = vector.broadcast %18 : vector<512x1xf32> to vector<512x32xf32>
    %24 = arith.subf %23, %22 : vector<512x32xf32>
    %c0_17 = arith.constant 0 : index
    %c0_18 = arith.constant 0 : index
    %25 = vector.load %arg8[%c0_17, %c0_18] : memref<1x32xf32, #tpu.memory_space<vmem>>, vector<1x32xf32>
    %26 = vector.broadcast %25 : vector<1x32xf32> to vector<512x32xf32>
    %27 = arith.addf %24, %26 : vector<512x32xf32>
    %28 = vector.broadcast %20 : vector<1x32xf32> to vector<512x32xf32>
    %29 = arith.mulf %28, %27 : vector<512x32xf32>
    %cst_19 = arith.constant dense<0xFF800000> : vector<512xf32>
    %30 = vector.multi_reduction <maximumf>, %29, %cst_19 [1] : vector<512x32xf32> to vector<512xf32>
    %31 = vector.shape_cast %30 : vector<512xf32> to vector<512x1xf32>
    %32 = vector.broadcast %31 : vector<512x1xf32> to vector<512x32xf32>
    %33 = arith.subf %29, %32 : vector<512x32xf32>
    %34 = math.exp %33 : vector<512x32xf32>
    %cst_20 = arith.constant dense<0.000000e+00> : vector<512xf32>
    %35 = vector.multi_reduction <add>, %34, %cst_20 [1] : vector<512x32xf32> to vector<512xf32>
    %36 = vector.shape_cast %35 : vector<512xf32> to vector<512x1xf32>
    %37 = tpu.reciprocal %36 {approx = true} : vector<512x1xf32> -> vector<512x1xf32>
    %38 = vector.broadcast %37 : vector<512x1xf32> to vector<512x32xf32>
    %39 = arith.mulf %34, %38 : vector<512x32xf32>
    %cst_21 = arith.constant dense<0.000000e+00> : vector<32x16xf32>
    %40 = tpu.matmul %39, %14, %cst_21 {dimension_numbers = #tpu.dot_dimension_numbers<[0], [0], [1], [1], [0, 1, 1, 1], [], []>} : vector<512x32xf32>, vector<512x16xf32>, vector<32x16xf32> -> vector<32x16xf32>
    %c0_22 = arith.constant 0 : index
    %c0_23 = arith.constant 0 : index
    %c0_24 = arith.constant 0 : index
    %41 = vector.load %arg9[%c0_22, %c0_23, %c0_24] : memref<1x32x16xf32, #tpu.memory_space<vmem>>, vector<1x32x16xf32>
    %42 = vector.shape_cast %41 : vector<1x32x16xf32> to vector<32x16xf32>
    %43 = arith.addf %42, %40 : vector<32x16xf32>
    %c0_25 = arith.constant 0 : index
    %c0_26 = arith.constant 0 : index
    %c0_27 = arith.constant 0 : index
    %44 = vector.load %arg9[%c0_25, %c0_26, %c0_27] : memref<1x32x16xf32, #tpu.memory_space<vmem>>, vector<1x32x16xf32>
    %45 = vector.shape_cast %44 : vector<1x32x16xf32> to vector<32x16xf32>
    %46 = vector.shape_cast %43 : vector<32x16xf32> to vector<1x32x16xf32>
    tpu.vector_store %arg9[%c0_25, %c0_26, %c0_27], %46 {strides = array<i32>} : memref<1x32x16xf32, #tpu.memory_space<vmem>>, vector<1x32x16xf32>,
    %c0_28 = arith.constant 0 : index
    %c0_29 = arith.constant 0 : index
    %c0_30 = arith.constant 0 : index
    %47 = vector.load %arg10[%c0_28, %c0_29, %c0_30] : memref<1x1x32xf32, #tpu.memory_space<vmem>>, vector<1x1x32xf32>
    %48 = vector.shape_cast %47 : vector<1x1x32xf32> to vector<1x32xf32>
    %cst_31 = arith.constant dense<0.000000e+00> : vector<32xf32>
    %49 = vector.multi_reduction <add>, %39, %cst_31 [0] : vector<512x32xf32> to vector<32xf32>
    %50 = vector.shape_cast %49 : vector<32xf32> to vector<1x32xf32>
    %51 = arith.addf %48, %50 : vector<1x32xf32>
    %c0_32 = arith.constant 0 : index
    %c0_33 = arith.constant 0 : index
    %c0_34 = arith.constant 0 : index
    %52 = vector.load %arg10[%c0_32, %c0_33, %c0_34] : memref<1x1x32xf32, #tpu.memory_space<vmem>>, vector<1x1x32xf32>
    %53 = vector.shape_cast %52 : vector<1x1x32xf32> to vector<1x32xf32>
    %54 = vector.shape_cast %51 : vector<1x32xf32> to vector<1x1x32xf32>
    tpu.vector_store %arg10[%c0_32, %c0_33, %c0_34], %54 {strides = array<i32>} : memref<1x1x32xf32, #tpu.memory_space<vmem>>, vector<1x1x32xf32>,
    return
  }
  func.func @transform_0(%arg0: i32, %arg1: i32) -> (i32, i32, i32) {
    %c0_i32 = arith.constant 0 : i32
    %c0_i32_0 = arith.constant 0 : i32
    return %arg0, %c0_i32, %arg1 : i32, i32, i32
  }
  func.func @transform_1(%arg0: i32, %arg1: i32) -> (i32, i32) {
    %c0_i32 = arith.constant 0 : i32
    %c0_i32_0 = arith.constant 0 : i32
    %c0_i32_1 = arith.constant 0 : i32
    return %c0_i32, %c0_i32_0 : i32, i32
  }
  func.func @transform_2(%arg0: i32, %arg1: i32) -> (i32, i32) {
    %c0_i32 = arith.constant 0 : i32
    %c0_i32_0 = arith.constant 0 : i32
    %c0_i32_1 = arith.constant 0 : i32
    return %c0_i32, %c0_i32_0 : i32, i32
  }
  func.func @transform_3(%arg0: i32, %arg1: i32) -> (i32, i32) {
    %c0_i32 = arith.constant 0 : i32
    %c0_i32_0 = arith.constant 0 : i32
    %c0_i32_1 = arith.constant 0 : i32
    return %c0_i32, %c0_i32_0 : i32, i32
  }
  func.func @transform_4(%arg0: i32, %arg1: i32) -> (i32, i32) {
    %c0_i32 = arith.constant 0 : i32
    %c0_i32_0 = arith.constant 0 : i32
    %c0_i32_1 = arith.constant 0 : i32
    return %c0_i32, %c0_i32_0 : i32, i32
  }
  func.func @transform_5(%arg0: i32, %arg1: i32) -> (i32, i32) {
    %c0_i32 = arith.constant 0 : i32
    %c0_i32_0 = arith.constant 0 : i32
    %c0_i32_1 = arith.constant 0 : i32
    return %c0_i32, %c0_i32_0 : i32, i32
  }
  func.func @transform_6(%arg0: i32, %arg1: i32) -> (i32, i32) {
    %c0_i32 = arith.constant 0 : i32
    %c0_i32_0 = arith.constant 0 : i32
    %c0_i32_1 = arith.constant 0 : i32
    return %c0_i32, %c0_i32_0 : i32, i32
  }
  func.func @transform_7(%arg0: i32, %arg1: i32) -> (i32, i32, i32) {
    %c0_i32 = arith.constant 0 : i32
    %c0_i32_0 = arith.constant 0 : i32
    %c0_i32_1 = arith.constant 0 : i32
    return %arg0, %c0_i32, %c0_i32_0 : i32, i32, i32
  }
  func.func @transform_8(%arg0: i32, %arg1: i32) -> (i32, i32, i32) {
    %c0_i32 = arith.constant 0 : i32
    %c0_i32_0 = arith.constant 0 : i32
    %c0_i32_1 = arith.constant 0 : i32
    return %arg0, %c0_i32, %c0_i32_0 : i32, i32, i32
  }
}

module attributes {stable_mosaic.version = 11 : i64} {
  func.func @modulate_kernel(%arg0: i32, %arg1: i32, %arg2: memref<1x16x512xf32, #tpu.memory_space<vmem>>, %arg3: memref<1x16x1xf32, #tpu.memory_space<vmem>>, %arg4: memref<1x16x512xf32, #tpu.memory_space<vmem>>) attributes {dimension_semantics = [#tpu.dimension_semantics<parallel>, #tpu.dimension_semantics<parallel>], iteration_bounds = array<i64: 2, 2>, scalar_prefetch = 0 : i64, scratch_operands = 0 : i64, tpu.core_type = #tpu.core_type<tc>, window_params = [{transform_indices = @transform_0, window_bounds = array<i64: 1, 16, 512>}, {transform_indices = @transform_1, window_bounds = array<i64: 1, 16, 1>}, {transform_indices = @transform_2, window_bounds = array<i64: 1, 16, 512>}]} {
    %c0 = arith.constant 0 : index
    %c0_0 = arith.constant 0 : index
    %c0_1 = arith.constant 0 : index
    %0 = vector.load %arg2[%c0, %c0_0, %c0_1] : memref<1x16x512xf32, #tpu.memory_space<vmem>>, vector<1x16x512xf32>
    %1 = vector.shape_cast %0 : vector<1x16x512xf32> to vector<16x512xf32>
    %c0_2 = arith.constant 0 : index
    %c0_3 = arith.constant 0 : index
    %c0_4 = arith.constant 0 : index
    %2 = vector.load %arg3[%c0_2, %c0_3, %c0_4] : memref<1x16x1xf32, #tpu.memory_space<vmem>>, vector<1x16x1xf32>
    %3 = vector.shape_cast %2 : vector<1x16x1xf32> to vector<16x1xf32>
    %cst = arith.constant 1.000000e+00 : f32
    %4 = vector.broadcast %cst : f32 to vector<16x1xf32>
    %5 = arith.addf %4, %3 : vector<16x1xf32>
    %6 = vector.broadcast %5 : vector<16x1xf32> to vector<16x512xf32>
    %7 = arith.mulf %1, %6 : vector<16x512xf32>
    %cst_5 = arith.constant 0.000000e+00 : f32
    %8 = vector.broadcast %cst_5 : f32 to vector<16x512xf32>
    %9 = arith.maximumf %7, %8 : vector<16x512xf32>
    %c0_6 = arith.constant 0 : index
    %c0_7 = arith.constant 0 : index
    %c0_8 = arith.constant 0 : index
    %10 = vector.load %arg4[%c0_6, %c0_7, %c0_8] : memref<1x16x512xf32, #tpu.memory_space<vmem>>, vector<1x16x512xf32>
    %11 = vector.shape_cast %10 : vector<1x16x512xf32> to vector<16x512xf32>
    %12 = vector.shape_cast %9 : vector<16x512xf32> to vector<1x16x512xf32>
    tpu.vector_store %arg4[%c0_6, %c0_7, %c0_8], %12 {strides = array<i32>} : memref<1x16x512xf32, #tpu.memory_space<vmem>>, vector<1x16x512xf32>,
    return
  }
  func.func @transform_0(%arg0: i32, %arg1: i32) -> (i32, i32, i32) {
    %c0_i32 = arith.constant 0 : i32
    %c0_i32_0 = arith.constant 0 : i32
    return %arg0, %c0_i32, %arg1 : i32, i32, i32
  }
  func.func @transform_1(%arg0: i32, %arg1: i32) -> (i32, i32, i32) {
    %c0_i32 = arith.constant 0 : i32
    %c0_i32_0 = arith.constant 0 : i32
    %c0_i32_1 = arith.constant 0 : i32
    return %arg0, %c0_i32, %c0_i32_0 : i32, i32, i32
  }
  func.func @transform_2(%arg0: i32, %arg1: i32) -> (i32, i32, i32) {
    %c0_i32 = arith.constant 0 : i32
    %c0_i32_0 = arith.constant 0 : i32
    return %arg0, %c0_i32, %arg1 : i32, i32, i32
  }
}

</mosaic_0001>

<llo_original>
// kernel: enc_module_forward.3
$region0: #{enc_module_forward.3}
  #allocation0 [shape = 'u32[]', space=smem, size = 0x4, offset = 0x4, fixed_abs, tag = 'smem constant byte address 0x4 - core index']
  #allocation1 [shape = 'u32[144,128]{1,0:T(1,128)}', space=vmem, size = 0x12000, scoped, tag = 'internal scratch']
  %s0 = inlined_call_operand.vmem [shape: f32[2,16,1024], index: 0, kind: input, shape index: {}]
  %s1 = inlined_call_operand.vmem [shape: f32[16,16], index: 1, kind: input, shape index: {}]
  %s2 = inlined_call_operand.vmem [shape: f32[2,1,16], index: 2, kind: output, shape index: {0}]
  %s3 = inlined_call_operand.vmem [shape: f32[2,1,16], index: 3, kind: output, shape index: {1}]
  %4 = xla_tuple %s2, %s3
  %s5 = sld [smem:[#allocation0]]
  $region76: #{enc_module_forward.3} parent=0
    _
  %s7 = ssub.s32 1, %s5
  %s8 = scalar_select 0, %s7, %s5
  $region1: #{enc_module_forward.3} parent=0
    #allocation2 [shape = 'u8[65536]{0}', space=vmem, size = 0x10000, scoped, tag = 'input window, operand 0']
    loop: start=0, step=1, limit=6
    $region2: #{enc_module_forward.3} parent=1 // loop_pre_header
      _
    $region3: #{enc_module_forward.3} parent=1 // loop_header
      %s10 = sphi 0, %s14
      %p11 = scmp.ge.s32.totalorder %s10, 6
      %s17 = sphi 0, %s29
      %s18 = sphi 0, %s25
      %s19 = sphi 0, %s17
      %s20 = sphi 0, %s18
      %s21 = sphi 0, %s19
      %s22 = sphi 0, %s20
      %s34 = sphi 0, %s36
      %s37 = sphi 0, %s34
      %s38 = sphi 0, %s37
      %s54 = sphi 0, %s38
      %s58 = sphi 0, %s58
      %s60 = sphi 0, %s58
      %s61 = sphi 0, %s60
      %s75 = sphi 0, %s61
      %s81 = sphi 0, %s83
      %s84 = sphi 0, %s81
      %s85 = sphi 0, %s84
      %s101 = sphi 0, %s85
      %s107 = sphi 0, %s109
      %s110 = sphi 0, %s107
      %s111 = sphi 0, %s110
      %s127 = sphi 0, %s111
    $region4: #{enc_module_forward.3} parent=1 // loop_header_branch
      %13 = sbr.rel (%p11) target = $region8
    $region5: #{enc_module_forward.3} parent=1 // loop_body
      %s15 = ssub.s32 %s10, 1
      %s16 = ssub.s32 %s10, 2
      %s23 = sadd.s32 1, %s18
      %p24 = scmp.ge.s32.totalorder %s23, 2
      %s25 = scalar_select %p24, 0, %s23
      %s26 = sadd.s32 1, %s17
      %s27 = scalar_select %p24, %s26, %s17
      %p28 = scmp.ge.s32.totalorder %s27, 2
      %s29 = scalar_select %p28, 0, %s27
      %s30 = ssub.s32 %s17, %s29
      %s31 = ssub.s32 %s18, %s25
      %s32 = sor.u32 %s30, %s31
      %p33 = scmp.eq.s32.totalorder %s32, 0
      %s35 = sadd.s32 %s34, 1
      %s36 = scalar_select %p33, %s34, %s35
      %p39 = pneg %p33
      %p40 = scmp.eq.s32.totalorder %s10, 3
      %p41 = por %p39, %p40
      %p42 = scmp.ne.s32.totalorder %s34, %s37
      %p43 = scmp.eq.s32.totalorder %s10, 0
      %p44 = por %p42, %p43
      %p45 = scmp.ne.s32.totalorder %s34, %s37
      %p46 = scmp.eq.s32.totalorder %s15, 3
      %p47 = por %p45, %p46
      %p48 = scmp.ne.s32.totalorder %s37, %s38
      %p49 = scmp.eq.s32.totalorder %s15, 0
      %p50 = por %p48, %p49
      %p51 = scmp.ne.s32.totalorder %s37, %s38
      %p52 = scmp.eq.s32.totalorder %s16, 3
      %p53 = por %p51, %p52
      %p55 = scmp.ne.s32.totalorder %s38, %s54
      %p56 = scmp.eq.s32.totalorder %s16, 0
      %p57 = por %p55, %p56
      %s59 = sadd.s32 %s58, 1
      %p62 = scmp.eq.s32.totalorder %s10, 3
      %p63 = scmp.ne.s32.totalorder %s58, %s60
      %p64 = scmp.eq.s32.totalorder %s10, 0
      %p65 = por %p63, %p64
      %p66 = scmp.ne.s32.totalorder %s58, %s60
      %p67 = scmp.eq.s32.totalorder %s15, 3
      %p68 = por %p66, %p67
      %p69 = scmp.ne.s32.totalorder %s60, %s61
      %p70 = scmp.eq.s32.totalorder %s15, 0
      %p71 = por %p69, %p70
      %p72 = scmp.ne.s32.totalorder %s60, %s61
      %p73 = scmp.eq.s32.totalorder %s16, 3
      %p74 = por %p72, %p73
      %p76 = scmp.ne.s32.totalorder %s61, %s75
      %p77 = scmp.eq.s32.totalorder %s16, 0
      %p78 = por %p76, %p77
      %s79 = ssub.s32 %s17, %s29
      %p80 = scmp.eq.s32.totalorder %s79, 0
      %s82 = sadd.s32 %s81, 1
      %s83 = scalar_select %p80, %s81, %s82
      %p86 = pneg %p80
      %p87 = scmp.eq.s32.totalorder %s10, 3
      %p88 = por %p86, %p87
      %p89 = scmp.ne.s32.totalorder %s81, %s84
      %p90 = scmp.eq.s32.totalorder %s10, 0
      %p91 = por %p89, %p90
      %p92 = scmp.ne.s32.totalorder %s81, %s84
      %p93 = scmp.eq.s32.totalorder %s15, 3
      %p94 = por %p92, %p93
      %p95 = scmp.ne.s32.totalorder %s84, %s85
      %p96 = scmp.eq.s32.totalorder %s15, 0
      %p97 = por %p95, %p96
      %p98 = scmp.ne.s32.totalorder %s84, %s85
      %p99 = scmp.eq.s32.totalorder %s16, 3
      %p100 = por %p98, %p99
      %p102 = scmp.ne.s32.totalorder %s85, %s101
      %p103 = scmp.eq.s32.totalorder %s16, 0
      %p104 = por %p102, %p103
      %s105 = ssub.s32 %s17, %s29
      %p106 = scmp.eq.s32.totalorder %s105, 0
      %s108 = sadd.s32 %s107, 1
      %s109 = scalar_select %p106, %s107, %s108
      %p112 = pneg %p106
      %p113 = scmp.eq.s32.totalorder %s10, 3
      %p114 = por %p112, %p113
      %p115 = scmp.ne.s32.totalorder %s107, %s110
      %p116 = scmp.eq.s32.totalorder %s10, 0
      %p117 = por %p115, %p116
      %p118 = scmp.ne.s32.totalorder %s107, %s110
      %p119 = scmp.eq.s32.totalorder %s15, 3
      %p120 = por %p118, %p119
      %p121 = scmp.ne.s32.totalorder %s110, %s111
      %p122 = scmp.eq.s32.totalorder %s15, 0
      %p123 = por %p121, %p122
      %p124 = scmp.ne.s32.totalorder %s110, %s111
      %p125 = scmp.eq.s32.totalorder %s16, 3
      %p126 = por %p124, %p125
      %p128 = scmp.ne.s32.totalorder %s111, %s127
      %p129 = scmp.eq.s32.totalorder %s16, 0
      %p130 = por %p128, %p129
      %p131 = scmp.le.s32.totalorder 1, %s10
      %p132 = scmp.lt.s32.totalorder %s10, 5
      %p133 = pnand %p131, %p132
      %p134 = pneg %p133
      // Predicated region
      $region9: #{enc_module_forward.3} parent=5 // pred_check
        _
      $region10: #{enc_module_forward.3} parent=5 // pred_check_branch
        %136 = sbr.rel (%p133) target = $region12
      $region11: #{enc_module_forward.3} parent=5 // pred_region
        %s137 = ssub.s32 %s10, 1
        // Predicated region
        $region13: #{enc_module_forward.3} parent=11 // pred_check
          %p138 = pneg %p71
        $region14: #{enc_module_forward.3} parent=11 // pred_check_branch
          %140 = sbr.rel (%p138) target = $region16
        $region15: #{enc_module_forward.3} parent=11 // pred_region
          _
        $region16: #{enc_module_forward.3} parent=11 // pred_fallthru
          _
      $region12: #{enc_module_forward.3} parent=5 // pred_fallthru
        _
      %p141 = scmp.lt.s32.totalorder %s10, 4
      // Predicated region
      $region17: #{enc_module_forward.3} parent=5 // pred_check
        %p142 = pneg %p141
      $region18: #{enc_module_forward.3} parent=5 // pred_check_branch
        %144 = sbr.rel (%p142) target = $region20
      $region19: #{enc_module_forward.3} parent=5 // pred_region
        // Predicated region
        $region21: #{enc_module_forward.3} parent=19 // pred_check
          %p145 = pneg %p44
        $region22: #{enc_module_forward.3} parent=19 // pred_check_branch
          %147 = sbr.rel (%p145) target = $region24
        $region23: #{enc_module_forward.3} parent=19 // pred_region
          %s148 = sand.u32 %s34, 1
          %s149 = sand.u32 %s34, 1
          %s150 = smul.addr %s149, 64
          %s151 = scalar_lea.vmem [#allocation2], %s150
          %s152 = smul.u32 4, %s18
          %s153 = smul.addr %s17, 16
          %s154 = sadd.s32 %s152, %s153
          %s155 = smul.addr %s154, 8
          %s156 = scalar_lea.vmem %s0, %s155
          // Predicated region
          $region25: #{enc_module_forward.3} parent=23 // pred_check
            _
          $region26: #{enc_module_forward.3} parent=23 // pred_check_branch
            %158 = sbr.rel (0) target = $region28
          $region27: #{enc_module_forward.3} parent=23 // pred_region
            // Predicated region
            $region29: #{enc_module_forward.3} parent=27 // pred_check
              _
            $region30: #{enc_module_forward.3} parent=27 // pred_check_branch
              %160 = sbr.rel (0) target = $region32
            $region31: #{enc_module_forward.3} parent=27 // pred_region
              loop: start=0, step=1, limit=1
              $region33: #{enc_module_forward.3} parent=31 // loop_pre_header
                _
              $region34: #{enc_module_forward.3} parent=31 // loop_header
                %s162 = sphi 0, %s166
                %p163 = scmp.ge.s32.totalorder %s162, 1
                %s167 = sphi %s156, %s156
                %s168 = sphi %s151, %s151
              $region35: #{enc_module_forward.3} parent=31 // loop_header_branch
                %165 = sbr.rel (%p163) target = $region39
              $region36: #{enc_module_forward.3} parent=31 // loop_body
                %v169 = vld [vmem:[%s167] sm:$0xff]
                %170 = vst [vmem:[%s168] sm:$0xff] %v169
                %v171 = vld [vmem:[%s167 + $0x8] sm:$0xff]
                %172 = vst [vmem:[%s168 + $0x8] sm:$0xff] %v171
                %v173 = vld [vmem:[%s167 + $0x10] sm:$0xff]
                %174 = vst [vmem:[%s168 + $0x10] sm:$0xff] %v173
                %v175 = vld [vmem:[%s167 + $0x18] sm:$0xff]
                %176 = vst [vmem:[%s168 + $0x18] sm:$0xff] %v175
                %v177 = vld [vmem:[%s167 + $0x40] sm:$0xff]
                %178 = vst [vmem:[%s168 + $0x20] sm:$0xff] %v177
                %v179 = vld [vmem:[%s167 + $0x48] sm:$0xff]
                %180 = vst [vmem:[%s168 + $0x28] sm:$0xff] %v179
                %v181 = vld [vmem:[%s167 + $0x50] sm:$0xff]
                %182 = vst [vmem:[%s168 + $0x30] sm:$0xff] %v181
                %v183 = vld [vmem:[%s167 + $0x58] sm:$0xff]
                %184 = vst [vmem:[%s168 + $0x38] sm:$0xff] %v183
              $region37: #{enc_module_forward.3} parent=31 // loop_footer
                %s166 = sadd.s32 1, %s162
              $region38: #{enc_module_forward.3} parent=31 // loop_footer_branch
                %161 = sbr.rel target = $region34
              $region39: #{enc_module_forward.3} parent=31 // loop_exit
                _
            $region32: #{enc_module_forward.3} parent=27 // pred_fallthru
              _
            // Predicated region
            $region40: #{enc_module_forward.3} parent=27 // pred_check
              _
            $region41: #{enc_module_forward.3} parent=27 // pred_check_branch
              %186 = sbr.rel target = $region43
            $region42: #{enc_module_forward.3} parent=27 // pred_region
              _
            $region43: #{enc_module_forward.3} parent=27 // pred_fallthru
              _
          $region28: #{enc_module_forward.3} parent=23 // pred_fallthru
            _
          %187 = vnop
        $region24: #{enc_module_forward.3} parent=19 // pred_fallthru
          _
      $region20: #{enc_module_forward.3} parent=5 // pred_fallthru
        _
      %p188 = scmp.le.s32.totalorder 1, %s10
      %p189 = scmp.lt.s32.totalorder %s10, 5
      %p190 = pnand %p188, %p189
      %p191 = pneg %p190
      // Predicated region
      $region44: #{enc_module_forward.3} parent=5 // pred_check
        _
      $region45: #{enc_module_forward.3} parent=5 // pred_check_branch
        %193 = sbr.rel (%p190) target = $region47
      $region46: #{enc_module_forward.3} parent=5 // pred_region
        %s194 = ssub.s32 %s10, 1
        %s195 = sand.u32 %s37, 1
        %s196 = sand.u32 %s37, 1
        %s197 = smul.addr %s196, 64
        %s198 = scalar_lea.vmem [#allocation2], %s197
        // Predicated region
        $region48: #{enc_module_forward.3} parent=46 // pred_check
          %p199 = pneg %p50
        $region49: #{enc_module_forward.3} parent=46 // pred_check_branch
          %201 = sbr.rel (%p199) target = $region51
        $region50: #{enc_module_forward.3} parent=46 // pred_region
          _
        $region51: #{enc_module_forward.3} parent=46 // pred_fallthru
          _
        %s202 = sand.u32 %s37, 1
        %s203 = sand.u32 %s37, 1
        %s204 = smul.addr %s203, 64
        %s205 = scalar_lea.vmem [#allocation2], %s204
        %p206 = pneg %p50
        %p207 = pneg %p47
        %p208 = pneg %p71
        %p209 = pneg %p68
        %p210 = pneg %p97
        %p211 = pneg %p94
        %p212 = scmp.lt.s32.totalorder %s19, 1
        %s213 = scalar_select %p212, %s19, 1
        %s214 = scalar_lea.vmem %s2, %s213
        %p215 = pneg %p123
        %p216 = pneg %p120
        %p217 = scmp.lt.s32.totalorder %s19, 1
        %s218 = scalar_select %p217, %s19, 1
        %s219 = scalar_lea.vmem %s3, %s218
        %s220 = smul.u32 4, %s20
        %p221 = scmp.lt.s32.totalorder %s19, 1
        %s222 = scalar_select %p221, %s19, 1
        %s223 = scalar_lea.vmem %s2, %s222
        %p224 = scmp.lt.s32.totalorder %s19, 1
        %s225 = scalar_select %p224, %s19, 1
        %s226 = scalar_lea.vmem %s3, %s225
        %p227 = scmp.eq.s32.totalorder %s20, 0
        // Predicated region
        $region52: #{enc_module_forward.3} parent=46 // pred_check
          %p228 = pneg %p227
        $region53: #{enc_module_forward.3} parent=46 // pred_check_branch
          %230 = sbr.rel (%p228) target = $region55
        $region54: #{enc_module_forward.3} parent=46 // pred_region
          %vm231 = vcmask 122880
          %232 = vst.msk [vmem:[%s223] sm:$0x1] %vm231, 0.0
          %233 = vst.msk [vmem:[%s226] sm:$0x1] %vm231, 0.0
        $region55: #{enc_module_forward.3} parent=46 // pred_fallthru
          _
        %v234 = vld [vmem:[%s198] sm:$0xff]
        %v235 = vld [vmem:[%s198 + $0x8] sm:$0xff]
        %v236 = vld [vmem:[%s198 + $0x10] sm:$0xff]
        %v237 = vld [vmem:[%s198 + $0x18] sm:$0xff]
        %v238 = vld [vmem:[%s198 + $0x20] sm:$0xff]
        %v239 = vld [vmem:[%s198 + $0x28] sm:$0xff]
        %v240 = vld [vmem:[%s198 + $0x30] sm:$0xff]
        %v241 = vld [vmem:[%s198 + $0x38] sm:$0xff]
        %v242 = vld [vmem:[%s1] sm:$0xff]
        %v243 = vld [vmem:[%s1 + $0x8] sm:$0xff]
        %244 = vxpose.xlu0.b32.start [1/16] %v234, 128
        %245 = vxpose.xlu0.b32.cont [2/16] %v238, 128
        %246 = vxpose.xlu0.b32.cont [3/16] 0.0, 128
        %247 = vxpose.xlu0.b32.cont [4/16] 0.0, 128
        %248 = vxpose.xlu0.b32.cont [5/16] 0.0, 128
        %249 = vxpose.xlu0.b32.cont [6/16] 0.0, 128
        %250 = vxpose.xlu0.b32.cont [7/16] 0.0, 128
        %251 = vxpose.xlu0.b32.cont [8/16] 0.0, 128
        %252 = vxpose.xlu0.b32.cont [9/16] 0.0, 128
        %253 = vxpose.xlu0.b32.cont [10/16] 0.0, 128
        %254 = vxpose.xlu0.b32.cont [11/16] 0.0, 128
        %255 = vxpose.xlu0.b32.cont [12/16] 0.0, 128
        %256 = vxpose.xlu0.b32.cont [13/16] 0.0, 128
        %257 = vxpose.xlu0.b32.cont [14/16] 0.0, 128
        %258 = vxpose.xlu0.b32.cont [15/16] 0.0, 128
        %259 = vxpose.xlu0.b32.end [16/16] 0.0, 128
        %v260 = vpop.trf.xlu0
        %v261 = vpop.trf.xlu0
        %v262 = vpop.trf.xlu0
        %v263 = vpop.trf.xlu0
        %v264 = vpop.trf.xlu0
        %v265 = vpop.trf.xlu0
        %v266 = vpop.trf.xlu0
        %v267 = vpop.trf.xlu0
        %v268 = vpop.trf.xlu0
        %v269 = vpop.trf.xlu0
        %v270 = vpop.trf.xlu0
        %v271 = vpop.trf.xlu0
        %v272 = vpop.trf.xlu0
        %v273 = vpop.trf.xlu0
        %v274 = vpop.trf.xlu0
        %v275 = vpop.trf.xlu0
        %276 = vxpose.xlu0.b32.start [1/16] %v235, 128
        %277 = vxpose.xlu0.b32.cont [2/16] %v239, 128
        %278 = vxpose.xlu0.b32.cont [3/16] 0.0, 128
        %279 = vxpose.xlu0.b32.cont [4/16] 0.0, 128
        %280 = vxpose.xlu0.b32.cont [5/16] 0.0, 128
        %281 = vxpose.xlu0.b32.cont [6/16] 0.0, 128
        %282 = vxpose.xlu0.b32.cont [7/16] 0.0, 128
        %283 = vxpose.xlu0.b32.cont [8/16] 0.0, 128
        %284 = vxpose.xlu0.b32.cont [9/16] 0.0, 128
        %285 = vxpose.xlu0.b32.cont [10/16] 0.0, 128
        %286 = vxpose.xlu0.b32.cont [11/16] 0.0, 128
        %287 = vxpose.xlu0.b32.cont [12/16] 0.0, 128
        %288 = vxpose.xlu0.b32.cont [13/16] 0.0, 128
        %289 = vxpose.xlu0.b32.cont [14/16] 0.0, 128
        %290 = vxpose.xlu0.b32.cont [15/16] 0.0, 128
        %291 = vxpose.xlu0.b32.end [16/16] 0.0, 128
        %v292 = vpop.trf.xlu0
        %v293 = vpop.trf.xlu0
        %v294 = vpop.trf.xlu0
        %v295 = vpop.trf.xlu0
        %v296 = vpop.trf.xlu0
        %v297 = vpop.trf.xlu0
        %v298 = vpop.trf.xlu0
        %v299 = vpop.trf.xlu0
        %v300 = vpop.trf.xlu0
        %v301 = vpop.trf.xlu0
        %v302 = vpop.trf.xlu0
        %v303 = vpop.trf.xlu0
        %v304 = vpop.trf.xlu0
        %v305 = vpop.trf.xlu0
        %v306 = vpop.trf.xlu0
        %v307 = vpop.trf.xlu0
        %308 = vxpose.xlu0.b32.start [1/16] %v236, 128
        %309 = vxpose.xlu0.b32.cont [2/16] %v240, 128
        %310 = vxpose.xlu0.b32.cont [3/16] 0.0, 128
        %311 = vxpose.xlu0.b32.cont [4/16] 0.0, 128
        %312 = vxpose.xlu0.b32.cont [5/16] 0.0, 128
        %313 = vxpose.xlu0.b32.cont [6/16] 0.0, 128
        %314 = vxpose.xlu0.b32.cont [7/16] 0.0, 128
        %315 = vxpose.xlu0.b32.cont [8/16] 0.0, 128
        %316 = vxpose.xlu0.b32.cont [9/16] 0.0, 128
        %317 = vxpose.xlu0.b32.cont [10/16] 0.0, 128
        %318 = vxpose.xlu0.b32.cont [11/16] 0.0, 128
        %319 = vxpose.xlu0.b32.cont [12/16] 0.0, 128
        %320 = vxpose.xlu0.b32.cont [13/16] 0.0, 128
        %321 = vxpose.xlu0.b32.cont [14/16] 0.0, 128
        %322 = vxpose.xlu0.b32.cont [15/16] 0.0, 128
        %323 = vxpose.xlu0.b32.end [16/16] 0.0, 128
        %v324 = vpop.trf.xlu0
        %v325 = vpop.trf.xlu0
        %v326 = vpop.trf.xlu0
        %v327 = vpop.trf.xlu0
        %v328 = vpop.trf.xlu0
        %v329 = vpop.trf.xlu0
        %v330 = vpop.trf.xlu0
        %v331 = vpop.trf.xlu0
        %v332 = vpop.trf.xlu0
        %v333 = vpop.trf.xlu0
        %v334 = vpop.trf.xlu0
        %v335 = vpop.trf.xlu0
        %v336 = vpop.trf.xlu0
        %v337 = vpop.trf.xlu0
        %v338 = vpop.trf.xlu0
        %v339 = vpop.trf.xlu0
        %340 = vxpose.xlu0.b32.start [1/16] %v237, 128
        %341 = vxpose.xlu0.b32.cont [2/16] %v241, 128
        %342 = vxpose.xlu0.b32.cont [3/16] 0.0, 128
        %343 = vxpose.xlu0.b32.cont [4/16] 0.0, 128
        %344 = vxpose.xlu0.b32.cont [5/16] 0.0, 128
        %345 = vxpose.xlu0.b32.cont [6/16] 0.0, 128
        %346 = vxpose.xlu0.b32.cont [7/16] 0.0, 128
        %347 = vxpose.xlu0.b32.cont [8/16] 0.0, 128
        %348 = vxpose.xlu0.b32.cont [9/16] 0.0, 128
        %349 = vxpose.xlu0.b32.cont [10/16] 0.0, 128
        %350 = vxpose.xlu0.b32.cont [11/16] 0.0, 128
        %351 = vxpose.xlu0.b32.cont [12/16] 0.0, 128
        %352 = vxpose.xlu0.b32.cont [13/16] 0.0, 128
        %353 = vxpose.xlu0.b32.cont [14/16] 0.0, 128
        %354 = vxpose.xlu0.b32.cont [15/16] 0.0, 128
        %355 = vxpose.xlu0.b32.end [16/16] 0.0, 128
        %v356 = vpop.trf.xlu0
        %v357 = vpop.trf.xlu0
        %v358 = vpop.trf.xlu0
        %v359 = vpop.trf.xlu0
        %v360 = vpop.trf.xlu0
        %v361 = vpop.trf.xlu0
        %v362 = vpop.trf.xlu0
        %v363 = vpop.trf.xlu0
        %v364 = vpop.trf.xlu0
        %v365 = vpop.trf.xlu0
        %v366 = vpop.trf.xlu0
        %v367 = vpop.trf.xlu0
        %v368 = vpop.trf.xlu0
        %v369 = vpop.trf.xlu0
        %v370 = vpop.trf.xlu0
        %v371 = vpop.trf.xlu0
        %vm372 = vcmask 130048
        %v374 = vsel %vm372, %v260, 0
        %v377 = vsel %vm372, %v261, 0
        %v380 = vsel %vm372, %v262, 0
        %v383 = vsel %vm372, %v263, 0
        %v386 = vsel %vm372, %v264, 0
        %v389 = vsel %vm372, %v265, 0
        %v392 = vsel %vm372, %v266, 0
        %v395 = vsel %vm372, %v267, 0
        %v398 = vsel %vm372, %v268, 0
        %v401 = vsel %vm372, %v269, 0
        %v404 = vsel %vm372, %v270, 0
        %v407 = vsel %vm372, %v271, 0
        %v410 = vsel %vm372, %v272, 0
        %v413 = vsel %vm372, %v273, 0
        %v416 = vsel %vm372, %v274, 0
        %v419 = vsel %vm372, %v275, 0
        %v422 = vsel %vm372, %v292, 0
        %v425 = vsel %vm372, %v293, 0
        %v428 = vsel %vm372, %v294, 0
        %v431 = vsel %vm372, %v295, 0
        %v434 = vsel %vm372, %v296, 0
        %v437 = vsel %vm372, %v297, 0
        %v440 = vsel %vm372, %v298, 0
        %v443 = vsel %vm372, %v299, 0
        %v446 = vsel %vm372, %v300, 0
        %v449 = vsel %vm372, %v301, 0
        %v452 = vsel %vm372, %v302, 0
        %v455 = vsel %vm372, %v303, 0
        %v458 = vsel %vm372, %v304, 0
        %v461 = vsel %vm372, %v305, 0
        %v464 = vsel %vm372, %v306, 0
        %v467 = vsel %vm372, %v307, 0
        %v470 = vsel %vm372, %v324, 0
        %v473 = vsel %vm372, %v325, 0
        %v476 = vsel %vm372, %v326, 0
        %v479 = vsel %vm372, %v327, 0
        %v482 = vsel %vm372, %v328, 0
        %v485 = vsel %vm372, %v329, 0
        %v488 = vsel %vm372, %v330, 0
        %v491 = vsel %vm372, %v331, 0
        %v494 = vsel %vm372, %v332, 0
        %v497 = vsel %vm372, %v333, 0
        %v500 = vsel %vm372, %v334, 0
        %v503 = vsel %vm372, %v335, 0
        %v506 = vsel %vm372, %v336, 0
        %v509 = vsel %vm372, %v337, 0
        %v512 = vsel %vm372, %v338, 0
        %v515 = vsel %vm372, %v339, 0
        %v518 = vsel %vm372, %v356, 0
        %v521 = vsel %vm372, %v357, 0
        %v524 = vsel %vm372, %v358, 0
        %v527 = vsel %vm372, %v359, 0
        %v530 = vsel %vm372, %v360, 0
        %v533 = vsel %vm372, %v361, 0
        %v536 = vsel %vm372, %v362, 0
        %v539 = vsel %vm372, %v363, 0
        %v542 = vsel %vm372, %v364, 0
        %v545 = vsel %vm372, %v365, 0
        %v548 = vsel %vm372, %v366, 0
        %v551 = vsel %vm372, %v367, 0
        %v554 = vsel %vm372, %v368, 0
        %v557 = vsel %vm372, %v369, 0
        %v560 = vsel %vm372, %v370, 0
        %v563 = vsel %vm372, %v371, 0
        %565 = vmatprep.subr.mxu0 0.0
        %566 = vmatpush1.msra.mxu0 %v242
        %567 = vmatprep.subr.mxu0 0.0
        %568 = vmatpush1.msra.mxu0 %v243
        %569 = vmatprep.subr.mxu0 0.0
        %570 = vmatpush1.msra.mxu0 0.0
        %571 = vmatprep.subr.mxu0 0.0
        %572 = vmatpush1.msra.mxu0 0.0
        %573 = vmatprep.subr.mxu0 0.0
        %574 = vmatpush1.msra.mxu0 0.0
        %575 = vmatprep.subr.mxu0 0.0
        %576 = vmatpush1.msra.mxu0 0.0
        %577 = vmatprep.subr.mxu0 0.0
        %578 = vmatpush1.msra.mxu0 0.0
        %579 = vmatprep.subr.mxu0 0.0
        %580 = vmatpush1.msra.mxu0 0.0
        %581 = vmatprep.subr.mxu0 0.0
        %582 = vmatpush1.msra.mxu0 0.0
        %583 = vmatprep.subr.mxu0 0.0
        %584 = vmatpush1.msra.mxu0 0.0
        %585 = vmatprep.subr.mxu0 0.0
        %586 = vmatpush1.msra.mxu0 0.0
        %587 = vmatprep.subr.mxu0 0.0
        %588 = vmatpush1.msra.mxu0 0.0
        %589 = vmatprep.subr.mxu0 0.0
        %590 = vmatpush1.msra.mxu0 0.0
        %591 = vmatprep.subr.mxu0 0.0
        %592 = vmatpush1.msra.mxu0 0.0
        %593 = vmatprep.subr.mxu0 0.0
        %594 = vmatpush1.msra.mxu0 0.0
        %595 = vmatprep.subr.mxu0 0.0
        %596 = vmatpush1.msra.mxu0 0.0
        %597 = vmatprep.subr.mxu0 0.0
        %598 = vmatpush1.msra.mxu0 0.0
        %599 = vmatprep.subr.mxu0 0.0
        %600 = vmatpush1.msra.mxu0 0.0
        %601 = vmatprep.subr.mxu0 0.0
        %602 = vmatpush1.msra.mxu0 0.0
        %603 = vmatprep.subr.mxu0 0.0
        %604 = vmatpush1.msra.mxu0 0.0
        %605 = vmatprep.subr.mxu0 0.0
        %606 = vmatpush1.msra.mxu0 0.0
        %607 = vmatprep.subr.mxu0 0.0
        %608 = vmatpush1.msra.mxu0 0.0
        %609 = vmatprep.subr.mxu0 0.0
        %610 = vmatpush1.msra.mxu0 0.0
        %611 = vmatprep.subr.mxu0 0.0
        %612 = vmatpush1.msra.mxu0 0.0
        %613 = vmatprep.subr.mxu0 0.0
        %614 = vmatpush1.msra.mxu0 0.0
        %615 = vmatprep.subr.mxu0 0.0
        %616 = vmatpush1.msra.mxu0 0.0
        %617 = vmatprep.subr.mxu0 0.0
        %618 = vmatpush1.msra.mxu0 0.0
        %619 = vmatprep.subr.mxu0 0.0
        %620 = vmatpush1.msra.mxu0 0.0
        %621 = vmatprep.subr.mxu0 0.0
        %622 = vmatpush1.msra.mxu0 0.0
        %623 = vmatprep.subr.mxu0 0.0
        %624 = vmatpush1.msra.mxu0 0.0
        %625 = vmatprep.subr.mxu0 0.0
        %626 = vmatpush1.msra.mxu0 0.0
        %627 = vmatprep.subr.mxu0 0.0
        %628 = vmatpush1.msra.mxu0 0.0
        %629 = vmatprep.mubr.f32.mxu0 0.0
        %630 = vmatmul.mubr.f32.gmra.mrb[0].mxu0 %v374
        %v631 = vpop.f32.mrb[0].mxu0
        %v632 = vadd.f32 0.0, %v631
        %v633 = vpop.f32.mrb[0].mxu0
        %634 = vmatprep.mubr.f32.mxu0 0.0
        %635 = vmatmul.mubr.f32.gmra.mrb[0].mxu0 %v377
        %v636 = vpop.f32.mrb[0].mxu0
        %v637 = vadd.f32 0.0, %v636
        %v638 = vpop.f32.mrb[0].mxu0
        %639 = vmatprep.mubr.f32.mxu0 0.0
        %640 = vmatmul.mubr.f32.gmra.mrb[0].mxu0 %v380
        %v641 = vpop.f32.mrb[0].mxu0
        %v642 = vadd.f32 0.0, %v641
        %v643 = vpop.f32.mrb[0].mxu0
        %644 = vmatprep.mubr.f32.mxu0 0.0
        %645 = vmatmul.mubr.f32.gmra.mrb[0].mxu0 %v383
        %v646 = vpop.f32.mrb[0].mxu0
        %v647 = vadd.f32 0.0, %v646
        %v648 = vpop.f32.mrb[0].mxu0
        %649 = vmatprep.mubr.f32.mxu0 0.0
        %650 = vmatmul.mubr.f32.gmra.mrb[0].mxu0 %v386
        %v651 = vpop.f32.mrb[0].mxu0
        %v652 = vadd.f32 0.0, %v651
        %v653 = vpop.f32.mrb[0].mxu0
        %654 = vmatprep.mubr.f32.mxu0 0.0
        %655 = vmatmul.mubr.f32.gmra.mrb[0].mxu0 %v389
        %v656 = vpop.f32.mrb[0].mxu0
        %v657 = vadd.f32 0.0, %v656
        %v658 = vpop.f32.mrb[0].mxu0
        %659 = vmatprep.mubr.f32.mxu0 0.0
        %660 = vmatmul.mubr.f32.gmra.mrb[0].mxu0 %v392
        %v661 = vpop.f32.mrb[0].mxu0
        %v662 = vadd.f32 0.0, %v661
        %v663 = vpop.f32.mrb[0].mxu0
        %664 = vmatprep.mubr.f32.mxu0 0.0
        %665 = vmatmul.mubr.f32.gmra.mrb[0].mxu0 %v395
        %v666 = vpop.f32.mrb[0].mxu0
        %v667 = vadd.f32 0.0, %v666
        %v668 = vpop.f32.mrb[0].mxu0
        %669 = vmatprep.mubr.f32.mxu0 0.0
        %670 = vmatmul.mubr.f32.gmra.mrb[0].mxu0 %v398
        %v671 = vpop.f32.mrb[0].mxu0
        %v672 = vadd.f32 0.0, %v671
        %v673 = vpop.f32.mrb[0].mxu0
        %674 = vmatprep.mubr.f32.mxu0 0.0
        %675 = vmatmul.mubr.f32.gmra.mrb[0].mxu0 %v401
        %v676 = vpop.f32.mrb[0].mxu0
        %v677 = vadd.f32 0.0, %v676
        %v678 = vpop.f32.mrb[0].mxu0
        %679 = vmatprep.mubr.f32.mxu0 0.0
        %680 = vmatmul.mubr.f32.gmra.mrb[0].mxu0 %v404
        %v681 = vpop.f32.mrb[0].mxu0
        %v682 = vadd.f32 0.0, %v681
        %v683 = vpop.f32.mrb[0].mxu0
        %684 = vmatprep.mubr.f32.mxu0 0.0
        %685 = vmatmul.mubr.f32.gmra.mrb[0].mxu0 %v407
        %v686 = vpop.f32.mrb[0].mxu0
        %v687 = vadd.f32 0.0, %v686
        %v688 = vpop.f32.mrb[0].mxu0
        %689 = vmatprep.mubr.f32.mxu0 0.0
        %690 = vmatmul.mubr.f32.gmra.mrb[0].mxu0 %v410
        %v691 = vpop.f32.mrb[0].mxu0
        %v692 = vadd.f32 0.0, %v691
        %v693 = vpop.f32.mrb[0].mxu0
        %694 = vmatprep.mubr.f32.mxu0 0.0
        %695 = vmatmul.mubr.f32.gmra.mrb[0].mxu0 %v413
        %v696 = vpop.f32.mrb[0].mxu0
        %v697 = vadd.f32 0.0, %v696
        %v698 = vpop.f32.mrb[0].mxu0
        %699 = vmatprep.mubr.f32.mxu0 0.0
        %700 = vmatmul.mubr.f32.gmra.mrb[0].mxu0 %v416
        %v701 = vpop.f32.mrb[0].mxu0
        %v702 = vadd.f32 0.0, %v701
        %v703 = vpop.f32.mrb[0].mxu0
        %704 = vmatprep.mubr.f32.mxu0 0.0
        %705 = vmatmul.mubr.f32.gmra.mrb[0].mxu0 %v419
        %v706 = vpop.f32.mrb[0].mxu0
        %v707 = vadd.f32 0.0, %v706
        %v708 = vpop.f32.mrb[0].mxu0
        %709 = vmatprep.mubr.f32.mxu0 0.0
        %710 = vmatmul.mubr.f32.gmra.mrb[0].mxu0 %v422
        %v711 = vpop.f32.mrb[0].mxu0
        %v712 = vadd.f32 0.0, %v711
        %v713 = vpop.f32.mrb[0].mxu0
        %714 = vmatprep.mubr.f32.mxu0 0.0
        %715 = vmatmul.mubr.f32.gmra.mrb[0].mxu0 %v425
        %v716 = vpop.f32.mrb[0].mxu0
        %v717 = vadd.f32 0.0, %v716
        %v718 = vpop.f32.mrb[0].mxu0
        %719 = vmatprep.mubr.f32.mxu0 0.0
        %720 = vmatmul.mubr.f32.gmra.mrb[0].mxu0 %v428
        %v721 = vpop.f32.mrb[0].mxu0
        %v722 = vadd.f32 0.0, %v721
        %v723 = vpop.f32.mrb[0].mxu0
        %724 = vmatprep.mubr.f32.mxu0 0.0
        %725 = vmatmul.mubr.f32.gmra.mrb[0].mxu0 %v431
        %v726 = vpop.f32.mrb[0].mxu0
        %v727 = vadd.f32 0.0, %v726
        %v728 = vpop.f32.mrb[0].mxu0
        %729 = vmatprep.mubr.f32.mxu0 0.0
        %730 = vmatmul.mubr.f32.gmra.mrb[0].mxu0 %v434
        %v731 = vpop.f32.mrb[0].mxu0
        %v732 = vadd.f32 0.0, %v731
        %v733 = vpop.f32.mrb[0].mxu0
        %734 = vmatprep.mubr.f32.mxu0 0.0
        %735 = vmatmul.mubr.f32.gmra.mrb[0].mxu0 %v437
        %v736 = vpop.f32.mrb[0].mxu0
        %v737 = vadd.f32 0.0, %v736
        %v738 = vpop.f32.mrb[0].mxu0
        %739 = vmatprep.mubr.f32.mxu0 0.0
        %740 = vmatmul.mubr.f32.gmra.mrb[0].mxu0 %v440
        %v741 = vpop.f32.mrb[0].mxu0
        %v742 = vadd.f32 0.0, %v741
        %v743 = vpop.f32.mrb[0].mxu0
        %744 = vmatprep.mubr.f32.mxu0 0.0
        %745 = vmatmul.mubr.f32.gmra.mrb[0].mxu0 %v443
        %v746 = vpop.f32.mrb[0].mxu0
        %v747 = vadd.f32 0.0, %v746
        %v748 = vpop.f32.mrb[0].mxu0
        %749 = vmatprep.mubr.f32.mxu0 0.0
        %750 = vmatmul.mubr.f32.gmra.mrb[0].mxu0 %v446
        %v751 = vpop.f32.mrb[0].mxu0
        %v752 = vadd.f32 0.0, %v751
        %v753 = vpop.f32.mrb[0].mxu0
        %754 = vmatprep.mubr.f32.mxu0 0.0
        %755 = vmatmul.mubr.f32.gmra.mrb[0].mxu0 %v449
        %v756 = vpop.f32.mrb[0].mxu0
        %v757 = vadd.f32 0.0, %v756
        %v758 = vpop.f32.mrb[0].mxu0
        %759 = vmatprep.mubr.f32.mxu0 0.0
        %760 = vmatmul.mubr.f32.gmra.mrb[0].mxu0 %v452
        %v761 = vpop.f32.mrb[0].mxu0
        %v762 = vadd.f32 0.0, %v761
        %v763 = vpop.f32.mrb[0].mxu0
        %764 = vmatprep.mubr.f32.mxu0 0.0
        %765 = vmatmul.mubr.f32.gmra.mrb[0].mxu0 %v455
        %v766 = vpop.f32.mrb[0].mxu0
        %v767 = vadd.f32 0.0, %v766
        %v768 = vpop.f32.mrb[0].mxu0
        %769 = vmatprep.mubr.f32.mxu0 0.0
        %770 = vmatmul.mubr.f32.gmra.mrb[0].mxu0 %v458
        %v771 = vpop.f32.mrb[0].mxu0
        %v772 = vadd.f32 0.0, %v771
        %v773 = vpop.f32.mrb[0].mxu0
        %774 = vmatprep.mubr.f32.mxu0 0.0
        %775 = vmatmul.mubr.f32.gmra.mrb[0].mxu0 %v461
        %v776 = vpop.f32.mrb[0].mxu0
        %v777 = vadd.f32 0.0, %v776
        %v778 = vpop.f32.mrb[0].mxu0
        %779 = vmatprep.mubr.f32.mxu0 0.0
        %780 = vmatmul.mubr.f32.gmra.mrb[0].mxu0 %v464
        %v781 = vpop.f32.mrb[0].mxu0
        %v782 = vadd.f32 0.0, %v781
        %v783 = vpop.f32.mrb[0].mxu0
        %784 = vmatprep.mubr.f32.mxu0 0.0
        %785 = vmatmul.mubr.f32.gmra.mrb[0].mxu0 %v467
        %v786 = vpop.f32.mrb[0].mxu0
        %v787 = vadd.f32 0.0, %v786
        %v788 = vpop.f32.mrb[0].mxu0
        %789 = vmatprep.mubr.f32.mxu0 0.0
        %790 = vmatmul.mubr.f32.gmra.mrb[0].mxu0 %v470
        %v791 = vpop.f32.mrb[0].mxu0
        %v792 = vadd.f32 0.0, %v791
        %v793 = vpop.f32.mrb[0].mxu0
        %794 = vmatprep.mubr.f32.mxu0 0.0
        %795 = vmatmul.mubr.f32.gmra.mrb[0].mxu0 %v473
        %v796 = vpop.f32.mrb[0].mxu0
        %v797 = vadd.f32 0.0, %v796
        %v798 = vpop.f32.mrb[0].mxu0
        %799 = vmatprep.mubr.f32.mxu0 0.0
        %800 = vmatmul.mubr.f32.gmra.mrb[0].mxu0 %v476
        %v801 = vpop.f32.mrb[0].mxu0
        %v802 = vadd.f32 0.0, %v801
        %v803 = vpop.f32.mrb[0].mxu0
        %804 = vmatprep.mubr.f32.mxu0 0.0
        %805 = vmatmul.mubr.f32.gmra.mrb[0].mxu0 %v479
        %v806 = vpop.f32.mrb[0].mxu0
        %v807 = vadd.f32 0.0, %v806
        %v808 = vpop.f32.mrb[0].mxu0
        %809 = vmatprep.mubr.f32.mxu0 0.0
        %810 = vmatmul.mubr.f32.gmra.mrb[0].mxu0 %v482
        %v811 = vpop.f32.mrb[0].mxu0
        %v812 = vadd.f32 0.0, %v811
        %v813 = vpop.f32.mrb[0].mxu0
        %814 = vmatprep.mubr.f32.mxu0 0.0
        %815 = vmatmul.mubr.f32.gmra.mrb[0].mxu0 %v485
        %v816 = vpop.f32.mrb[0].mxu0
        %v817 = vadd.f32 0.0, %v816
        %v818 = vpop.f32.mrb[0].mxu0
        %819 = vmatprep.mubr.f32.mxu0 0.0
        %820 = vmatmul.mubr.f32.gmra.mrb[0].mxu0 %v488
        %v821 = vpop.f32.mrb[0].mxu0
        %v822 = vadd.f32 0.0, %v821
        %v823 = vpop.f32.mrb[0].mxu0
        %824 = vmatprep.mubr.f32.mxu0 0.0
        %825 = vmatmul.mubr.f32.gmra.mrb[0].mxu0 %v491
        %v826 = vpop.f32.mrb[0].mxu0
        %v827 = vadd.f32 0.0, %v826
        %v828 = vpop.f32.mrb[0].mxu0
        %829 = vmatprep.mubr.f32.mxu0 0.0
        %830 = vmatmul.mubr.f32.gmra.mrb[0].mxu0 %v494
        %v831 = vpop.f32.mrb[0].mxu0
        %v832 = vadd.f32 0.0, %v831
        %v833 = vpop.f32.mrb[0].mxu0
        %834 = vmatprep.mubr.f32.mxu0 0.0
        %835 = vmatmul.mubr.f32.gmra.mrb[0].mxu0 %v497
        %v836 = vpop.f32.mrb[0].mxu0
        %v837 = vadd.f32 0.0, %v836
        %v838 = vpop.f32.mrb[0].mxu0
        %839 = vmatprep.mubr.f32.mxu0 0.0
        %840 = vmatmul.mubr.f32.gmra.mrb[0].mxu0 %v500
        %v841 = vpop.f32.mrb[0].mxu0
        %v842 = vadd.f32 0.0, %v841
        %v843 = vpop.f32.mrb[0].mxu0
        %844 = vmatprep.mubr.f32.mxu0 0.0
        %845 = vmatmul.mubr.f32.gmra.mrb[0].mxu0 %v503
        %v846 = vpop.f32.mrb[0].mxu0
        %v847 = vadd.f32 0.0, %v846
        %v848 = vpop.f32.mrb[0].mxu0
        %849 = vmatprep.mubr.f32.mxu0 0.0
        %850 = vmatmul.mubr.f32.gmra.mrb[0].mxu0 %v506
        %v851 = vpop.f32.mrb[0].mxu0
        %v852 = vadd.f32 0.0, %v851
        %v853 = vpop.f32.mrb[0].mxu0
        %854 = vmatprep.mubr.f32.mxu0 0.0
        %855 = vmatmul.mubr.f32.gmra.mrb[0].mxu0 %v509
        %v856 = vpop.f32.mrb[0].mxu0
        %v857 = vadd.f32 0.0, %v856
        %v858 = vpop.f32.mrb[0].mxu0
        %859 = vmatprep.mubr.f32.mxu0 0.0
        %860 = vmatmul.mubr.f32.gmra.mrb[0].mxu0 %v512
        %v861 = vpop.f32.mrb[0].mxu0
        %v862 = vadd.f32 0.0, %v861
        %v863 = vpop.f32.mrb[0].mxu0
        %864 = vmatprep.mubr.f32.mxu0 0.0
        %865 = vmatmul.mubr.f32.gmra.mrb[0].mxu0 %v515
        %v866 = vpop.f32.mrb[0].mxu0
        %v867 = vadd.f32 0.0, %v866
        %v868 = vpop.f32.mrb[0].mxu0
        %869 = vmatprep.mubr.f32.mxu0 0.0
        %870 = vmatmul.mubr.f32.gmra.mrb[0].mxu0 %v518
        %v871 = vpop.f32.mrb[0].mxu0
        %v872 = vadd.f32 0.0, %v871
        %v873 = vpop.f32.mrb[0].mxu0
        %874 = vmatprep.mubr.f32.mxu0 0.0
        %875 = vmatmul.mubr.f32.gmra.mrb[0].mxu0 %v521
        %v876 = vpop.f32.mrb[0].mxu0
        %v877 = vadd.f32 0.0, %v876
        %v878 = vpop.f32.mrb[0].mxu0
        %879 = vmatprep.mubr.f32.mxu0 0.0
        %880 = vmatmul.mubr.f32.gmra.mrb[0].mxu0 %v524
        %v881 = vpop.f32.mrb[0].mxu0
        %v882 = vadd.f32 0.0, %v881
        %v883 = vpop.f32.mrb[0].mxu0
        %884 = vmatprep.mubr.f32.mxu0 0.0
        %885 = vmatmul.mubr.f32.gmra.mrb[0].mxu0 %v527
        %v886 = vpop.f32.mrb[0].mxu0
        %v887 = vadd.f32 0.0, %v886
        %v888 = vpop.f32.mrb[0].mxu0
        %889 = vmatprep.mubr.f32.mxu0 0.0
        %890 = vmatmul.mubr.f32.gmra.mrb[0].mxu0 %v530
        %v891 = vpop.f32.mrb[0].mxu0
        %v892 = vadd.f32 0.0, %v891
        %v893 = vpop.f32.mrb[0].mxu0
        %894 = vmatprep.mubr.f32.mxu0 0.0
        %895 = vmatmul.mubr.f32.gmra.mrb[0].mxu0 %v533
        %v896 = vpop.f32.mrb[0].mxu0
        %v897 = vadd.f32 0.0, %v896
        %v898 = vpop.f32.mrb[0].mxu0
        %899 = vmatprep.mubr.f32.mxu0 0.0
        %900 = vmatmul.mubr.f32.gmra.mrb[0].mxu0 %v536
        %v901 = vpop.f32.mrb[0].mxu0
        %v902 = vadd.f32 0.0, %v901
        %v903 = vpop.f32.mrb[0].mxu0
        %904 = vmatprep.mubr.f32.mxu0 0.0
        %905 = vmatmul.mubr.f32.gmra.mrb[0].mxu0 %v539
        %v906 = vpop.f32.mrb[0].mxu0
        %v907 = vadd.f32 0.0, %v906
        %v908 = vpop.f32.mrb[0].mxu0
        %909 = vmatprep.mubr.f32.mxu0 0.0
        %910 = vmatmul.mubr.f32.gmra.mrb[0].mxu0 %v542
        %v911 = vpop.f32.mrb[0].mxu0
        %v912 = vadd.f32 0.0, %v911
        %v913 = vpop.f32.mrb[0].mxu0
        %914 = vmatprep.mubr.f32.mxu0 0.0
        %915 = vmatmul.mubr.f32.gmra.mrb[0].mxu0 %v545
        %v916 = vpop.f32.mrb[0].mxu0
        %v917 = vadd.f32 0.0, %v916
        %v918 = vpop.f32.mrb[0].mxu0
        %919 = vmatprep.mubr.f32.mxu0 0.0
        %920 = vmatmul.mubr.f32.gmra.mrb[0].mxu0 %v548
        %v921 = vpop.f32.mrb[0].mxu0
        %v922 = vadd.f32 0.0, %v921
        %v923 = vpop.f32.mrb[0].mxu0
        %924 = vmatprep.mubr.f32.mxu0 0.0
        %925 = vmatmul.mubr.f32.gmra.mrb[0].mxu0 %v551
        %v926 = vpop.f32.mrb[0].mxu0
        %v927 = vadd.f32 0.0, %v926
        %v928 = vpop.f32.mrb[0].mxu0
        %929 = vmatprep.mubr.f32.mxu0 0.0
        %930 = vmatmul.mubr.f32.gmra.mrb[0].mxu0 %v554
        %v931 = vpop.f32.mrb[0].mxu0
        %v932 = vadd.f32 0.0, %v931
        %v933 = vpop.f32.mrb[0].mxu0
        %934 = vmatprep.mubr.f32.mxu0 0.0
        %935 = vmatmul.mubr.f32.gmra.mrb[0].mxu0 %v557
        %v936 = vpop.f32.mrb[0].mxu0
        %v937 = vadd.f32 0.0, %v936
        %v938 = vpop.f32.mrb[0].mxu0
        %939 = vmatprep.mubr.f32.mxu0 0.0
        %940 = vmatmul.mubr.f32.gmra.mrb[0].mxu0 %v560
        %v941 = vpop.f32.mrb[0].mxu0
        %v942 = vadd.f32 0.0, %v941
        %v943 = vpop.f32.mrb[0].mxu0
        %944 = vmatprep.mubr.f32.mxu0 0.0
        %945 = vmatmul.mubr.f32.gmra.mrb[0].mxu0 %v563
        %v946 = vpop.f32.mrb[0].mxu0
        %v947 = vadd.f32 0.0, %v946
        %v948 = vpop.f32.mrb[0].mxu0
        %949 = vdwg.mxu0
        %v950 = vld [vmem:[%s223] sm:$0x1]
        %v951 = vsel %vm372, %v632, 0.0
        %v952 = vsel %vm372, %v637, 0.0
        %v953 = vadd.f32 %v951, %v952
        %v954 = vsel %vm372, %v642, 0.0
        %v955 = vadd.f32 %v953, %v954
        %v956 = vsel %vm372, %v647, 0.0
        %v957 = vadd.f32 %v955, %v956
        %v958 = vsel %vm372, %v652, 0.0
        %v959 = vadd.f32 %v957, %v958
        %v960 = vsel %vm372, %v657, 0.0
        %v961 = vadd.f32 %v959, %v960
        %v962 = vsel %vm372, %v662, 0.0
        %v963 = vadd.f32 %v961, %v962
        %v964 = vsel %vm372, %v667, 0.0
        %v965 = vadd.f32 %v963, %v964
        %v966 = vsel %vm372, %v672, 0.0
        %v967 = vadd.f32 %v965, %v966
        %v968 = vsel %vm372, %v677, 0.0
        %v969 = vadd.f32 %v967, %v968
        %v970 = vsel %vm372, %v682, 0.0
        %v971 = vadd.f32 %v969, %v970
        %v972 = vsel %vm372, %v687, 0.0
        %v973 = vadd.f32 %v971, %v972
        %v974 = vsel %vm372, %v692, 0.0
        %v975 = vadd.f32 %v973, %v974
        %v976 = vsel %vm372, %v697, 0.0
        %v977 = vadd.f32 %v975, %v976
        %v978 = vsel %vm372, %v702, 0.0
        %v979 = vadd.f32 %v977, %v978
        %v980 = vsel %vm372, %v707, 0.0
        %v981 = vadd.f32 %v979, %v980
        %v982 = vsel %vm372, %v712, 0.0
        %v983 = vadd.f32 %v981, %v982
        %v984 = vsel %vm372, %v717, 0.0
        %v985 = vadd.f32 %v983, %v984
        %v986 = vsel %vm372, %v722, 0.0
        %v987 = vadd.f32 %v985, %v986
        %v988 = vsel %vm372, %v727, 0.0
        %v989 = vadd.f32 %v987, %v988
        %v990 = vsel %vm372, %v732, 0.0
        %v991 = vadd.f32 %v989, %v990
        %v992 = vsel %vm372, %v737, 0.0
        %v993 = vadd.f32 %v991, %v992
        %v994 = vsel %vm372, %v742, 0.0
        %v995 = vadd.f32 %v993, %v994
        %v996 = vsel %vm372, %v747, 0.0
        %v997 = vadd.f32 %v995, %v996
        %v998 = vsel %vm372, %v752, 0.0
        %v999 = vadd.f32 %v997, %v998
        %v1000 = vsel %vm372, %v757, 0.0
        %v1001 = vadd.f32 %v999, %v1000
        %v1002 = vsel %vm372, %v762, 0.0
        %v1003 = vadd.f32 %v1001, %v1002
        %v1004 = vsel %vm372, %v767, 0.0
        %v1005 = vadd.f32 %v1003, %v1004
        %v1006 = vsel %vm372, %v772, 0.0
        %v1007 = vadd.f32 %v1005, %v1006
        %v1008 = vsel %vm372, %v777, 0.0
        %v1009 = vadd.f32 %v1007, %v1008
        %v1010 = vsel %vm372, %v782, 0.0
        %v1011 = vadd.f32 %v1009, %v1010
        %v1012 = vsel %vm372, %v787, 0.0
        %v1013 = vadd.f32 %v1011, %v1012
        %v1014 = vsel %vm372, %v792, 0.0
        %v1015 = vadd.f32 %v1013, %v1014
        %v1016 = vsel %vm372, %v797, 0.0
        %v1017 = vadd.f32 %v1015, %v1016
        %v1018 = vsel %vm372, %v802, 0.0
        %v1019 = vadd.f32 %v1017, %v1018
        %v1020 = vsel %vm372, %v807, 0.0
        %v1021 = vadd.f32 %v1019, %v1020
        %v1022 = vsel %vm372, %v812, 0.0
        %v1023 = vadd.f32 %v1021, %v1022
        %v1024 = vsel %vm372, %v817, 0.0
        %v1025 = vadd.f32 %v1023, %v1024
        %v1026 = vsel %vm372, %v822, 0.0
        %v1027 = vadd.f32 %v1025, %v1026
        %v1028 = vsel %vm372, %v827, 0.0
        %v1029 = vadd.f32 %v1027, %v1028
        %v1030 = vsel %vm372, %v832, 0.0
        %v1031 = vadd.f32 %v1029, %v1030
        %v1032 = vsel %vm372, %v837, 0.0
        %v1033 = vadd.f32 %v1031, %v1032
        %v1034 = vsel %vm372, %v842, 0.0
        %v1035 = vadd.f32 %v1033, %v1034
        %v1036 = vsel %vm372, %v847, 0.0
        %v1037 = vadd.f32 %v1035, %v1036
        %v1038 = vsel %vm372, %v852, 0.0
        %v1039 = vadd.f32 %v1037, %v1038
        %v1040 = vsel %vm372, %v857, 0.0
        %v1041 = vadd.f32 %v1039, %v1040
        %v1042 = vsel %vm372, %v862, 0.0
        %v1043 = vadd.f32 %v1041, %v1042
        %v1044 = vsel %vm372, %v867, 0.0
        %v1045 = vadd.f32 %v1043, %v1044
        %v1046 = vsel %vm372, %v872, 0.0
        %v1047 = vadd.f32 %v1045, %v1046
        %v1048 = vsel %vm372, %v877, 0.0
        %v1049 = vadd.f32 %v1047, %v1048
        %v1050 = vsel %vm372, %v882, 0.0
        %v1051 = vadd.f32 %v1049, %v1050
        %v1052 = vsel %vm372, %v887, 0.0
        %v1053 = vadd.f32 %v1051, %v1052
        %v1054 = vsel %vm372, %v892, 0.0
        %v1055 = vadd.f32 %v1053, %v1054
        %v1056 = vsel %vm372, %v897, 0.0
        %v1057 = vadd.f32 %v1055, %v1056
        %v1058 = vsel %vm372, %v902, 0.0
        %v1059 = vadd.f32 %v1057, %v1058
        %v1060 = vsel %vm372, %v907, 0.0
        %v1061 = vadd.f32 %v1059, %v1060
        %v1062 = vsel %vm372, %v912, 0.0
        %v1063 = vadd.f32 %v1061, %v1062
        %v1064 = vsel %vm372, %v917, 0.0
        %v1065 = vadd.f32 %v1063, %v1064
        %v1066 = vsel %vm372, %v922, 0.0
        %v1067 = vadd.f32 %v1065, %v1066
        %v1068 = vsel %vm372, %v927, 0.0
        %v1069 = vadd.f32 %v1067, %v1068
        %v1070 = vsel %vm372, %v932, 0.0
        %v1071 = vadd.f32 %v1069, %v1070
        %v1072 = vsel %vm372, %v937, 0.0
        %v1073 = vadd.f32 %v1071, %v1072
        %v1074 = vsel %vm372, %v942, 0.0
        %v1075 = vadd.f32 %v1073, %v1074
        %v1076 = vsel %vm372, %v947, 0.0
        %v1077 = vadd.f32 %v1075, %v1076
        %v1078 = vrot.slane %v1077, 4
        %v1079 = vadd.f32 %v1077, %v1078
        %v1080 = vrot.slane %v1079, 2
        %v1081 = vadd.f32 %v1079, %v1080
        %v1082 = vrot.slane %v1081, 1
        %v1083 = vadd.f32 %v1081, %v1082
        %v1084 = vadd.f32 %v950, %v1083
        %vm1085 = vcmask 122880
        %1086 = vst.msk [vmem:[%s223] sm:$0x1] %vm1085, %v1084
        %v1087 = vld [vmem:[%s226] sm:$0x1]
        %v1088 = vmul.f32 %v632, %v632
        %v1089 = vmul.f32 %v637, %v637
        %v1090 = vmul.f32 %v642, %v642
        %v1091 = vmul.f32 %v647, %v647
        %v1092 = vmul.f32 %v652, %v652
        %v1093 = vmul.f32 %v657, %v657
        %v1094 = vmul.f32 %v662, %v662
        %v1095 = vmul.f32 %v667, %v667
        %v1096 = vmul.f32 %v672, %v672
        %v1097 = vmul.f32 %v677, %v677
        %v1098 = vmul.f32 %v682, %v682
        %v1099 = vmul.f32 %v687, %v687
        %v1100 = vmul.f32 %v692, %v692
        %v1101 = vmul.f32 %v697, %v697
        %v1102 = vmul.f32 %v702, %v702
        %v1103 = vmul.f32 %v707, %v707
        %v1104 = vmul.f32 %v712, %v712
        %v1105 = vmul.f32 %v717, %v717
        %v1106 = vmul.f32 %v722, %v722
        %v1107 = vmul.f32 %v727, %v727
        %v1108 = vmul.f32 %v732, %v732
        %v1109 = vmul.f32 %v737, %v737
        %v1110 = vmul.f32 %v742, %v742
        %v1111 = vmul.f32 %v747, %v747
        %v1112 = vmul.f32 %v752, %v752
        %v1113 = vmul.f32 %v757, %v757
        %v1114 = vmul.f32 %v762, %v762
        %v1115 = vmul.f32 %v767, %v767
        %v1116 = vmul.f32 %v772, %v772
        %v1117 = vmul.f32 %v777, %v777
        %v1118 = vmul.f32 %v782, %v782
        %v1119 = vmul.f32 %v787, %v787
        %v1120 = vmul.f32 %v792, %v792
        %v1121 = vmul.f32 %v797, %v797
        %v1122 = vmul.f32 %v802, %v802
        %v1123 = vmul.f32 %v807, %v807
        %v1124 = vmul.f32 %v812, %v812
        %v1125 = vmul.f32 %v817, %v817
        %v1126 = vmul.f32 %v822, %v822
        %v1127 = vmul.f32 %v827, %v827
        %v1128 = vmul.f32 %v832, %v832
        %v1129 = vmul.f32 %v837, %v837
        %v1130 = vmul.f32 %v842, %v842
        %v1131 = vmul.f32 %v847, %v847
        %v1132 = vmul.f32 %v852, %v852
        %v1133 = vmul.f32 %v857, %v857
        %v1134 = vmul.f32 %v862, %v862
        %v1135 = vmul.f32 %v867, %v867
        %v1136 = vmul.f32 %v872, %v872
        %v1137 = vmul.f32 %v877, %v877
        %v1138 = vmul.f32 %v882, %v882
        %v1139 = vmul.f32 %v887, %v887
        %v1140 = vmul.f32 %v892, %v892
        %v1141 = vmul.f32 %v897, %v897
        %v1142 = vmul.f32 %v902, %v902
        %v1143 = vmul.f32 %v907, %v907
        %v1144 = vmul.f32 %v912, %v912
        %v1145 = vmul.f32 %v917, %v917
        %v1146 = vmul.f32 %v922, %v922
        %v1147 = vmul.f32 %v927, %v927
        %v1148 = vmul.f32 %v932, %v932
        %v1149 = vmul.f32 %v937, %v937
        %v1150 = vmul.f32 %v942, %v942
        %v1151 = vmul.f32 %v947, %v947
        %v1152 = vsel %vm372, %v1088, 0.0
        %v1153 = vsel %vm372, %v1089, 0.0
        %v1154 = vadd.f32 %v1152, %v1153
        %v1155 = vsel %vm372, %v1090, 0.0
        %v1156 = vadd.f32 %v1154, %v1155
        %v1157 = vsel %vm372, %v1091, 0.0
        %v1158 = vadd.f32 %v1156, %v1157
        %v1159 = vsel %vm372, %v1092, 0.0
        %v1160 = vadd.f32 %v1158, %v1159
        %v1161 = vsel %vm372, %v1093, 0.0
        %v1162 = vadd.f32 %v1160, %v1161
        %v1163 = vsel %vm372, %v1094, 0.0
        %v1164 = vadd.f32 %v1162, %v1163
        %v1165 = vsel %vm372, %v1095, 0.0
        %v1166 = vadd.f32 %v1164, %v1165
        %v1167 = vsel %vm372, %v1096, 0.0
        %v1168 = vadd.f32 %v1166, %v1167
        %v1169 = vsel %vm372, %v1097, 0.0
        %v1170 = vadd.f32 %v1168, %v1169
        %v1171 = vsel %vm372, %v1098, 0.0
        %v1172 = vadd.f32 %v1170, %v1171
        %v1173 = vsel %vm372, %v1099, 0.0
        %v1174 = vadd.f32 %v1172, %v1173
        %v1175 = vsel %vm372, %v1100, 0.0
        %v1176 = vadd.f32 %v1174, %v1175
        %v1177 = vsel %vm372, %v1101, 0.0
        %v1178 = vadd.f32 %v1176, %v1177
        %v1179 = vsel %vm372, %v1102, 0.0
        %v1180 = vadd.f32 %v1178, %v1179
        %v1181 = vsel %vm372, %v1103, 0.0
        %v1182 = vadd.f32 %v1180, %v1181
        %v1183 = vsel %vm372, %v1104, 0.0
        %v1184 = vadd.f32 %v1182, %v1183
        %v1185 = vsel %vm372, %v1105, 0.0
        %v1186 = vadd.f32 %v1184, %v1185
        %v1187 = vsel %vm372, %v1106, 0.0
        %v1188 = vadd.f32 %v1186, %v1187
        %v1189 = vsel %vm372, %v1107, 0.0
        %v1190 = vadd.f32 %v1188, %v1189
        %v1191 = vsel %vm372, %v1108, 0.0
        %v1192 = vadd.f32 %v1190, %v1191
        %v1193 = vsel %vm372, %v1109, 0.0
        %v1194 = vadd.f32 %v1192, %v1193
        %v1195 = vsel %vm372, %v1110, 0.0
        %v1196 = vadd.f32 %v1194, %v1195
        %v1197 = vsel %vm372, %v1111, 0.0
        %v1198 = vadd.f32 %v1196, %v1197
        %v1199 = vsel %vm372, %v1112, 0.0
        %v1200 = vadd.f32 %v1198, %v1199
        %v1201 = vsel %vm372, %v1113, 0.0
        %v1202 = vadd.f32 %v1200, %v1201
        %v1203 = vsel %vm372, %v1114, 0.0
        %v1204 = vadd.f32 %v1202, %v1203
        %v1205 = vsel %vm372, %v1115, 0.0
        %v1206 = vadd.f32 %v1204, %v1205
        %v1207 = vsel %vm372, %v1116, 0.0
        %v1208 = vadd.f32 %v1206, %v1207
        %v1209 = vsel %vm372, %v1117, 0.0
        %v1210 = vadd.f32 %v1208, %v1209
        %v1211 = vsel %vm372, %v1118, 0.0
        %v1212 = vadd.f32 %v1210, %v1211
        %v1213 = vsel %vm372, %v1119, 0.0
        %v1214 = vadd.f32 %v1212, %v1213
        %v1215 = vsel %vm372, %v1120, 0.0
        %v1216 = vadd.f32 %v1214, %v1215
        %v1217 = vsel %vm372, %v1121, 0.0
        %v1218 = vadd.f32 %v1216, %v1217
        %v1219 = vsel %vm372, %v1122, 0.0
        %v1220 = vadd.f32 %v1218, %v1219
        %v1221 = vsel %vm372, %v1123, 0.0
        %v1222 = vadd.f32 %v1220, %v1221
        %v1223 = vsel %vm372, %v1124, 0.0
        %v1224 = vadd.f32 %v1222, %v1223
        %v1225 = vsel %vm372, %v1125, 0.0
        %v1226 = vadd.f32 %v1224, %v1225
        %v1227 = vsel %vm372, %v1126, 0.0
        %v1228 = vadd.f32 %v1226, %v1227
        %v1229 = vsel %vm372, %v1127, 0.0
        %v1230 = vadd.f32 %v1228, %v1229
        %v1231 = vsel %vm372, %v1128, 0.0
        %v1232 = vadd.f32 %v1230, %v1231
        %v1233 = vsel %vm372, %v1129, 0.0
        %v1234 = vadd.f32 %v1232, %v1233
        %v1235 = vsel %vm372, %v1130, 0.0
        %v1236 = vadd.f32 %v1234, %v1235
        %v1237 = vsel %vm372, %v1131, 0.0
        %v1238 = vadd.f32 %v1236, %v1237
        %v1239 = vsel %vm372, %v1132, 0.0
        %v1240 = vadd.f32 %v1238, %v1239
        %v1241 = vsel %vm372, %v1133, 0.0
        %v1242 = vadd.f32 %v1240, %v1241
        %v1243 = vsel %vm372, %v1134, 0.0
        %v1244 = vadd.f32 %v1242, %v1243
        %v1245 = vsel %vm372, %v1135, 0.0
        %v1246 = vadd.f32 %v1244, %v1245
        %v1247 = vsel %vm372, %v1136, 0.0
        %v1248 = vadd.f32 %v1246, %v1247
        %v1249 = vsel %vm372, %v1137, 0.0
        %v1250 = vadd.f32 %v1248, %v1249
        %v1251 = vsel %vm372, %v1138, 0.0
        %v1252 = vadd.f32 %v1250, %v1251
        %v1253 = vsel %vm372, %v1139, 0.0
        %v1254 = vadd.f32 %v1252, %v1253
        %v1255 = vsel %vm372, %v1140, 0.0
        %v1256 = vadd.f32 %v1254, %v1255
        %v1257 = vsel %vm372, %v1141, 0.0
        %v1258 = vadd.f32 %v1256, %v1257
        %v1259 = vsel %vm372, %v1142, 0.0
        %v1260 = vadd.f32 %v1258, %v1259
        %v1261 = vsel %vm372, %v1143, 0.0
        %v1262 = vadd.f32 %v1260, %v1261
        %v1263 = vsel %vm372, %v1144, 0.0
        %v1264 = vadd.f32 %v1262, %v1263
        %v1265 = vsel %vm372, %v1145, 0.0
        %v1266 = vadd.f32 %v1264, %v1265
        %v1267 = vsel %vm372, %v1146, 0.0
        %v1268 = vadd.f32 %v1266, %v1267
        %v1269 = vsel %vm372, %v1147, 0.0
        %v1270 = vadd.f32 %v1268, %v1269
        %v1271 = vsel %vm372, %v1148, 0.0
        %v1272 = vadd.f32 %v1270, %v1271
        %v1273 = vsel %vm372, %v1149, 0.0
        %v1274 = vadd.f32 %v1272, %v1273
        %v1275 = vsel %vm372, %v1150, 0.0
        %v1276 = vadd.f32 %v1274, %v1275
        %v1277 = vsel %vm372, %v1151, 0.0
        %v1278 = vadd.f32 %v1276, %v1277
        %v1279 = vrot.slane %v1278, 4
        %v1280 = vadd.f32 %v1278, %v1279
        %v1281 = vrot.slane %v1280, 2
        %v1282 = vadd.f32 %v1280, %v1281
        %v1283 = vrot.slane %v1282, 1
        %v1284 = vadd.f32 %v1282, %v1283
        %v1285 = vadd.f32 %v1087, %v1284
        %1286 = vst.msk [vmem:[%s226] sm:$0x1] %vm1085, %v1285
        %p1287 = scmp.lt.s32.totalorder %s19, 1
        %s1288 = scalar_select %p1287, %s19, 1
        %s1289 = scalar_lea.vmem %s2, %s1288
        %p1290 = scmp.lt.s32.totalorder %s19, 1
        %s1291 = scalar_select %p1290, %s19, 1
        %s1292 = scalar_lea.vmem %s3, %s1291
        // Predicated region
        $region56: #{enc_module_forward.3} parent=46 // pred_check
          %p1293 = pneg %p94
        $region57: #{enc_module_forward.3} parent=46 // pred_check_branch
          %1295 = sbr.rel (%p1293) target = $region59
        $region58: #{enc_module_forward.3} parent=46 // pred_region
          _
        $region59: #{enc_module_forward.3} parent=46 // pred_fallthru
          _
        // Predicated region
        $region60: #{enc_module_forward.3} parent=46 // pred_check
          %p1296 = pneg %p120
        $region61: #{enc_module_forward.3} parent=46 // pred_check_branch
          %1298 = sbr.rel (%p1296) target = $region63
        $region62: #{enc_module_forward.3} parent=46 // pred_region
          _
        $region63: #{enc_module_forward.3} parent=46 // pred_fallthru
          _
      $region47: #{enc_module_forward.3} parent=5 // pred_fallthru
        _
      %p1299 = scmp.le.s32.totalorder 2, %s10
      // Predicated region
      $region64: #{enc_module_forward.3} parent=5 // pred_check
        %p1300 = pneg %p1299
      $region65: #{enc_module_forward.3} parent=5 // pred_check_branch
        %1302 = sbr.rel (%p1300) target = $region67
      $region66: #{enc_module_forward.3} parent=5 // pred_region
        %s1303 = ssub.s32 %s10, 2
        // Predicated region
        $region68: #{enc_module_forward.3} parent=66 // pred_check
          %p1304 = pneg %p100
        $region69: #{enc_module_forward.3} parent=66 // pred_check_branch
          %1306 = sbr.rel (%p1304) target = $region71
        $region70: #{enc_module_forward.3} parent=66 // pred_region
          %p1307 = scmp.lt.s32.totalorder %s21, 1
          %s1308 = scalar_select %p1307, %s21, 1
          %s1309 = scalar_lea.vmem %s2, %s1308
        $region71: #{enc_module_forward.3} parent=66 // pred_fallthru
          _
        // Predicated region
        $region72: #{enc_module_forward.3} parent=66 // pred_check
          %p1310 = pneg %p126
        $region73: #{enc_module_forward.3} parent=66 // pred_check_branch
          %1312 = sbr.rel (%p1310) target = $region75
        $region74: #{enc_module_forward.3} parent=66 // pred_region
          %p1313 = scmp.lt.s32.totalorder %s21, 1
          %s1314 = scalar_select %p1313, %s21, 1
          %s1315 = scalar_lea.vmem %s3, %s1314
        $region75: #{enc_module_forward.3} parent=66 // pred_fallthru
          _
      $region67: #{enc_module_forward.3} parent=5 // pred_fallthru
        _
    $region6: #{enc_module_forward.3} parent=1 // loop_footer
      %s14 = sadd.s32 1, %s10
    $region7: #{enc_module_forward.3} parent=1 // loop_footer_branch
      %9 = sbr.rel target = $region3
    $region8: #{enc_module_forward.3} parent=1 // loop_exit
      _

// kernel: enc_module_forward.5
$region0: #{enc_module_forward.5}
  #allocation0 [shape = 'u32[]', space=smem, size = 0x4, offset = 0x4, fixed_abs, tag = 'smem constant byte address 0x4 - core index']
  #allocation1 [shape = 'u32[144,128]{1,0:T(1,128)}', space=vmem, size = 0x12000, scoped, tag = 'internal scratch']
  %s0 = inlined_call_operand.vmem [shape: f32[2,16,1024], index: 0, kind: input, shape index: {}]
  %s1 = inlined_call_operand.vmem [shape: f32[2,16,1], index: 1, kind: input, shape index: {}]
  %s2 = inlined_call_operand.vmem [shape: f32[2,16,1024], index: 2, kind: output, shape index: {}]
  %s3 = sld [smem:[#allocation0]]
  $region83: #{enc_module_forward.5} parent=0
    _
  %s5 = ssub.s32 1, %s3
  %s6 = scalar_select 0, %s5, %s3
  $region1: #{enc_module_forward.5} parent=0
    #allocation2 [shape = 'u8[65536]{0}', space=vmem, size = 0x10000, scoped, tag = 'input window, operand 0']
    #allocation3 [shape = 'u8[65536]{0}', space=vmem, size = 0x10000, scoped, tag = 'output window, operand 0']
    loop: start=0, step=1, limit=6
    $region2: #{enc_module_forward.5} parent=1 // loop_pre_header
      _
    $region3: #{enc_module_forward.5} parent=1 // loop_header
      %s8 = sphi 0, %s12
      %p9 = scmp.ge.s32.totalorder %s8, 6
      %s15 = sphi 0, %s27
      %s16 = sphi 0, %s23
      %s17 = sphi 0, %s15
      %s18 = sphi 0, %s16
      %s19 = sphi 0, %s17
      %s20 = sphi 0, %s18
      %s32 = sphi 0, %s34
      %s35 = sphi 0, %s32
      %s36 = sphi 0, %s35
      %s52 = sphi 0, %s36
      %s58 = sphi 0, %s60
      %s61 = sphi 0, %s58
      %s62 = sphi 0, %s61
      %s78 = sphi 0, %s62
      %s86 = sphi 0, %s88
      %s89 = sphi 0, %s86
      %s90 = sphi 0, %s89
      %s106 = sphi 0, %s90
    $region4: #{enc_module_forward.5} parent=1 // loop_header_branch
      %11 = sbr.rel (%p9) target = $region8
    $region5: #{enc_module_forward.5} parent=1 // loop_body
      %s13 = ssub.s32 %s8, 1
      %s14 = ssub.s32 %s8, 2
      %s21 = sadd.s32 1, %s16
      %p22 = scmp.ge.s32.totalorder %s21, 2
      %s23 = scalar_select %p22, 0, %s21
      %s24 = sadd.s32 1, %s15
      %s25 = scalar_select %p22, %s24, %s15
      %p26 = scmp.ge.s32.totalorder %s25, 2
      %s27 = scalar_select %p26, 0, %s25
      %s28 = ssub.s32 %s15, %s27
      %s29 = ssub.s32 %s16, %s23
      %s30 = sor.u32 %s28, %s29
      %p31 = scmp.eq.s32.totalorder %s30, 0
      %s33 = sadd.s32 %s32, 1
      %s34 = scalar_select %p31, %s32, %s33
      %p37 = pneg %p31
      %p38 = scmp.eq.s32.totalorder %s8, 3
      %p39 = por %p37, %p38
      %p40 = scmp.ne.s32.totalorder %s32, %s35
      %p41 = scmp.eq.s32.totalorder %s8, 0
      %p42 = por %p40, %p41
      %p43 = scmp.ne.s32.totalorder %s32, %s35
      %p44 = scmp.eq.s32.totalorder %s13, 3
      %p45 = por %p43, %p44
      %p46 = scmp.ne.s32.totalorder %s35, %s36
      %p47 = scmp.eq.s32.totalorder %s13, 0
      %p48 = por %p46, %p47
      %p49 = scmp.ne.s32.totalorder %s35, %s36
      %p50 = scmp.eq.s32.totalorder %s14, 3
      %p51 = por %p49, %p50
      %p53 = scmp.ne.s32.totalorder %s36, %s52
      %p54 = scmp.eq.s32.totalorder %s14, 0
      %p55 = por %p53, %p54
      %s56 = ssub.s32 %s15, %s27
      %p57 = scmp.eq.s32.totalorder %s56, 0
      %s59 = sadd.s32 %s58, 1
      %s60 = scalar_select %p57, %s58, %s59
      %p63 = pneg %p57
      %p64 = scmp.eq.s32.totalorder %s8, 3
      %p65 = por %p63, %p64
      %p66 = scmp.ne.s32.totalorder %s58, %s61
      %p67 = scmp.eq.s32.totalorder %s8, 0
      %p68 = por %p66, %p67
      %p69 = scmp.ne.s32.totalorder %s58, %s61
      %p70 = scmp.eq.s32.totalorder %s13, 3
      %p71 = por %p69, %p70
      %p72 = scmp.ne.s32.totalorder %s61, %s62
      %p73 = scmp.eq.s32.totalorder %s13, 0
      %p74 = por %p72, %p73
      %p75 = scmp.ne.s32.totalorder %s61, %s62
      %p76 = scmp.eq.s32.totalorder %s14, 3
      %p77 = por %p75, %p76
      %p79 = scmp.ne.s32.totalorder %s62, %s78
      %p80 = scmp.eq.s32.totalorder %s14, 0
      %p81 = por %p79, %p80
      %s82 = ssub.s32 %s15, %s27
      %s83 = ssub.s32 %s16, %s23
      %s84 = sor.u32 %s82, %s83
      %p85 = scmp.eq.s32.totalorder %s84, 0
      %s87 = sadd.s32 %s86, 1
      %s88 = scalar_select %p85, %s86, %s87
      %p91 = pneg %p85
      %p92 = scmp.eq.s32.totalorder %s8, 3
      %p93 = por %p91, %p92
      %p94 = scmp.ne.s32.totalorder %s86, %s89
      %p95 = scmp.eq.s32.totalorder %s8, 0
      %p96 = por %p94, %p95
      %p97 = scmp.ne.s32.totalorder %s86, %s89
      %p98 = scmp.eq.s32.totalorder %s13, 3
      %p99 = por %p97, %p98
      %p100 = scmp.ne.s32.totalorder %s89, %s90
      %p101 = scmp.eq.s32.totalorder %s13, 0
      %p102 = por %p100, %p101
      %p103 = scmp.ne.s32.totalorder %s89, %s90
      %p104 = scmp.eq.s32.totalorder %s14, 3
      %p105 = por %p103, %p104
      %p107 = scmp.ne.s32.totalorder %s90, %s106
      %p108 = scmp.eq.s32.totalorder %s14, 0
      %p109 = por %p107, %p108
      %p110 = scmp.le.s32.totalorder 1, %s8
      %p111 = scmp.lt.s32.totalorder %s8, 5
      %p112 = pnand %p110, %p111
      %p113 = pneg %p112
      // Predicated region
      $region9: #{enc_module_forward.5} parent=5 // pred_check
        _
      $region10: #{enc_module_forward.5} parent=5 // pred_check_branch
        %115 = sbr.rel (%p112) target = $region12
      $region11: #{enc_module_forward.5} parent=5 // pred_region
        %s116 = ssub.s32 %s8, 1
      $region12: #{enc_module_forward.5} parent=5 // pred_fallthru
        _
      %p117 = scmp.lt.s32.totalorder %s8, 4
      // Predicated region
      $region13: #{enc_module_forward.5} parent=5 // pred_check
        %p118 = pneg %p117
      $region14: #{enc_module_forward.5} parent=5 // pred_check_branch
        %120 = sbr.rel (%p118) target = $region16
      $region15: #{enc_module_forward.5} parent=5 // pred_region
        // Predicated region
        $region17: #{enc_module_forward.5} parent=15 // pred_check
          %p121 = pneg %p42
        $region18: #{enc_module_forward.5} parent=15 // pred_check_branch
          %123 = sbr.rel (%p121) target = $region20
        $region19: #{enc_module_forward.5} parent=15 // pred_region
          %s124 = sand.u32 %s32, 1
          %s125 = sand.u32 %s32, 1
          %s126 = smul.addr %s125, 64
          %s127 = scalar_lea.vmem [#allocation2], %s126
          %s128 = smul.u32 4, %s16
          %s129 = smul.addr %s15, 16
          %s130 = sadd.s32 %s128, %s129
          %s131 = smul.addr %s130, 8
          %s132 = scalar_lea.vmem %s0, %s131
          // Predicated region
          $region21: #{enc_module_forward.5} parent=19 // pred_check
            _
          $region22: #{enc_module_forward.5} parent=19 // pred_check_branch
            %134 = sbr.rel (0) target = $region24
          $region23: #{enc_module_forward.5} parent=19 // pred_region
            // Predicated region
            $region25: #{enc_module_forward.5} parent=23 // pred_check
              _
            $region26: #{enc_module_forward.5} parent=23 // pred_check_branch
              %136 = sbr.rel (0) target = $region28
            $region27: #{enc_module_forward.5} parent=23 // pred_region
              loop: start=0, step=1, limit=1
              $region29: #{enc_module_forward.5} parent=27 // loop_pre_header
                _
              $region30: #{enc_module_forward.5} parent=27 // loop_header
                %s138 = sphi 0, %s142
                %p139 = scmp.ge.s32.totalorder %s138, 1
                %s143 = sphi %s132, %s132
                %s144 = sphi %s127, %s127
              $region31: #{enc_module_forward.5} parent=27 // loop_header_branch
                %141 = sbr.rel (%p139) target = $region35
              $region32: #{enc_module_forward.5} parent=27 // loop_body
                %v145 = vld [vmem:[%s143] sm:$0xff]
                %146 = vst [vmem:[%s144] sm:$0xff] %v145
                %v147 = vld [vmem:[%s143 + $0x8] sm:$0xff]
                %148 = vst [vmem:[%s144 + $0x8] sm:$0xff] %v147
                %v149 = vld [vmem:[%s143 + $0x10] sm:$0xff]
                %150 = vst [vmem:[%s144 + $0x10] sm:$0xff] %v149
                %v151 = vld [vmem:[%s143 + $0x18] sm:$0xff]
                %152 = vst [vmem:[%s144 + $0x18] sm:$0xff] %v151
                %v153 = vld [vmem:[%s143 + $0x40] sm:$0xff]
                %154 = vst [vmem:[%s144 + $0x20] sm:$0xff] %v153
                %v155 = vld [vmem:[%s143 + $0x48] sm:$0xff]
                %156 = vst [vmem:[%s144 + $0x28] sm:$0xff] %v155
                %v157 = vld [vmem:[%s143 + $0x50] sm:$0xff]
                %158 = vst [vmem:[%s144 + $0x30] sm:$0xff] %v157
                %v159 = vld [vmem:[%s143 + $0x58] sm:$0xff]
                %160 = vst [vmem:[%s144 + $0x38] sm:$0xff] %v159
              $region33: #{enc_module_forward.5} parent=27 // loop_footer
                %s142 = sadd.s32 1, %s138
              $region34: #{enc_module_forward.5} parent=27 // loop_footer_branch
                %137 = sbr.rel target = $region30
              $region35: #{enc_module_forward.5} parent=27 // loop_exit
                _
            $region28: #{enc_module_forward.5} parent=23 // pred_fallthru
              _
            // Predicated region
            $region36: #{enc_module_forward.5} parent=23 // pred_check
              _
            $region37: #{enc_module_forward.5} parent=23 // pred_check_branch
              %162 = sbr.rel target = $region39
            $region38: #{enc_module_forward.5} parent=23 // pred_region
              _
            $region39: #{enc_module_forward.5} parent=23 // pred_fallthru
              _
          $region24: #{enc_module_forward.5} parent=19 // pred_fallthru
            _
          %163 = vnop
        $region20: #{enc_module_forward.5} parent=15 // pred_fallthru
          _
        // Predicated region
        $region40: #{enc_module_forward.5} parent=15 // pred_check
          %p164 = pneg %p68
        $region41: #{enc_module_forward.5} parent=15 // pred_check_branch
          %166 = sbr.rel (%p164) target = $region43
        $region42: #{enc_module_forward.5} parent=15 // pred_region
          %p167 = scmp.lt.s32.totalorder %s15, 1
          %s168 = scalar_select %p167, %s15, 1
          %s169 = smul.addr %s168, 2
          %s170 = smul.addr %s169, 8
          %s171 = scalar_lea.vmem %s1, %s170
        $region43: #{enc_module_forward.5} parent=15 // pred_fallthru
          _
      $region16: #{enc_module_forward.5} parent=5 // pred_fallthru
        _
      %p172 = scmp.le.s32.totalorder 1, %s8
      %p173 = scmp.lt.s32.totalorder %s8, 5
      %p174 = pnand %p172, %p173
      %p175 = pneg %p174
      // Predicated region
      $region44: #{enc_module_forward.5} parent=5 // pred_check
        _
      $region45: #{enc_module_forward.5} parent=5 // pred_check_branch
        %177 = sbr.rel (%p174) target = $region47
      $region46: #{enc_module_forward.5} parent=5 // pred_region
        %s178 = ssub.s32 %s8, 1
        %s179 = sand.u32 %s35, 1
        %s180 = sand.u32 %s35, 1
        %s181 = smul.addr %s180, 64
        %s182 = scalar_lea.vmem [#allocation2], %s181
        // Predicated region
        $region48: #{enc_module_forward.5} parent=46 // pred_check
          %p183 = pneg %p48
        $region49: #{enc_module_forward.5} parent=46 // pred_check_branch
          %185 = sbr.rel (%p183) target = $region51
        $region50: #{enc_module_forward.5} parent=46 // pred_region
          _
        $region51: #{enc_module_forward.5} parent=46 // pred_fallthru
          _
        %s186 = sand.u32 %s35, 1
        %s187 = sand.u32 %s35, 1
        %s188 = smul.addr %s187, 64
        %s189 = scalar_lea.vmem [#allocation2], %s188
        %p190 = pneg %p48
        %p191 = pneg %p45
        %p192 = scmp.lt.s32.totalorder %s17, 1
        %s193 = scalar_select %p192, %s17, 1
        %s194 = smul.addr %s193, 2
        %s195 = smul.addr %s194, 8
        %s196 = scalar_lea.vmem %s1, %s195
        %p197 = pneg %p74
        %p198 = pneg %p71
        %p199 = pneg %p102
        %p200 = pneg %p99
        %s201 = sand.u32 %s89, 1
        %s202 = sand.u32 %s89, 1
        %s203 = smul.addr %s202, 64
        %s204 = scalar_lea.vmem [#allocation3], %s203
        %s205 = smul.u32 4, %s18
        %p206 = scmp.lt.s32.totalorder %s17, 1
        %s207 = scalar_select %p206, %s17, 1
        %s208 = smul.addr %s207, 2
        %s209 = smul.addr %s208, 8
        %s210 = scalar_lea.vmem %s1, %s209
        %s211 = smul.u32 4, %s18
        %v212 = vld [vmem:[%s182] sm:$0xff]
        %v213 = vld [vmem:[%s182 + $0x8] sm:$0xff]
        %v214 = vld [vmem:[%s182 + $0x10] sm:$0xff]
        %v215 = vld [vmem:[%s182 + $0x18] sm:$0xff]
        %v216 = vld [vmem:[%s182 + $0x20] sm:$0xff]
        %v217 = vld [vmem:[%s182 + $0x28] sm:$0xff]
        %v218 = vld [vmem:[%s182 + $0x30] sm:$0xff]
        %v219 = vld [vmem:[%s182 + $0x38] sm:$0xff]
        %v220 = vld [vmem:[%s210] sm:$0xff]
        %v221 = vld [vmem:[%s210 + $0x8] sm:$0xff]
        %v222 = vadd.f32 %v220, 1.0
        %v223 = vadd.f32 %v221, 1.0
        %225 = vset.pattern.permute.xlu0 0
        %226 = vperm.xlu0 %225, %v222
        %v227 = vpop.permute.xlu0 %226
        %230 = vset.pattern.permute.xlu0 0
        %231 = vperm.xlu0 %230, %v223
        %v232 = vpop.permute.xlu0 %231
        %v234 = vmul.f32 %v212, %v227
        %v235 = vmul.f32 %v213, %v227
        %v236 = vmul.f32 %v214, %v227
        %v237 = vmul.f32 %v215, %v227
        %v238 = vmul.f32 %v216, %v232
        %v239 = vmul.f32 %v217, %v232
        %v240 = vmul.f32 %v218, %v232
        %v241 = vmul.f32 %v219, %v232
        %v242 = vmax.f32 %v234, 0.0
        %v243 = vmax.f32 %v235, 0.0
        %v244 = vmax.f32 %v236, 0.0
        %v245 = vmax.f32 %v237, 0.0
        %v246 = vmax.f32 %v238, 0.0
        %v247 = vmax.f32 %v239, 0.0
        %v248 = vmax.f32 %v240, 0.0
        %v249 = vmax.f32 %v241, 0.0
        %250 = vst [vmem:[%s204] sm:$0xff] %v242
        %251 = vst [vmem:[%s204 + $0x8] sm:$0xff] %v243
        %252 = vst [vmem:[%s204 + $0x10] sm:$0xff] %v244
        %253 = vst [vmem:[%s204 + $0x18] sm:$0xff] %v245
        %254 = vst [vmem:[%s204 + $0x20] sm:$0xff] %v246
        %255 = vst [vmem:[%s204 + $0x28] sm:$0xff] %v247
        %256 = vst [vmem:[%s204 + $0x30] sm:$0xff] %v248
        %257 = vst [vmem:[%s204 + $0x38] sm:$0xff] %v249
        %s258 = sand.u32 %s89, 1
        %s259 = sand.u32 %s89, 1
        %s260 = smul.addr %s259, 64
        %s261 = scalar_lea.vmem [#allocation3], %s260
        // Predicated region
        $region52: #{enc_module_forward.5} parent=46 // pred_check
          %p262 = pneg %p99
        $region53: #{enc_module_forward.5} parent=46 // pred_check_branch
          %264 = sbr.rel (%p262) target = $region55
        $region54: #{enc_module_forward.5} parent=46 // pred_region
          %s265 = smul.u32 4, %s18
          %s266 = smul.addr %s17, 16
          %s267 = sadd.s32 %s265, %s266
          %s268 = smul.addr %s267, 8
          %s269 = scalar_lea.vmem %s2, %s268
          // Predicated region
          $region56: #{enc_module_forward.5} parent=54 // pred_check
            _
          $region57: #{enc_module_forward.5} parent=54 // pred_check_branch
            %271 = sbr.rel (0) target = $region59
          $region58: #{enc_module_forward.5} parent=54 // pred_region
            // Predicated region
            $region60: #{enc_module_forward.5} parent=58 // pred_check
              _
            $region61: #{enc_module_forward.5} parent=58 // pred_check_branch
              %273 = sbr.rel (0) target = $region63
            $region62: #{enc_module_forward.5} parent=58 // pred_region
              loop: start=0, step=1, limit=1
              $region64: #{enc_module_forward.5} parent=62 // loop_pre_header
                _
              $region65: #{enc_module_forward.5} parent=62 // loop_header
                %s275 = sphi 0, %s279
                %p276 = scmp.ge.s32.totalorder %s275, 1
                %s280 = sphi %s261, %s261
                %s281 = sphi %s269, %s269
              $region66: #{enc_module_forward.5} parent=62 // loop_header_branch
                %278 = sbr.rel (%p276) target = $region70
              $region67: #{enc_module_forward.5} parent=62 // loop_body
                %v282 = vld [vmem:[%s280] sm:$0xff]
                %283 = vst [vmem:[%s281] sm:$0xff] %v282
                %v284 = vld [vmem:[%s280 + $0x8] sm:$0xff]
                %285 = vst [vmem:[%s281 + $0x8] sm:$0xff] %v284
                %v286 = vld [vmem:[%s280 + $0x10] sm:$0xff]
                %287 = vst [vmem:[%s281 + $0x10] sm:$0xff] %v286
                %v288 = vld [vmem:[%s280 + $0x18] sm:$0xff]
                %289 = vst [vmem:[%s281 + $0x18] sm:$0xff] %v288
                %v290 = vld [vmem:[%s280 + $0x20] sm:$0xff]
                %291 = vst [vmem:[%s281 + $0x40] sm:$0xff] %v290
                %v292 = vld [vmem:[%s280 + $0x28] sm:$0xff]
                %293 = vst [vmem:[%s281 + $0x48] sm:$0xff] %v292
                %v294 = vld [vmem:[%s280 + $0x30] sm:$0xff]
                %295 = vst [vmem:[%s281 + $0x50] sm:$0xff] %v294
                %v296 = vld [vmem:[%s280 + $0x38] sm:$0xff]
                %297 = vst [vmem:[%s281 + $0x58] sm:$0xff] %v296
              $region68: #{enc_module_forward.5} parent=62 // loop_footer
                %s279 = sadd.s32 1, %s275
              $region69: #{enc_module_forward.5} parent=62 // loop_footer_branch
                %274 = sbr.rel target = $region65
              $region70: #{enc_module_forward.5} parent=62 // loop_exit
                _
            $region63: #{enc_module_forward.5} parent=58 // pred_fallthru
              _
            // Predicated region
            $region71: #{enc_module_forward.5} parent=58 // pred_check
              _
            $region72: #{enc_module_forward.5} parent=58 // pred_check_branch
              %299 = sbr.rel target = $region74
            $region73: #{enc_module_forward.5} parent=58 // pred_region
              _
            $region74: #{enc_module_forward.5} parent=58 // pred_fallthru
              _
          $region59: #{enc_module_forward.5} parent=54 // pred_fallthru
            _
          %300 = vnop
        $region55: #{enc_module_forward.5} parent=46 // pred_fallthru
          _
      $region47: #{enc_module_forward.5} parent=5 // pred_fallthru
        _
      %p301 = scmp.le.s32.totalorder 2, %s8
      // Predicated region
      $region75: #{enc_module_forward.5} parent=5 // pred_check
        %p302 = pneg %p301
      $region76: #{enc_module_forward.5} parent=5 // pred_check_branch
        %304 = sbr.rel (%p302) target = $region78
      $region77: #{enc_module_forward.5} parent=5 // pred_region
        %s305 = ssub.s32 %s8, 2
        // Predicated region
        $region79: #{enc_module_forward.5} parent=77 // pred_check
          %p306 = pneg %p105
        $region80: #{enc_module_forward.5} parent=77 // pred_check_branch
          %308 = sbr.rel (%p306) target = $region82
        $region81: #{enc_module_forward.5} parent=77 // pred_region
          %s309 = sand.u32 %s90, 1
          %s310 = sand.u32 %s90, 1
          %s311 = smul.addr %s310, 64
          %s312 = scalar_lea.vmem [#allocation3], %s311
        $region82: #{enc_module_forward.5} parent=77 // pred_fallthru
          _
      $region78: #{enc_module_forward.5} parent=5 // pred_fallthru
        _
    $region6: #{enc_module_forward.5} parent=1 // loop_footer
      %s12 = sadd.s32 1, %s8
    $region7: #{enc_module_forward.5} parent=1 // loop_footer_branch
      %7 = sbr.rel target = $region3
    $region8: #{enc_module_forward.5} parent=1 // loop_exit
      _

// kernel: enc_module_forward.4
$region0: #{enc_module_forward.4}
  #allocation0 [shape = 'u32[]', space=smem, size = 0x4, offset = 0x4, fixed_abs, tag = 'smem constant byte address 0x4 - core index']
  #allocation1 [shape = 'u32[144,128]{1,0:T(1,128)}', space=vmem, size = 0x12000, scoped, tag = 'internal scratch']
  %s0 = inlined_call_operand.vmem [shape: f32[2,16,1024], index: 0, kind: input, shape index: {}]
  %s1 = inlined_call_operand.vmem [shape: f32[16,16], index: 1, kind: input, shape index: {}]
  %s2 = inlined_call_operand.vmem [shape: f32[1,16], index: 2, kind: input, shape index: {}]
  %s3 = inlined_call_operand.vmem [shape: f32[1,16], index: 3, kind: input, shape index: {}]
  %s4 = inlined_call_operand.vmem [shape: f32[32,16], index: 4, kind: input, shape index: {}]
  %s5 = inlined_call_operand.vmem [shape: f32[1,32], index: 5, kind: input, shape index: {}]
  %s6 = inlined_call_operand.vmem [shape: f32[1,32], index: 6, kind: input, shape index: {}]
  %s7 = inlined_call_operand.vmem [shape: f32[2,32,16], index: 7, kind: output, shape index: {0}]
  %s8 = inlined_call_operand.vmem [shape: f32[2,1,32], index: 8, kind: output, shape index: {1}]
  %9 = xla_tuple %s7, %s8
  %s10 = sld [smem:[#allocation0]]
  $region96: #{enc_module_forward.4} parent=0
    _
  %s12 = ssub.s32 1, %s10
  %s13 = scalar_select 0, %s12, %s10
  $region1: #{enc_module_forward.4} parent=0
    #allocation2 [shape = 'u8[65536]{0}', space=vmem, size = 0x10000, scoped, tag = 'input window, operand 0']
    loop: start=0, step=1, limit=6
    $region2: #{enc_module_forward.4} parent=1 // loop_pre_header
      _
    $region3: #{enc_module_forward.4} parent=1 // loop_header
      %s15 = sphi 0, %s19
      %p16 = scmp.ge.s32.totalorder %s15, 6
      %s22 = sphi 0, %s34
      %s23 = sphi 0, %s30
      %s24 = sphi 0, %s22
      %s25 = sphi 0, %s23
      %s26 = sphi 0, %s24
      %s27 = sphi 0, %s25
      %s39 = sphi 0, %s41
      %s42 = sphi 0, %s39
      %s43 = sphi 0, %s42
      %s59 = sphi 0, %s43
      %s63 = sphi 0, %s63
      %s65 = sphi 0, %s63
      %s66 = sphi 0, %s65
      %s80 = sphi 0, %s66
      %s84 = sphi 0, %s84
      %s86 = sphi 0, %s84
      %s87 = sphi 0, %s86
      %s101 = sphi 0, %s87
      %s105 = sphi 0, %s105
      %s107 = sphi 0, %s105
      %s108 = sphi 0, %s107
      %s122 = sphi 0, %s108
      %s126 = sphi 0, %s126
      %s128 = sphi 0, %s126
      %s129 = sphi 0, %s128
      %s143 = sphi 0, %s129
      %s147 = sphi 0, %s147
      %s149 = sphi 0, %s147
      %s150 = sphi 0, %s149
      %s164 = sphi 0, %s150
      %s168 = sphi 0, %s168
      %s170 = sphi 0, %s168
      %s171 = sphi 0, %s170
      %s185 = sphi 0, %s171
      %s191 = sphi 0, %s193
      %s194 = sphi 0, %s191
      %s195 = sphi 0, %s194
      %s211 = sphi 0, %s195
      %s217 = sphi 0, %s219
      %s220 = sphi 0, %s217
      %s221 = sphi 0, %s220
      %s237 = sphi 0, %s221
    $region4: #{enc_module_forward.4} parent=1 // loop_header_branch
      %18 = sbr.rel (%p16) target = $region8
    $region5: #{enc_module_forward.4} parent=1 // loop_body
      %s20 = ssub.s32 %s15, 1
      %s21 = ssub.s32 %s15, 2
      %s28 = sadd.s32 1, %s23
      %p29 = scmp.ge.s32.totalorder %s28, 2
      %s30 = scalar_select %p29, 0, %s28
      %s31 = sadd.s32 1, %s22
      %s32 = scalar_select %p29, %s31, %s22
      %p33 = scmp.ge.s32.totalorder %s32, 2
      %s34 = scalar_select %p33, 0, %s32
      %s35 = ssub.s32 %s22, %s34
      %s36 = ssub.s32 %s23, %s30
      %s37 = sor.u32 %s35, %s36
      %p38 = scmp.eq.s32.totalorder %s37, 0
      %s40 = sadd.s32 %s39, 1
      %s41 = scalar_select %p38, %s39, %s40
      %p44 = pneg %p38
      %p45 = scmp.eq.s32.totalorder %s15, 3
      %p46 = por %p44, %p45
      %p47 = scmp.ne.s32.totalorder %s39, %s42
      %p48 = scmp.eq.s32.totalorder %s15, 0
      %p49 = por %p47, %p48
      %p50 = scmp.ne.s32.totalorder %s39, %s42
      %p51 = scmp.eq.s32.totalorder %s20, 3
      %p52 = por %p50, %p51
      %p53 = scmp.ne.s32.totalorder %s42, %s43
      %p54 = scmp.eq.s32.totalorder %s20, 0
      %p55 = por %p53, %p54
      %p56 = scmp.ne.s32.totalorder %s42, %s43
      %p57 = scmp.eq.s32.totalorder %s21, 3
      %p58 = por %p56, %p57
      %p60 = scmp.ne.s32.totalorder %s43, %s59
      %p61 = scmp.eq.s32.totalorder %s21, 0
      %p62 = por %p60, %p61
      %s64 = sadd.s32 %s63, 1
      %p67 = scmp.eq.s32.totalorder %s15, 3
      %p68 = scmp.ne.s32.totalorder %s63, %s65
      %p69 = scmp.eq.s32.totalorder %s15, 0
      %p70 = por %p68, %p69
      %p71 = scmp.ne.s32.totalorder %s63, %s65
      %p72 = scmp.eq.s32.totalorder %s20, 3
      %p73 = por %p71, %p72
      %p74 = scmp.ne.s32.totalorder %s65, %s66
      %p75 = scmp.eq.s32.totalorder %s20, 0
      %p76 = por %p74, %p75
      %p77 = scmp.ne.s32.totalorder %s65, %s66
      %p78 = scmp.eq.s32.totalorder %s21, 3
      %p79 = por %p77, %p78
      %p81 = scmp.ne.s32.totalorder %s66, %s80
      %p82 = scmp.eq.s32.totalorder %s21, 0
      %p83 = por %p81, %p82
      %s85 = sadd.s32 %s84, 1
      %p88 = scmp.eq.s32.totalorder %s15, 3
      %p89 = scmp.ne.s32.totalorder %s84, %s86
      %p90 = scmp.eq.s32.totalorder %s15, 0
      %p91 = por %p89, %p90
      %p92 = scmp.ne.s32.totalorder %s84, %s86
      %p93 = scmp.eq.s32.totalorder %s20, 3
      %p94 = por %p92, %p93
      %p95 = scmp.ne.s32.totalorder %s86, %s87
      %p96 = scmp.eq.s32.totalorder %s20, 0
      %p97 = por %p95, %p96
      %p98 = scmp.ne.s32.totalorder %s86, %s87
      %p99 = scmp.eq.s32.totalorder %s21, 3
      %p100 = por %p98, %p99
      %p102 = scmp.ne.s32.totalorder %s87, %s101
      %p103 = scmp.eq.s32.totalorder %s21, 0
      %p104 = por %p102, %p103
      %s106 = sadd.s32 %s105, 1
      %p109 = scmp.eq.s32.totalorder %s15, 3
      %p110 = scmp.ne.s32.totalorder %s105, %s107
      %p111 = scmp.eq.s32.totalorder %s15, 0
      %p112 = por %p110, %p111
      %p113 = scmp.ne.s32.totalorder %s105, %s107
      %p114 = scmp.eq.s32.totalorder %s20, 3
      %p115 = por %p113, %p114
      %p116 = scmp.ne.s32.totalorder %s107, %s108
      %p117 = scmp.eq.s32.totalorder %s20, 0
      %p118 = por %p116, %p117
      %p119 = scmp.ne.s32.totalorder %s107, %s108
      %p120 = scmp.eq.s32.totalorder %s21, 3
      %p121 = por %p119, %p120
      %p123 = scmp.ne.s32.totalorder %s108, %s122
      %p124 = scmp.eq.s32.totalorder %s21, 0
      %p125 = por %p123, %p124
      %s127 = sadd.s32 %s126, 1
      %p130 = scmp.eq.s32.totalorder %s15, 3
      %p131 = scmp.ne.s32.totalorder %s126, %s128
      %p132 = scmp.eq.s32.totalorder %s15, 0
      %p133 = por %p131, %p132
      %p134 = scmp.ne.s32.totalorder %s126, %s128
      %p135 = scmp.eq.s32.totalorder %s20, 3
      %p136 = por %p134, %p135
      %p137 = scmp.ne.s32.totalorder %s128, %s129
      %p138 = scmp.eq.s32.totalorder %s20, 0
      %p139 = por %p137, %p138
      %p140 = scmp.ne.s32.totalorder %s128, %s129
      %p141 = scmp.eq.s32.totalorder %s21, 3
      %p142 = por %p140, %p141
      %p144 = scmp.ne.s32.totalorder %s129, %s143
      %p145 = scmp.eq.s32.totalorder %s21, 0
      %p146 = por %p144, %p145
      %s148 = sadd.s32 %s147, 1
      %p151 = scmp.eq.s32.totalorder %s15, 3
      %p152 = scmp.ne.s32.totalorder %s147, %s149
      %p153 = scmp.eq.s32.totalorder %s15, 0
      %p154 = por %p152, %p153
      %p155 = scmp.ne.s32.totalorder %s147, %s149
      %p156 = scmp.eq.s32.totalorder %s20, 3
      %p157 = por %p155, %p156
      %p158 = scmp.ne.s32.totalorder %s149, %s150
      %p159 = scmp.eq.s32.totalorder %s20, 0
      %p160 = por %p158, %p159
      %p161 = scmp.ne.s32.totalorder %s149, %s150
      %p162 = scmp.eq.s32.totalorder %s21, 3
      %p163 = por %p161, %p162
      %p165 = scmp.ne.s32.totalorder %s150, %s164
      %p166 = scmp.eq.s32.totalorder %s21, 0
      %p167 = por %p165, %p166
      %s169 = sadd.s32 %s168, 1
      %p172 = scmp.eq.s32.totalorder %s15, 3
      %p173 = scmp.ne.s32.totalorder %s168, %s170
      %p174 = scmp.eq.s32.totalorder %s15, 0
      %p175 = por %p173, %p174
      %p176 = scmp.ne.s32.totalorder %s168, %s170
      %p177 = scmp.eq.s32.totalorder %s20, 3
      %p178 = por %p176, %p177
      %p179 = scmp.ne.s32.totalorder %s170, %s171
      %p180 = scmp.eq.s32.totalorder %s20, 0
      %p181 = por %p179, %p180
      %p182 = scmp.ne.s32.totalorder %s170, %s171
      %p183 = scmp.eq.s32.totalorder %s21, 3
      %p184 = por %p182, %p183
      %p186 = scmp.ne.s32.totalorder %s171, %s185
      %p187 = scmp.eq.s32.totalorder %s21, 0
      %p188 = por %p186, %p187
      %s189 = ssub.s32 %s22, %s34
      %p190 = scmp.eq.s32.totalorder %s189, 0
      %s192 = sadd.s32 %s191, 1
      %s193 = scalar_select %p190, %s191, %s192
      %p196 = pneg %p190
      %p197 = scmp.eq.s32.totalorder %s15, 3
      %p198 = por %p196, %p197
      %p199 = scmp.ne.s32.totalorder %s191, %s194
      %p200 = scmp.eq.s32.totalorder %s15, 0
      %p201 = por %p199, %p200
      %p202 = scmp.ne.s32.totalorder %s191, %s194
      %p203 = scmp.eq.s32.totalorder %s20, 3
      %p204 = por %p202, %p203
      %p205 = scmp.ne.s32.totalorder %s194, %s195
      %p206 = scmp.eq.s32.totalorder %s20, 0
      %p207 = por %p205, %p206
      %p208 = scmp.ne.s32.totalorder %s194, %s195
      %p209 = scmp.eq.s32.totalorder %s21, 3
      %p210 = por %p208, %p209
      %p212 = scmp.ne.s32.totalorder %s195, %s211
      %p213 = scmp.eq.s32.totalorder %s21, 0
      %p214 = por %p212, %p213
      %s215 = ssub.s32 %s22, %s34
      %p216 = scmp.eq.s32.totalorder %s215, 0
      %s218 = sadd.s32 %s217, 1
      %s219 = scalar_select %p216, %s217, %s218
      %p222 = pneg %p216
      %p223 = scmp.eq.s32.totalorder %s15, 3
      %p224 = por %p222, %p223
      %p225 = scmp.ne.s32.totalorder %s217, %s220
      %p226 = scmp.eq.s32.totalorder %s15, 0
      %p227 = por %p225, %p226
      %p228 = scmp.ne.s32.totalorder %s217, %s220
      %p229 = scmp.eq.s32.totalorder %s20, 3
      %p230 = por %p228, %p229
      %p231 = scmp.ne.s32.totalorder %s220, %s221
      %p232 = scmp.eq.s32.totalorder %s20, 0
      %p233 = por %p231, %p232
      %p234 = scmp.ne.s32.totalorder %s220, %s221
      %p235 = scmp.eq.s32.totalorder %s21, 3
      %p236 = por %p234, %p235
      %p238 = scmp.ne.s32.totalorder %s221, %s237
      %p239 = scmp.eq.s32.totalorder %s21, 0
      %p240 = por %p238, %p239
      %p241 = scmp.le.s32.totalorder 1, %s15
      %p242 = scmp.lt.s32.totalorder %s15, 5
      %p243 = pnand %p241, %p242
      %p244 = pneg %p243
      // Predicated region
      $region9: #{enc_module_forward.4} parent=5 // pred_check
        _
      $region10: #{enc_module_forward.4} parent=5 // pred_check_branch
        %246 = sbr.rel (%p243) target = $region12
      $region11: #{enc_module_forward.4} parent=5 // pred_region
        %s247 = ssub.s32 %s15, 1
        // Predicated region
        $region13: #{enc_module_forward.4} parent=11 // pred_check
          %p248 = pneg %p76
        $region14: #{enc_module_forward.4} parent=11 // pred_check_branch
          %250 = sbr.rel (%p248) target = $region16
        $region15: #{enc_module_forward.4} parent=11 // pred_region
          _
        $region16: #{enc_module_forward.4} parent=11 // pred_fallthru
          _
        // Predicated region
        $region17: #{enc_module_forward.4} parent=11 // pred_check
          %p251 = pneg %p97
        $region18: #{enc_module_forward.4} parent=11 // pred_check_branch
          %253 = sbr.rel (%p251) target = $region20
        $region19: #{enc_module_forward.4} parent=11 // pred_region
          _
        $region20: #{enc_module_forward.4} parent=11 // pred_fallthru
          _
        // Predicated region
        $region21: #{enc_module_forward.4} parent=11 // pred_check
          %p254 = pneg %p118
        $region22: #{enc_module_forward.4} parent=11 // pred_check_branch
          %256 = sbr.rel (%p254) target = $region24
        $region23: #{enc_module_forward.4} parent=11 // pred_region
          _
        $region24: #{enc_module_forward.4} parent=11 // pred_fallthru
          _
        // Predicated region
        $region25: #{enc_module_forward.4} parent=11 // pred_check
          %p257 = pneg %p139
        $region26: #{enc_module_forward.4} parent=11 // pred_check_branch
          %259 = sbr.rel (%p257) target = $region28
        $region27: #{enc_module_forward.4} parent=11 // pred_region
          _
        $region28: #{enc_module_forward.4} parent=11 // pred_fallthru
          _
        // Predicated region
        $region29: #{enc_module_forward.4} parent=11 // pred_check
          %p260 = pneg %p160
        $region30: #{enc_module_forward.4} parent=11 // pred_check_branch
          %262 = sbr.rel (%p260) target = $region32
        $region31: #{enc_module_forward.4} parent=11 // pred_region
          _
        $region32: #{enc_module_forward.4} parent=11 // pred_fallthru
          _
        // Predicated region
        $region33: #{enc_module_forward.4} parent=11 // pred_check
          %p263 = pneg %p181
        $region34: #{enc_module_forward.4} parent=11 // pred_check_branch
          %265 = sbr.rel (%p263) target = $region36
        $region35: #{enc_module_forward.4} parent=11 // pred_region
          _
        $region36: #{enc_module_forward.4} parent=11 // pred_fallthru
          _
      $region12: #{enc_module_forward.4} parent=5 // pred_fallthru
        _
      %p266 = scmp.lt.s32.totalorder %s15, 4
      // Predicated region
      $region37: #{enc_module_forward.4} parent=5 // pred_check
        %p267 = pneg %p266
      $region38: #{enc_module_forward.4} parent=5 // pred_check_branch
        %269 = sbr.rel (%p267) target = $region40
      $region39: #{enc_module_forward.4} parent=5 // pred_region
        // Predicated region
        $region41: #{enc_module_forward.4} parent=39 // pred_check
          %p270 = pneg %p49
        $region42: #{enc_module_forward.4} parent=39 // pred_check_branch
          %272 = sbr.rel (%p270) target = $region44
        $region43: #{enc_module_forward.4} parent=39 // pred_region
          %s273 = sand.u32 %s39, 1
          %s274 = sand.u32 %s39, 1
          %s275 = smul.addr %s274, 64
          %s276 = scalar_lea.vmem [#allocation2], %s275
          %s277 = smul.u32 4, %s23
          %s278 = smul.addr %s22, 16
          %s279 = sadd.s32 %s277, %s278
          %s280 = smul.addr %s279, 8
          %s281 = scalar_lea.vmem %s0, %s280
          // Predicated region
          $region45: #{enc_module_forward.4} parent=43 // pred_check
            _
          $region46: #{enc_module_forward.4} parent=43 // pred_check_branch
            %283 = sbr.rel (0) target = $region48
          $region47: #{enc_module_forward.4} parent=43 // pred_region
            // Predicated region
            $region49: #{enc_module_forward.4} parent=47 // pred_check
              _
            $region50: #{enc_module_forward.4} parent=47 // pred_check_branch
              %285 = sbr.rel (0) target = $region52
            $region51: #{enc_module_forward.4} parent=47 // pred_region
              loop: start=0, step=1, limit=1
              $region53: #{enc_module_forward.4} parent=51 // loop_pre_header
                _
              $region54: #{enc_module_forward.4} parent=51 // loop_header
                %s287 = sphi 0, %s291
                %p288 = scmp.ge.s32.totalorder %s287, 1
                %s292 = sphi %s281, %s281
                %s293 = sphi %s276, %s276
              $region55: #{enc_module_forward.4} parent=51 // loop_header_branch
                %290 = sbr.rel (%p288) target = $region59
              $region56: #{enc_module_forward.4} parent=51 // loop_body
                %v294 = vld [vmem:[%s292] sm:$0xff]
                %295 = vst [vmem:[%s293] sm:$0xff] %v294
                %v296 = vld [vmem:[%s292 + $0x8] sm:$0xff]
                %297 = vst [vmem:[%s293 + $0x8] sm:$0xff] %v296
                %v298 = vld [vmem:[%s292 + $0x10] sm:$0xff]
                %299 = vst [vmem:[%s293 + $0x10] sm:$0xff] %v298
                %v300 = vld [vmem:[%s292 + $0x18] sm:$0xff]
                %301 = vst [vmem:[%s293 + $0x18] sm:$0xff] %v300
                %v302 = vld [vmem:[%s292 + $0x40] sm:$0xff]
                %303 = vst [vmem:[%s293 + $0x20] sm:$0xff] %v302
                %v304 = vld [vmem:[%s292 + $0x48] sm:$0xff]
                %305 = vst [vmem:[%s293 + $0x28] sm:$0xff] %v304
                %v306 = vld [vmem:[%s292 + $0x50] sm:$0xff]
                %307 = vst [vmem:[%s293 + $0x30] sm:$0xff] %v306
                %v308 = vld [vmem:[%s292 + $0x58] sm:$0xff]
                %309 = vst [vmem:[%s293 + $0x38] sm:$0xff] %v308
              $region57: #{enc_module_forward.4} parent=51 // loop_footer
                %s291 = sadd.s32 1, %s287
              $region58: #{enc_module_forward.4} parent=51 // loop_footer_branch
                %286 = sbr.rel target = $region54
              $region59: #{enc_module_forward.4} parent=51 // loop_exit
                _
            $region52: #{enc_module_forward.4} parent=47 // pred_fallthru
              _
            // Predicated region
            $region60: #{enc_module_forward.4} parent=47 // pred_check
              _
            $region61: #{enc_module_forward.4} parent=47 // pred_check_branch
              %311 = sbr.rel target = $region63
            $region62: #{enc_module_forward.4} parent=47 // pred_region
              _
            $region63: #{enc_module_forward.4} parent=47 // pred_fallthru
              _
          $region48: #{enc_module_forward.4} parent=43 // pred_fallthru
            _
          %312 = vnop
        $region44: #{enc_module_forward.4} parent=39 // pred_fallthru
          _
      $region40: #{enc_module_forward.4} parent=5 // pred_fallthru
        _
      %p313 = scmp.le.s32.totalorder 1, %s15
      %p314 = scmp.lt.s32.totalorder %s15, 5
      %p315 = pnand %p313, %p314
      %p316 = pneg %p315
      // Predicated region
      $region64: #{enc_module_forward.4} parent=5 // pred_check
        _
      $region65: #{enc_module_forward.4} parent=5 // pred_check_branch
        %318 = sbr.rel (%p315) target = $region67
      $region66: #{enc_module_forward.4} parent=5 // pred_region
        %s319 = ssub.s32 %s15, 1
        %s320 = sand.u32 %s42, 1
        %s321 = sand.u32 %s42, 1
        %s322 = smul.addr %s321, 64
        %s323 = scalar_lea.vmem [#allocation2], %s322
        // Predicated region
        $region68: #{enc_module_forward.4} parent=66 // pred_check
          %p324 = pneg %p55
        $region69: #{enc_module_forward.4} parent=66 // pred_check_branch
          %326 = sbr.rel (%p324) target = $region71
        $region70: #{enc_module_forward.4} parent=66 // pred_region
          _
        $region71: #{enc_module_forward.4} parent=66 // pred_fallthru
          _
        %s327 = sand.u32 %s42, 1
        %s328 = sand.u32 %s42, 1
        %s329 = smul.addr %s328, 64
        %s330 = scalar_lea.vmem [#allocation2], %s329
        %p331 = pneg %p55
        %p332 = pneg %p52
        %p333 = pneg %p76
        %p334 = pneg %p73
        %p335 = pneg %p97
        %p336 = pneg %p94
        %p337 = pneg %p118
        %p338 = pneg %p115
        %p339 = pneg %p139
        %p340 = pneg %p136
        %p341 = pneg %p160
        %p342 = pneg %p157
        %p343 = pneg %p181
        %p344 = pneg %p178
        %p345 = pneg %p207
        %p346 = pneg %p204
        %p347 = scmp.lt.s32.totalorder %s24, 1
        %s348 = scalar_select %p347, %s24, 1
        %s349 = smul.addr %s348, 4
        %s350 = smul.addr %s349, 8
        %s351 = scalar_lea.vmem %s7, %s350
        %p352 = pneg %p233
        %p353 = pneg %p230
        %p354 = scmp.lt.s32.totalorder %s24, 1
        %s355 = scalar_select %p354, %s24, 1
        %s356 = scalar_lea.vmem %s8, %s355
        %s357 = smul.u32 4, %s25
        %p358 = scmp.lt.s32.totalorder %s24, 1
        %s359 = scalar_select %p358, %s24, 1
        %s360 = smul.addr %s359, 4
        %s361 = smul.addr %s360, 8
        %s362 = scalar_lea.vmem %s7, %s361
        %p363 = scmp.lt.s32.totalorder %s24, 1
        %s364 = scalar_select %p363, %s24, 1
        %s365 = scalar_lea.vmem %s8, %s364
        %p366 = scmp.eq.s32.totalorder %s25, 0
        // Predicated region
        $region72: #{enc_module_forward.4} parent=66 // pred_check
          %p367 = pneg %p366
        $region73: #{enc_module_forward.4} parent=66 // pred_check_branch
          %369 = sbr.rel (%p367) target = $region75
        $region74: #{enc_module_forward.4} parent=66 // pred_region
          %vm370 = vcmask 130048
          %371 = vst.msk [vmem:[%s362] sm:$0xff] %vm370, 0.0
          %372 = vst.msk [vmem:[%s362 + $0x8] sm:$0xff] %vm370, 0.0
          %373 = vst.msk [vmem:[%s362 + $0x10] sm:$0xff] %vm370, 0.0
          %374 = vst.msk [vmem:[%s362 + $0x18] sm:$0xff] %vm370, 0.0
          %vm375 = vcmask 253952
          %376 = vst.msk [vmem:[%s365] sm:$0x1] %vm375, 0.0
        $region75: #{enc_module_forward.4} parent=66 // pred_fallthru
          _
        %v377 = vld [vmem:[%s323] sm:$0xff]
        %v378 = vld [vmem:[%s323 + $0x8] sm:$0xff]
        %v379 = vld [vmem:[%s323 + $0x10] sm:$0xff]
        %v380 = vld [vmem:[%s323 + $0x18] sm:$0xff]
        %v381 = vld [vmem:[%s323 + $0x20] sm:$0xff]
        %v382 = vld [vmem:[%s323 + $0x28] sm:$0xff]
        %v383 = vld [vmem:[%s323 + $0x30] sm:$0xff]
        %v384 = vld [vmem:[%s323 + $0x38] sm:$0xff]
        %v385 = vld [vmem:[%s1] sm:$0xff]
        %v386 = vld [vmem:[%s1 + $0x8] sm:$0xff]
        %387 = vxpose.xlu0.b32.start [1/16] %v377, 128
        %388 = vxpose.xlu0.b32.cont [2/16] %v381, 128
        %389 = vxpose.xlu0.b32.cont [3/16] 0.0, 128
        %390 = vxpose.xlu0.b32.cont [4/16] 0.0, 128
        %391 = vxpose.xlu0.b32.cont [5/16] 0.0, 128
        %392 = vxpose.xlu0.b32.cont [6/16] 0.0, 128
        %393 = vxpose.xlu0.b32.cont [7/16] 0.0, 128
        %394 = vxpose.xlu0.b32.cont [8/16] 0.0, 128
        %395 = vxpose.xlu0.b32.cont [9/16] 0.0, 128
        %396 = vxpose.xlu0.b32.cont [10/16] 0.0, 128
        %397 = vxpose.xlu0.b32.cont [11/16] 0.0, 128
        %398 = vxpose.xlu0.b32.cont [12/16] 0.0, 128
        %399 = vxpose.xlu0.b32.cont [13/16] 0.0, 128
        %400 = vxpose.xlu0.b32.cont [14/16] 0.0, 128
        %401 = vxpose.xlu0.b32.cont [15/16] 0.0, 128
        %402 = vxpose.xlu0.b32.end [16/16] 0.0, 128
        %v403 = vpop.trf.xlu0
        %v404 = vpop.trf.xlu0
        %v405 = vpop.trf.xlu0
        %v406 = vpop.trf.xlu0
        %v407 = vpop.trf.xlu0
        %v408 = vpop.trf.xlu0
        %v409 = vpop.trf.xlu0
        %v410 = vpop.trf.xlu0
        %v411 = vpop.trf.xlu0
        %v412 = vpop.trf.xlu0
        %v413 = vpop.trf.xlu0
        %v414 = vpop.trf.xlu0
        %v415 = vpop.trf.xlu0
        %v416 = vpop.trf.xlu0
        %v417 = vpop.trf.xlu0
        %v418 = vpop.trf.xlu0
        %419 = vxpose.xlu0.b32.start [1/16] %v378, 128
        %420 = vxpose.xlu0.b32.cont [2/16] %v382, 128
        %421 = vxpose.xlu0.b32.cont [3/16] 0.0, 128
        %422 = vxpose.xlu0.b32.cont [4/16] 0.0, 128
        %423 = vxpose.xlu0.b32.cont [5/16] 0.0, 128
        %424 = vxpose.xlu0.b32.cont [6/16] 0.0, 128
        %425 = vxpose.xlu0.b32.cont [7/16] 0.0, 128
        %426 = vxpose.xlu0.b32.cont [8/16] 0.0, 128
        %427 = vxpose.xlu0.b32.cont [9/16] 0.0, 128
        %428 = vxpose.xlu0.b32.cont [10/16] 0.0, 128
        %429 = vxpose.xlu0.b32.cont [11/16] 0.0, 128
        %430 = vxpose.xlu0.b32.cont [12/16] 0.0, 128
        %431 = vxpose.xlu0.b32.cont [13/16] 0.0, 128
        %432 = vxpose.xlu0.b32.cont [14/16] 0.0, 128
        %433 = vxpose.xlu0.b32.cont [15/16] 0.0, 128
        %434 = vxpose.xlu0.b32.end [16/16] 0.0, 128
        %v435 = vpop.trf.xlu0
        %v436 = vpop.trf.xlu0
        %v437 = vpop.trf.xlu0
        %v438 = vpop.trf.xlu0
        %v439 = vpop.trf.xlu0
        %v440 = vpop.trf.xlu0
        %v441 = vpop.trf.xlu0
        %v442 = vpop.trf.xlu0
        %v443 = vpop.trf.xlu0
        %v444 = vpop.trf.xlu0
        %v445 = vpop.trf.xlu0
        %v446 = vpop.trf.xlu0
        %v447 = vpop.trf.xlu0
        %v448 = vpop.trf.xlu0
        %v449 = vpop.trf.xlu0
        %v450 = vpop.trf.xlu0
        %451 = vxpose.xlu0.b32.start [1/16] %v379, 128
        %452 = vxpose.xlu0.b32.cont [2/16] %v383, 128
        %453 = vxpose.xlu0.b32.cont [3/16] 0.0, 128
        %454 = vxpose.xlu0.b32.cont [4/16] 0.0, 128
        %455 = vxpose.xlu0.b32.cont [5/16] 0.0, 128
        %456 = vxpose.xlu0.b32.cont [6/16] 0.0, 128
        %457 = vxpose.xlu0.b32.cont [7/16] 0.0, 128
        %458 = vxpose.xlu0.b32.cont [8/16] 0.0, 128
        %459 = vxpose.xlu0.b32.cont [9/16] 0.0, 128
        %460 = vxpose.xlu0.b32.cont [10/16] 0.0, 128
        %461 = vxpose.xlu0.b32.cont [11/16] 0.0, 128
        %462 = vxpose.xlu0.b32.cont [12/16] 0.0, 128
        %463 = vxpose.xlu0.b32.cont [13/16] 0.0, 128
        %464 = vxpose.xlu0.b32.cont [14/16] 0.0, 128
        %465 = vxpose.xlu0.b32.cont [15/16] 0.0, 128
        %466 = vxpose.xlu0.b32.end [16/16] 0.0, 128
        %v467 = vpop.trf.xlu0
        %v468 = vpop.trf.xlu0
        %v469 = vpop.trf.xlu0
        %v470 = vpop.trf.xlu0
        %v471 = vpop.trf.xlu0
        %v472 = vpop.trf.xlu0
        %v473 = vpop.trf.xlu0
        %v474 = vpop.trf.xlu0
        %v475 = vpop.trf.xlu0
        %v476 = vpop.trf.xlu0
        %v477 = vpop.trf.xlu0
        %v478 = vpop.trf.xlu0
        %v479 = vpop.trf.xlu0
        %v480 = vpop.trf.xlu0
        %v481 = vpop.trf.xlu0
        %v482 = vpop.trf.xlu0
        %483 = vxpose.xlu0.b32.start [1/16] %v380, 128
        %484 = vxpose.xlu0.b32.cont [2/16] %v384, 128
        %485 = vxpose.xlu0.b32.cont [3/16] 0.0, 128
        %486 = vxpose.xlu0.b32.cont [4/16] 0.0, 128
        %487 = vxpose.xlu0.b32.cont [5/16] 0.0, 128
        %488 = vxpose.xlu0.b32.cont [6/16] 0.0, 128
        %489 = vxpose.xlu0.b32.cont [7/16] 0.0, 128
        %490 = vxpose.xlu0.b32.cont [8/16] 0.0, 128
        %491 = vxpose.xlu0.b32.cont [9/16] 0.0, 128
        %492 = vxpose.xlu0.b32.cont [10/16] 0.0, 128
        %493 = vxpose.xlu0.b32.cont [11/16] 0.0, 128
        %494 = vxpose.xlu0.b32.cont [12/16] 0.0, 128
        %495 = vxpose.xlu0.b32.cont [13/16] 0.0, 128
        %496 = vxpose.xlu0.b32.cont [14/16] 0.0, 128
        %497 = vxpose.xlu0.b32.cont [15/16] 0.0, 128
        %498 = vxpose.xlu0.b32.end [16/16] 0.0, 128
        %v499 = vpop.trf.xlu0
        %v500 = vpop.trf.xlu0
        %v501 = vpop.trf.xlu0
        %v502 = vpop.trf.xlu0
        %v503 = vpop.trf.xlu0
        %v504 = vpop.trf.xlu0
        %v505 = vpop.trf.xlu0
        %v506 = vpop.trf.xlu0
        %v507 = vpop.trf.xlu0
        %v508 = vpop.trf.xlu0
        %v509 = vpop.trf.xlu0
        %v510 = vpop.trf.xlu0
        %v511 = vpop.trf.xlu0
        %v512 = vpop.trf.xlu0
        %v513 = vpop.trf.xlu0
        %v514 = vpop.trf.xlu0
        %vm515 = vcmask 130048
        %v517 = vsel %vm515, %v403, 0
        %v520 = vsel %vm515, %v404, 0
        %v523 = vsel %vm515, %v405, 0
        %v526 = vsel %vm515, %v406, 0
        %v529 = vsel %vm515, %v407, 0
        %v532 = vsel %vm515, %v408, 0
        %v535 = vsel %vm515, %v409, 0
        %v538 = vsel %vm515, %v410, 0
        %v541 = vsel %vm515, %v411, 0
        %v544 = vsel %vm515, %v412, 0
        %v547 = vsel %vm515, %v413, 0
        %v550 = vsel %vm515, %v414, 0
        %v553 = vsel %vm515, %v415, 0
        %v556 = vsel %vm515, %v416, 0
        %v559 = vsel %vm515, %v417, 0
        %v562 = vsel %vm515, %v418, 0
        %v565 = vsel %vm515, %v435, 0
        %v568 = vsel %vm515, %v436, 0
        %v571 = vsel %vm515, %v437, 0
        %v574 = vsel %vm515, %v438, 0
        %v577 = vsel %vm515, %v439, 0
        %v580 = vsel %vm515, %v440, 0
        %v583 = vsel %vm515, %v441, 0
        %v586 = vsel %vm515, %v442, 0
        %v589 = vsel %vm515, %v443, 0
        %v592 = vsel %vm515, %v444, 0
        %v595 = vsel %vm515, %v445, 0
        %v598 = vsel %vm515, %v446, 0
        %v601 = vsel %vm515, %v447, 0
        %v604 = vsel %vm515, %v448, 0
        %v607 = vsel %vm515, %v449, 0
        %v610 = vsel %vm515, %v450, 0
        %v613 = vsel %vm515, %v467, 0
        %v616 = vsel %vm515, %v468, 0
        %v619 = vsel %vm515, %v469, 0
        %v622 = vsel %vm515, %v470, 0
        %v625 = vsel %vm515, %v471, 0
        %v628 = vsel %vm515, %v472, 0
        %v631 = vsel %vm515, %v473, 0
        %v634 = vsel %vm515, %v474, 0
        %v637 = vsel %vm515, %v475, 0
        %v640 = vsel %vm515, %v476, 0
        %v643 = vsel %vm515, %v477, 0
        %v646 = vsel %vm515, %v478, 0
        %v649 = vsel %vm515, %v479, 0
        %v652 = vsel %vm515, %v480, 0
        %v655 = vsel %vm515, %v481, 0
        %v658 = vsel %vm515, %v482, 0
        %v661 = vsel %vm515, %v499, 0
        %v664 = vsel %vm515, %v500, 0
        %v667 = vsel %vm515, %v501, 0
        %v670 = vsel %vm515, %v502, 0
        %v673 = vsel %vm515, %v503, 0
        %v676 = vsel %vm515, %v504, 0
        %v679 = vsel %vm515, %v505, 0
        %v682 = vsel %vm515, %v506, 0
        %v685 = vsel %vm515, %v507, 0
        %v688 = vsel %vm515, %v508, 0
        %v691 = vsel %vm515, %v509, 0
        %v694 = vsel %vm515, %v510, 0
        %v697 = vsel %vm515, %v511, 0
        %v700 = vsel %vm515, %v512, 0
        %v703 = vsel %vm515, %v513, 0
        %v706 = vsel %vm515, %v514, 0
        %708 = vmatprep.subr.mxu0 0.0
        %709 = vmatpush1.msra.mxu0 %v385
        %710 = vmatprep.subr.mxu0 0.0
        %711 = vmatpush1.msra.mxu0 %v386
        %712 = vmatprep.subr.mxu0 0.0
        %713 = vmatpush1.msra.mxu0 0.0
        %714 = vmatprep.subr.mxu0 0.0
        %715 = vmatpush1.msra.mxu0 0.0
        %716 = vmatprep.subr.mxu0 0.0
        %717 = vmatpush1.msra.mxu0 0.0
        %718 = vmatprep.subr.mxu0 0.0
        %719 = vmatpush1.msra.mxu0 0.0
        %720 = vmatprep.subr.mxu0 0.0
        %721 = vmatpush1.msra.mxu0 0.0
        %722 = vmatprep.subr.mxu0 0.0
        %723 = vmatpush1.msra.mxu0 0.0
        %724 = vmatprep.subr.mxu0 0.0
        %725 = vmatpush1.msra.mxu0 0.0
        %726 = vmatprep.subr.mxu0 0.0
        %727 = vmatpush1.msra.mxu0 0.0
        %728 = vmatprep.subr.mxu0 0.0
        %729 = vmatpush1.msra.mxu0 0.0
        %730 = vmatprep.subr.mxu0 0.0
        %731 = vmatpush1.msra.mxu0 0.0
        %732 = vmatprep.subr.mxu0 0.0
        %733 = vmatpush1.msra.mxu0 0.0
        %734 = vmatprep.subr.mxu0 0.0
        %735 = vmatpush1.msra.mxu0 0.0
        %736 = vmatprep.subr.mxu0 0.0
        %737 = vmatpush1.msra.mxu0 0.0
        %738 = vmatprep.subr.mxu0 0.0
        %739 = vmatpush1.msra.mxu0 0.0
        %740 = vmatprep.subr.mxu0 0.0
        %741 = vmatpush1.msra.mxu0 0.0
        %742 = vmatprep.subr.mxu0 0.0
        %743 = vmatpush1.msra.mxu0 0.0
        %744 = vmatprep.subr.mxu0 0.0
        %745 = vmatpush1.msra.mxu0 0.0
        %746 = vmatprep.subr.mxu0 0.0
        %747 = vmatpush1.msra.mxu0 0.0
        %748 = vmatprep.subr.mxu0 0.0
        %749 = vmatpush1.msra.mxu0 0.0
        %750 = vmatprep.subr.mxu0 0.0
        %751 = vmatpush1.msra.mxu0 0.0
        %752 = vmatprep.subr.mxu0 0.0
        %753 = vmatpush1.msra.mxu0 0.0
        %754 = vmatprep.subr.mxu0 0.0
        %755 = vmatpush1.msra.mxu0 0.0
        %756 = vmatprep.subr.mxu0 0.0
        %757 = vmatpush1.msra.mxu0 0.0
        %758 = vmatprep.subr.mxu0 0.0
        %759 = vmatpush1.msra.mxu0 0.0
        %760 = vmatprep.subr.mxu0 0.0
        %761 = vmatpush1.msra.mxu0 0.0
        %762 = vmatprep.subr.mxu0 0.0
        %763 = vmatpush1.msra.mxu0 0.0
        %764 = vmatprep.subr.mxu0 0.0
        %765 = vmatpush1.msra.mxu0 0.0
        %766 = vmatprep.subr.mxu0 0.0
        %767 = vmatpush1.msra.mxu0 0.0
        %768 = vmatprep.subr.mxu0 0.0
        %769 = vmatpush1.msra.mxu0 0.0
        %770 = vmatprep.subr.mxu0 0.0
        %771 = vmatpush1.msra.mxu0 0.0
        %772 = vmatprep.mubr.f32.mxu0 0.0
        %773 = vmatmul.mubr.f32.gmra.mrb[0].mxu0 %v517
        %v774 = vpop.f32.mrb[0].mxu0
        %v775 = vadd.f32 0.0, %v774
        %v776 = vpop.f32.mrb[0].mxu0
        %777 = vmatprep.mubr.f32.mxu0 0.0
        %778 = vmatmul.mubr.f32.gmra.mrb[0].mxu0 %v520
        %v779 = vpop.f32.mrb[0].mxu0
        %v780 = vadd.f32 0.0, %v779
        %v781 = vpop.f32.mrb[0].mxu0
        %782 = vmatprep.mubr.f32.mxu0 0.0
        %783 = vmatmul.mubr.f32.gmra.mrb[0].mxu0 %v523
        %v784 = vpop.f32.mrb[0].mxu0
        %v785 = vadd.f32 0.0, %v784
        %v786 = vpop.f32.mrb[0].mxu0
        %787 = vmatprep.mubr.f32.mxu0 0.0
        %788 = vmatmul.mubr.f32.gmra.mrb[0].mxu0 %v526
        %v789 = vpop.f32.mrb[0].mxu0
        %v790 = vadd.f32 0.0, %v789
        %v791 = vpop.f32.mrb[0].mxu0
        %792 = vmatprep.mubr.f32.mxu0 0.0
        %793 = vmatmul.mubr.f32.gmra.mrb[0].mxu0 %v529
        %v794 = vpop.f32.mrb[0].mxu0
        %v795 = vadd.f32 0.0, %v794
        %v796 = vpop.f32.mrb[0].mxu0
        %797 = vmatprep.mubr.f32.mxu0 0.0
        %798 = vmatmul.mubr.f32.gmra.mrb[0].mxu0 %v532
        %v799 = vpop.f32.mrb[0].mxu0
        %v800 = vadd.f32 0.0, %v799
        %v801 = vpop.f32.mrb[0].mxu0
        %802 = vmatprep.mubr.f32.mxu0 0.0
        %803 = vmatmul.mubr.f32.gmra.mrb[0].mxu0 %v535
        %v804 = vpop.f32.mrb[0].mxu0
        %v805 = vadd.f32 0.0, %v804
        %v806 = vpop.f32.mrb[0].mxu0
        %807 = vmatprep.mubr.f32.mxu0 0.0
        %808 = vmatmul.mubr.f32.gmra.mrb[0].mxu0 %v538
        %v809 = vpop.f32.mrb[0].mxu0
        %v810 = vadd.f32 0.0, %v809
        %v811 = vpop.f32.mrb[0].mxu0
        %812 = vmatprep.mubr.f32.mxu0 0.0
        %813 = vmatmul.mubr.f32.gmra.mrb[0].mxu0 %v541
        %v814 = vpop.f32.mrb[0].mxu0
        %v815 = vadd.f32 0.0, %v814
        %v816 = vpop.f32.mrb[0].mxu0
        %817 = vmatprep.mubr.f32.mxu0 0.0
        %818 = vmatmul.mubr.f32.gmra.mrb[0].mxu0 %v544
        %v819 = vpop.f32.mrb[0].mxu0
        %v820 = vadd.f32 0.0, %v819
        %v821 = vpop.f32.mrb[0].mxu0
        %822 = vmatprep.mubr.f32.mxu0 0.0
        %823 = vmatmul.mubr.f32.gmra.mrb[0].mxu0 %v547
        %v824 = vpop.f32.mrb[0].mxu0
        %v825 = vadd.f32 0.0, %v824
        %v826 = vpop.f32.mrb[0].mxu0
        %827 = vmatprep.mubr.f32.mxu0 0.0
        %828 = vmatmul.mubr.f32.gmra.mrb[0].mxu0 %v550
        %v829 = vpop.f32.mrb[0].mxu0
        %v830 = vadd.f32 0.0, %v829
        %v831 = vpop.f32.mrb[0].mxu0
        %832 = vmatprep.mubr.f32.mxu0 0.0
        %833 = vmatmul.mubr.f32.gmra.mrb[0].mxu0 %v553
        %v834 = vpop.f32.mrb[0].mxu0
        %v835 = vadd.f32 0.0, %v834
        %v836 = vpop.f32.mrb[0].mxu0
        %837 = vmatprep.mubr.f32.mxu0 0.0
        %838 = vmatmul.mubr.f32.gmra.mrb[0].mxu0 %v556
        %v839 = vpop.f32.mrb[0].mxu0
        %v840 = vadd.f32 0.0, %v839
        %v841 = vpop.f32.mrb[0].mxu0
        %842 = vmatprep.mubr.f32.mxu0 0.0
        %843 = vmatmul.mubr.f32.gmra.mrb[0].mxu0 %v559
        %v844 = vpop.f32.mrb[0].mxu0
        %v845 = vadd.f32 0.0, %v844
        %v846 = vpop.f32.mrb[0].mxu0
        %847 = vmatprep.mubr.f32.mxu0 0.0
        %848 = vmatmul.mubr.f32.gmra.mrb[0].mxu0 %v562
        %v849 = vpop.f32.mrb[0].mxu0
        %v850 = vadd.f32 0.0, %v849
        %v851 = vpop.f32.mrb[0].mxu0
        %852 = vmatprep.mubr.f32.mxu0 0.0
        %853 = vmatmul.mubr.f32.gmra.mrb[0].mxu0 %v565
        %v854 = vpop.f32.mrb[0].mxu0
        %v855 = vadd.f32 0.0, %v854
        %v856 = vpop.f32.mrb[0].mxu0
        %857 = vmatprep.mubr.f32.mxu0 0.0
        %858 = vmatmul.mubr.f32.gmra.mrb[0].mxu0 %v568
        %v859 = vpop.f32.mrb[0].mxu0
        %v860 = vadd.f32 0.0, %v859
        %v861 = vpop.f32.mrb[0].mxu0
        %862 = vmatprep.mubr.f32.mxu0 0.0
        %863 = vmatmul.mubr.f32.gmra.mrb[0].mxu0 %v571
        %v864 = vpop.f32.mrb[0].mxu0
        %v865 = vadd.f32 0.0, %v864
        %v866 = vpop.f32.mrb[0].mxu0
        %867 = vmatprep.mubr.f32.mxu0 0.0
        %868 = vmatmul.mubr.f32.gmra.mrb[0].mxu0 %v574
        %v869 = vpop.f32.mrb[0].mxu0
        %v870 = vadd.f32 0.0, %v869
        %v871 = vpop.f32.mrb[0].mxu0
        %872 = vmatprep.mubr.f32.mxu0 0.0
        %873 = vmatmul.mubr.f32.gmra.mrb[0].mxu0 %v577
        %v874 = vpop.f32.mrb[0].mxu0
        %v875 = vadd.f32 0.0, %v874
        %v876 = vpop.f32.mrb[0].mxu0
        %877 = vmatprep.mubr.f32.mxu0 0.0
        %878 = vmatmul.mubr.f32.gmra.mrb[0].mxu0 %v580
        %v879 = vpop.f32.mrb[0].mxu0
        %v880 = vadd.f32 0.0, %v879
        %v881 = vpop.f32.mrb[0].mxu0
        %882 = vmatprep.mubr.f32.mxu0 0.0
        %883 = vmatmul.mubr.f32.gmra.mrb[0].mxu0 %v583
        %v884 = vpop.f32.mrb[0].mxu0
        %v885 = vadd.f32 0.0, %v884
        %v886 = vpop.f32.mrb[0].mxu0
        %887 = vmatprep.mubr.f32.mxu0 0.0
        %888 = vmatmul.mubr.f32.gmra.mrb[0].mxu0 %v586
        %v889 = vpop.f32.mrb[0].mxu0
        %v890 = vadd.f32 0.0, %v889
        %v891 = vpop.f32.mrb[0].mxu0
        %892 = vmatprep.mubr.f32.mxu0 0.0
        %893 = vmatmul.mubr.f32.gmra.mrb[0].mxu0 %v589
        %v894 = vpop.f32.mrb[0].mxu0
        %v895 = vadd.f32 0.0, %v894
        %v896 = vpop.f32.mrb[0].mxu0
        %897 = vmatprep.mubr.f32.mxu0 0.0
        %898 = vmatmul.mubr.f32.gmra.mrb[0].mxu0 %v592
        %v899 = vpop.f32.mrb[0].mxu0
        %v900 = vadd.f32 0.0, %v899
        %v901 = vpop.f32.mrb[0].mxu0
        %902 = vmatprep.mubr.f32.mxu0 0.0
        %903 = vmatmul.mubr.f32.gmra.mrb[0].mxu0 %v595
        %v904 = vpop.f32.mrb[0].mxu0
        %v905 = vadd.f32 0.0, %v904
        %v906 = vpop.f32.mrb[0].mxu0
        %907 = vmatprep.mubr.f32.mxu0 0.0
        %908 = vmatmul.mubr.f32.gmra.mrb[0].mxu0 %v598
        %v909 = vpop.f32.mrb[0].mxu0
        %v910 = vadd.f32 0.0, %v909
        %v911 = vpop.f32.mrb[0].mxu0
        %912 = vmatprep.mubr.f32.mxu0 0.0
        %913 = vmatmul.mubr.f32.gmra.mrb[0].mxu0 %v601
        %v914 = vpop.f32.mrb[0].mxu0
        %v915 = vadd.f32 0.0, %v914
        %v916 = vpop.f32.mrb[0].mxu0
        %917 = vmatprep.mubr.f32.mxu0 0.0
        %918 = vmatmul.mubr.f32.gmra.mrb[0].mxu0 %v604
        %v919 = vpop.f32.mrb[0].mxu0
        %v920 = vadd.f32 0.0, %v919
        %v921 = vpop.f32.mrb[0].mxu0
        %922 = vmatprep.mubr.f32.mxu0 0.0
        %923 = vmatmul.mubr.f32.gmra.mrb[0].mxu0 %v607
        %v924 = vpop.f32.mrb[0].mxu0
        %v925 = vadd.f32 0.0, %v924
        %v926 = vpop.f32.mrb[0].mxu0
        %927 = vmatprep.mubr.f32.mxu0 0.0
        %928 = vmatmul.mubr.f32.gmra.mrb[0].mxu0 %v610
        %v929 = vpop.f32.mrb[0].mxu0
        %v930 = vadd.f32 0.0, %v929
        %v931 = vpop.f32.mrb[0].mxu0
        %932 = vmatprep.mubr.f32.mxu0 0.0
        %933 = vmatmul.mubr.f32.gmra.mrb[0].mxu0 %v613
        %v934 = vpop.f32.mrb[0].mxu0
        %v935 = vadd.f32 0.0, %v934
        %v936 = vpop.f32.mrb[0].mxu0
        %937 = vmatprep.mubr.f32.mxu0 0.0
        %938 = vmatmul.mubr.f32.gmra.mrb[0].mxu0 %v616
        %v939 = vpop.f32.mrb[0].mxu0
        %v940 = vadd.f32 0.0, %v939
        %v941 = vpop.f32.mrb[0].mxu0
        %942 = vmatprep.mubr.f32.mxu0 0.0
        %943 = vmatmul.mubr.f32.gmra.mrb[0].mxu0 %v619
        %v944 = vpop.f32.mrb[0].mxu0
        %v945 = vadd.f32 0.0, %v944
        %v946 = vpop.f32.mrb[0].mxu0
        %947 = vmatprep.mubr.f32.mxu0 0.0
        %948 = vmatmul.mubr.f32.gmra.mrb[0].mxu0 %v622
        %v949 = vpop.f32.mrb[0].mxu0
        %v950 = vadd.f32 0.0, %v949
        %v951 = vpop.f32.mrb[0].mxu0
        %952 = vmatprep.mubr.f32.mxu0 0.0
        %953 = vmatmul.mubr.f32.gmra.mrb[0].mxu0 %v625
        %v954 = vpop.f32.mrb[0].mxu0
        %v955 = vadd.f32 0.0, %v954
        %v956 = vpop.f32.mrb[0].mxu0
        %957 = vmatprep.mubr.f32.mxu0 0.0
        %958 = vmatmul.mubr.f32.gmra.mrb[0].mxu0 %v628
        %v959 = vpop.f32.mrb[0].mxu0
        %v960 = vadd.f32 0.0, %v959
        %v961 = vpop.f32.mrb[0].mxu0
        %962 = vmatprep.mubr.f32.mxu0 0.0
        %963 = vmatmul.mubr.f32.gmra.mrb[0].mxu0 %v631
        %v964 = vpop.f32.mrb[0].mxu0
        %v965 = vadd.f32 0.0, %v964
        %v966 = vpop.f32.mrb[0].mxu0
        %967 = vmatprep.mubr.f32.mxu0 0.0
        %968 = vmatmul.mubr.f32.gmra.mrb[0].mxu0 %v634
        %v969 = vpop.f32.mrb[0].mxu0
        %v970 = vadd.f32 0.0, %v969
        %v971 = vpop.f32.mrb[0].mxu0
        %972 = vmatprep.mubr.f32.mxu0 0.0
        %973 = vmatmul.mubr.f32.gmra.mrb[0].mxu0 %v637
        %v974 = vpop.f32.mrb[0].mxu0
        %v975 = vadd.f32 0.0, %v974
        %v976 = vpop.f32.mrb[0].mxu0
        %977 = vmatprep.mubr.f32.mxu0 0.0
        %978 = vmatmul.mubr.f32.gmra.mrb[0].mxu0 %v640
        %v979 = vpop.f32.mrb[0].mxu0
        %v980 = vadd.f32 0.0, %v979
        %v981 = vpop.f32.mrb[0].mxu0
        %982 = vmatprep.mubr.f32.mxu0 0.0
        %983 = vmatmul.mubr.f32.gmra.mrb[0].mxu0 %v643
        %v984 = vpop.f32.mrb[0].mxu0
        %v985 = vadd.f32 0.0, %v984
        %v986 = vpop.f32.mrb[0].mxu0
        %987 = vmatprep.mubr.f32.mxu0 0.0
        %988 = vmatmul.mubr.f32.gmra.mrb[0].mxu0 %v646
        %v989 = vpop.f32.mrb[0].mxu0
        %v990 = vadd.f32 0.0, %v989
        %v991 = vpop.f32.mrb[0].mxu0
        %992 = vmatprep.mubr.f32.mxu0 0.0
        %993 = vmatmul.mubr.f32.gmra.mrb[0].mxu0 %v649
        %v994 = vpop.f32.mrb[0].mxu0
        %v995 = vadd.f32 0.0, %v994
        %v996 = vpop.f32.mrb[0].mxu0
        %997 = vmatprep.mubr.f32.mxu0 0.0
        %998 = vmatmul.mubr.f32.gmra.mrb[0].mxu0 %v652
        %v999 = vpop.f32.mrb[0].mxu0
        %v1000 = vadd.f32 0.0, %v999
        %v1001 = vpop.f32.mrb[0].mxu0
        %1002 = vmatprep.mubr.f32.mxu0 0.0
        %1003 = vmatmul.mubr.f32.gmra.mrb[0].mxu0 %v655
        %v1004 = vpop.f32.mrb[0].mxu0
        %v1005 = vadd.f32 0.0, %v1004
        %v1006 = vpop.f32.mrb[0].mxu0
        %1007 = vmatprep.mubr.f32.mxu0 0.0
        %1008 = vmatmul.mubr.f32.gmra.mrb[0].mxu0 %v658
        %v1009 = vpop.f32.mrb[0].mxu0
        %v1010 = vadd.f32 0.0, %v1009
        %v1011 = vpop.f32.mrb[0].mxu0
        %1012 = vmatprep.mubr.f32.mxu0 0.0
        %1013 = vmatmul.mubr.f32.gmra.mrb[0].mxu0 %v661
        %v1014 = vpop.f32.mrb[0].mxu0
        %v1015 = vadd.f32 0.0, %v1014
        %v1016 = vpop.f32.mrb[0].mxu0
        %1017 = vmatprep.mubr.f32.mxu0 0.0
        %1018 = vmatmul.mubr.f32.gmra.mrb[0].mxu0 %v664
        %v1019 = vpop.f32.mrb[0].mxu0
        %v1020 = vadd.f32 0.0, %v1019
        %v1021 = vpop.f32.mrb[0].mxu0
        %1022 = vmatprep.mubr.f32.mxu0 0.0
        %1023 = vmatmul.mubr.f32.gmra.mrb[0].mxu0 %v667
        %v1024 = vpop.f32.mrb[0].mxu0
        %v1025 = vadd.f32 0.0, %v1024
        %v1026 = vpop.f32.mrb[0].mxu0
        %1027 = vmatprep.mubr.f32.mxu0 0.0
        %1028 = vmatmul.mubr.f32.gmra.mrb[0].mxu0 %v670
        %v1029 = vpop.f32.mrb[0].mxu0
        %v1030 = vadd.f32 0.0, %v1029
        %v1031 = vpop.f32.mrb[0].mxu0
        %1032 = vmatprep.mubr.f32.mxu0 0.0
        %1033 = vmatmul.mubr.f32.gmra.mrb[0].mxu0 %v673
        %v1034 = vpop.f32.mrb[0].mxu0
        %v1035 = vadd.f32 0.0, %v1034
        %v1036 = vpop.f32.mrb[0].mxu0
        %1037 = vmatprep.mubr.f32.mxu0 0.0
        %1038 = vmatmul.mubr.f32.gmra.mrb[0].mxu0 %v676
        %v1039 = vpop.f32.mrb[0].mxu0
        %v1040 = vadd.f32 0.0, %v1039
        %v1041 = vpop.f32.mrb[0].mxu0
        %1042 = vmatprep.mubr.f32.mxu0 0.0
        %1043 = vmatmul.mubr.f32.gmra.mrb[0].mxu0 %v679
        %v1044 = vpop.f32.mrb[0].mxu0
        %v1045 = vadd.f32 0.0, %v1044
        %v1046 = vpop.f32.mrb[0].mxu0
        %1047 = vmatprep.mubr.f32.mxu0 0.0
        %1048 = vmatmul.mubr.f32.gmra.mrb[0].mxu0 %v682
        %v1049 = vpop.f32.mrb[0].mxu0
        %v1050 = vadd.f32 0.0, %v1049
        %v1051 = vpop.f32.mrb[0].mxu0
        %1052 = vmatprep.mubr.f32.mxu0 0.0
        %1053 = vmatmul.mubr.f32.gmra.mrb[0].mxu0 %v685
        %v1054 = vpop.f32.mrb[0].mxu0
        %v1055 = vadd.f32 0.0, %v1054
        %v1056 = vpop.f32.mrb[0].mxu0
        %1057 = vmatprep.mubr.f32.mxu0 0.0
        %1058 = vmatmul.mubr.f32.gmra.mrb[0].mxu0 %v688
        %v1059 = vpop.f32.mrb[0].mxu0
        %v1060 = vadd.f32 0.0, %v1059
        %v1061 = vpop.f32.mrb[0].mxu0
        %1062 = vmatprep.mubr.f32.mxu0 0.0
        %1063 = vmatmul.mubr.f32.gmra.mrb[0].mxu0 %v691
        %v1064 = vpop.f32.mrb[0].mxu0
        %v1065 = vadd.f32 0.0, %v1064
        %v1066 = vpop.f32.mrb[0].mxu0
        %1067 = vmatprep.mubr.f32.mxu0 0.0
        %1068 = vmatmul.mubr.f32.gmra.mrb[0].mxu0 %v694
        %v1069 = vpop.f32.mrb[0].mxu0
        %v1070 = vadd.f32 0.0, %v1069
        %v1071 = vpop.f32.mrb[0].mxu0
        %1072 = vmatprep.mubr.f32.mxu0 0.0
        %1073 = vmatmul.mubr.f32.gmra.mrb[0].mxu0 %v697
        %v1074 = vpop.f32.mrb[0].mxu0
        %v1075 = vadd.f32 0.0, %v1074
        %v1076 = vpop.f32.mrb[0].mxu0
        %1077 = vmatprep.mubr.f32.mxu0 0.0
        %1078 = vmatmul.mubr.f32.gmra.mrb[0].mxu0 %v700
        %v1079 = vpop.f32.mrb[0].mxu0
        %v1080 = vadd.f32 0.0, %v1079
        %v1081 = vpop.f32.mrb[0].mxu0
        %1082 = vmatprep.mubr.f32.mxu0 0.0
        %1083 = vmatmul.mubr.f32.gmra.mrb[0].mxu0 %v703
        %v1084 = vpop.f32.mrb[0].mxu0
        %v1085 = vadd.f32 0.0, %v1084
        %v1086 = vpop.f32.mrb[0].mxu0
        %1087 = vmatprep.mubr.f32.mxu0 0.0
        %1088 = vmatmul.mubr.f32.gmra.mrb[0].mxu0 %v706
        %v1089 = vpop.f32.mrb[0].mxu0
        %v1090 = vadd.f32 0.0, %v1089
        %v1091 = vpop.f32.mrb[0].mxu0
        %1092 = vdwg.mxu0
        %v1093 = vld [vmem:[%s2] sm:$0x1]
        %v1095 = vlaneseq
        %v1096 = vshrl.u32 %v1095, 7
        %v1097 = vsub.s32 0, %v1096
        %v1098 = vrot.slane %v1093, %v1097
        %v1100 = vmul.f32 %v775, %v1098
        %v1101 = vmul.f32 %v780, %v1098
        %v1102 = vmul.f32 %v785, %v1098
        %v1103 = vmul.f32 %v790, %v1098
        %v1104 = vmul.f32 %v795, %v1098
        %v1105 = vmul.f32 %v800, %v1098
        %v1106 = vmul.f32 %v805, %v1098
        %v1107 = vmul.f32 %v810, %v1098
        %v1108 = vmul.f32 %v815, %v1098
        %v1109 = vmul.f32 %v820, %v1098
        %v1110 = vmul.f32 %v825, %v1098
        %v1111 = vmul.f32 %v830, %v1098
        %v1112 = vmul.f32 %v835, %v1098
        %v1113 = vmul.f32 %v840, %v1098
        %v1114 = vmul.f32 %v845, %v1098
        %v1115 = vmul.f32 %v850, %v1098
        %v1116 = vmul.f32 %v855, %v1098
        %v1117 = vmul.f32 %v860, %v1098
        %v1118 = vmul.f32 %v865, %v1098
        %v1119 = vmul.f32 %v870, %v1098
        %v1120 = vmul.f32 %v875, %v1098
        %v1121 = vmul.f32 %v880, %v1098
        %v1122 = vmul.f32 %v885, %v1098
        %v1123 = vmul.f32 %v890, %v1098
        %v1124 = vmul.f32 %v895, %v1098
        %v1125 = vmul.f32 %v900, %v1098
        %v1126 = vmul.f32 %v905, %v1098
        %v1127 = vmul.f32 %v910, %v1098
        %v1128 = vmul.f32 %v915, %v1098
        %v1129 = vmul.f32 %v920, %v1098
        %v1130 = vmul.f32 %v925, %v1098
        %v1131 = vmul.f32 %v930, %v1098
        %v1132 = vmul.f32 %v935, %v1098
        %v1133 = vmul.f32 %v940, %v1098
        %v1134 = vmul.f32 %v945, %v1098
        %v1135 = vmul.f32 %v950, %v1098
        %v1136 = vmul.f32 %v955, %v1098
        %v1137 = vmul.f32 %v960, %v1098
        %v1138 = vmul.f32 %v965, %v1098
        %v1139 = vmul.f32 %v970, %v1098
        %v1140 = vmul.f32 %v975, %v1098
        %v1141 = vmul.f32 %v980, %v1098
        %v1142 = vmul.f32 %v985, %v1098
        %v1143 = vmul.f32 %v990, %v1098
        %v1144 = vmul.f32 %v995, %v1098
        %v1145 = vmul.f32 %v1000, %v1098
        %v1146 = vmul.f32 %v1005, %v1098
        %v1147 = vmul.f32 %v1010, %v1098
        %v1148 = vmul.f32 %v1015, %v1098
        %v1149 = vmul.f32 %v1020, %v1098
        %v1150 = vmul.f32 %v1025, %v1098
        %v1151 = vmul.f32 %v1030, %v1098
        %v1152 = vmul.f32 %v1035, %v1098
        %v1153 = vmul.f32 %v1040, %v1098
        %v1154 = vmul.f32 %v1045, %v1098
        %v1155 = vmul.f32 %v1050, %v1098
        %v1156 = vmul.f32 %v1055, %v1098
        %v1157 = vmul.f32 %v1060, %v1098
        %v1158 = vmul.f32 %v1065, %v1098
        %v1159 = vmul.f32 %v1070, %v1098
        %v1160 = vmul.f32 %v1075, %v1098
        %v1161 = vmul.f32 %v1080, %v1098
        %v1162 = vmul.f32 %v1085, %v1098
        %v1163 = vmul.f32 %v1090, %v1098
        %v1164 = vld [vmem:[%s3] sm:$0x1]
        %v1166 = vlaneseq
        %v1167 = vshrl.u32 %v1166, 7
        %v1168 = vsub.s32 0, %v1167
        %v1169 = vrot.slane %v1164, %v1168
        %v1171 = vadd.f32 %v1100, %v1169
        %v1172 = vadd.f32 %v1101, %v1169
        %v1173 = vadd.f32 %v1102, %v1169
        %v1174 = vadd.f32 %v1103, %v1169
        %v1175 = vadd.f32 %v1104, %v1169
        %v1176 = vadd.f32 %v1105, %v1169
        %v1177 = vadd.f32 %v1106, %v1169
        %v1178 = vadd.f32 %v1107, %v1169
        %v1179 = vadd.f32 %v1108, %v1169
        %v1180 = vadd.f32 %v1109, %v1169
        %v1181 = vadd.f32 %v1110, %v1169
        %v1182 = vadd.f32 %v1111, %v1169
        %v1183 = vadd.f32 %v1112, %v1169
        %v1184 = vadd.f32 %v1113, %v1169
        %v1185 = vadd.f32 %v1114, %v1169
        %v1186 = vadd.f32 %v1115, %v1169
        %v1187 = vadd.f32 %v1116, %v1169
        %v1188 = vadd.f32 %v1117, %v1169
        %v1189 = vadd.f32 %v1118, %v1169
        %v1190 = vadd.f32 %v1119, %v1169
        %v1191 = vadd.f32 %v1120, %v1169
        %v1192 = vadd.f32 %v1121, %v1169
        %v1193 = vadd.f32 %v1122, %v1169
        %v1194 = vadd.f32 %v1123, %v1169
        %v1195 = vadd.f32 %v1124, %v1169
        %v1196 = vadd.f32 %v1125, %v1169
        %v1197 = vadd.f32 %v1126, %v1169
        %v1198 = vadd.f32 %v1127, %v1169
        %v1199 = vadd.f32 %v1128, %v1169
        %v1200 = vadd.f32 %v1129, %v1169
        %v1201 = vadd.f32 %v1130, %v1169
        %v1202 = vadd.f32 %v1131, %v1169
        %v1203 = vadd.f32 %v1132, %v1169
        %v1204 = vadd.f32 %v1133, %v1169
        %v1205 = vadd.f32 %v1134, %v1169
        %v1206 = vadd.f32 %v1135, %v1169
        %v1207 = vadd.f32 %v1136, %v1169
        %v1208 = vadd.f32 %v1137, %v1169
        %v1209 = vadd.f32 %v1138, %v1169
        %v1210 = vadd.f32 %v1139, %v1169
        %v1211 = vadd.f32 %v1140, %v1169
        %v1212 = vadd.f32 %v1141, %v1169
        %v1213 = vadd.f32 %v1142, %v1169
        %v1214 = vadd.f32 %v1143, %v1169
        %v1215 = vadd.f32 %v1144, %v1169
        %v1216 = vadd.f32 %v1145, %v1169
        %v1217 = vadd.f32 %v1146, %v1169
        %v1218 = vadd.f32 %v1147, %v1169
        %v1219 = vadd.f32 %v1148, %v1169
        %v1220 = vadd.f32 %v1149, %v1169
        %v1221 = vadd.f32 %v1150, %v1169
        %v1222 = vadd.f32 %v1151, %v1169
        %v1223 = vadd.f32 %v1152, %v1169
        %v1224 = vadd.f32 %v1153, %v1169
        %v1225 = vadd.f32 %v1154, %v1169
        %v1226 = vadd.f32 %v1155, %v1169
        %v1227 = vadd.f32 %v1156, %v1169
        %v1228 = vadd.f32 %v1157, %v1169
        %v1229 = vadd.f32 %v1158, %v1169
        %v1230 = vadd.f32 %v1159, %v1169
        %v1231 = vadd.f32 %v1160, %v1169
        %v1232 = vadd.f32 %v1161, %v1169
        %v1233 = vadd.f32 %v1162, %v1169
        %v1234 = vadd.f32 %v1163, %v1169
        %v1235 = vmax.f32 %v1171, 0.0
        %v1236 = vmax.f32 %v1172, 0.0
        %v1237 = vmax.f32 %v1173, 0.0
        %v1238 = vmax.f32 %v1174, 0.0
        %v1239 = vmax.f32 %v1175, 0.0
        %v1240 = vmax.f32 %v1176, 0.0
        %v1241 = vmax.f32 %v1177, 0.0
        %v1242 = vmax.f32 %v1178, 0.0
        %v1243 = vmax.f32 %v1179, 0.0
        %v1244 = vmax.f32 %v1180, 0.0
        %v1245 = vmax.f32 %v1181, 0.0
        %v1246 = vmax.f32 %v1182, 0.0
        %v1247 = vmax.f32 %v1183, 0.0
        %v1248 = vmax.f32 %v1184, 0.0
        %v1249 = vmax.f32 %v1185, 0.0
        %v1250 = vmax.f32 %v1186, 0.0
        %v1251 = vmax.f32 %v1187, 0.0
        %v1252 = vmax.f32 %v1188, 0.0
        %v1253 = vmax.f32 %v1189, 0.0
        %v1254 = vmax.f32 %v1190, 0.0
        %v1255 = vmax.f32 %v1191, 0.0
        %v1256 = vmax.f32 %v1192, 0.0
        %v1257 = vmax.f32 %v1193, 0.0
        %v1258 = vmax.f32 %v1194, 0.0
        %v1259 = vmax.f32 %v1195, 0.0
        %v1260 = vmax.f32 %v1196, 0.0
        %v1261 = vmax.f32 %v1197, 0.0
        %v1262 = vmax.f32 %v1198, 0.0
        %v1263 = vmax.f32 %v1199, 0.0
        %v1264 = vmax.f32 %v1200, 0.0
        %v1265 = vmax.f32 %v1201, 0.0
        %v1266 = vmax.f32 %v1202, 0.0
        %v1267 = vmax.f32 %v1203, 0.0
        %v1268 = vmax.f32 %v1204, 0.0
        %v1269 = vmax.f32 %v1205, 0.0
        %v1270 = vmax.f32 %v1206, 0.0
        %v1271 = vmax.f32 %v1207, 0.0
        %v1272 = vmax.f32 %v1208, 0.0
        %v1273 = vmax.f32 %v1209, 0.0
        %v1274 = vmax.f32 %v1210, 0.0
        %v1275 = vmax.f32 %v1211, 0.0
        %v1276 = vmax.f32 %v1212, 0.0
        %v1277 = vmax.f32 %v1213, 0.0
        %v1278 = vmax.f32 %v1214, 0.0
        %v1279 = vmax.f32 %v1215, 0.0
        %v1280 = vmax.f32 %v1216, 0.0
        %v1281 = vmax.f32 %v1217, 0.0
        %v1282 = vmax.f32 %v1218, 0.0
        %v1283 = vmax.f32 %v1219, 0.0
        %v1284 = vmax.f32 %v1220, 0.0
        %v1285 = vmax.f32 %v1221, 0.0
        %v1286 = vmax.f32 %v1222, 0.0
        %v1287 = vmax.f32 %v1223, 0.0
        %v1288 = vmax.f32 %v1224, 0.0
        %v1289 = vmax.f32 %v1225, 0.0
        %v1290 = vmax.f32 %v1226, 0.0
        %v1291 = vmax.f32 %v1227, 0.0
        %v1292 = vmax.f32 %v1228, 0.0
        %v1293 = vmax.f32 %v1229, 0.0
        %v1294 = vmax.f32 %v1230, 0.0
        %v1295 = vmax.f32 %v1231, 0.0
        %v1296 = vmax.f32 %v1232, 0.0
        %v1297 = vmax.f32 %v1233, 0.0
        %v1298 = vmax.f32 %v1234, 0.0
        %v1299 = vld [vmem:[%s4] sm:$0xff]
        %v1300 = vld [vmem:[%s4 + $0x8] sm:$0xff]
        %v1301 = vld [vmem:[%s4 + $0x10] sm:$0xff]
        %v1302 = vld [vmem:[%s4 + $0x18] sm:$0xff]
        %v1303 = vmul.f32 %v1235, %v1235
        %v1304 = vmul.f32 %v1236, %v1236
        %v1305 = vmul.f32 %v1237, %v1237
        %v1306 = vmul.f32 %v1238, %v1238
        %v1307 = vmul.f32 %v1239, %v1239
        %v1308 = vmul.f32 %v1240, %v1240
        %v1309 = vmul.f32 %v1241, %v1241
        %v1310 = vmul.f32 %v1242, %v1242
        %v1311 = vmul.f32 %v1243, %v1243
        %v1312 = vmul.f32 %v1244, %v1244
        %v1313 = vmul.f32 %v1245, %v1245
        %v1314 = vmul.f32 %v1246, %v1246
        %v1315 = vmul.f32 %v1247, %v1247
        %v1316 = vmul.f32 %v1248, %v1248
        %v1317 = vmul.f32 %v1249, %v1249
        %v1318 = vmul.f32 %v1250, %v1250
        %v1319 = vmul.f32 %v1251, %v1251
        %v1320 = vmul.f32 %v1252, %v1252
        %v1321 = vmul.f32 %v1253, %v1253
        %v1322 = vmul.f32 %v1254, %v1254
        %v1323 = vmul.f32 %v1255, %v1255
        %v1324 = vmul.f32 %v1256, %v1256
        %v1325 = vmul.f32 %v1257, %v1257
        %v1326 = vmul.f32 %v1258, %v1258
        %v1327 = vmul.f32 %v1259, %v1259
        %v1328 = vmul.f32 %v1260, %v1260
        %v1329 = vmul.f32 %v1261, %v1261
        %v1330 = vmul.f32 %v1262, %v1262
        %v1331 = vmul.f32 %v1263, %v1263
        %v1332 = vmul.f32 %v1264, %v1264
        %v1333 = vmul.f32 %v1265, %v1265
        %v1334 = vmul.f32 %v1266, %v1266
        %v1335 = vmul.f32 %v1267, %v1267
        %v1336 = vmul.f32 %v1268, %v1268
        %v1337 = vmul.f32 %v1269, %v1269
        %v1338 = vmul.f32 %v1270, %v1270
        %v1339 = vmul.f32 %v1271, %v1271
        %v1340 = vmul.f32 %v1272, %v1272
        %v1341 = vmul.f32 %v1273, %v1273
        %v1342 = vmul.f32 %v1274, %v1274
        %v1343 = vmul.f32 %v1275, %v1275
        %v1344 = vmul.f32 %v1276, %v1276
        %v1345 = vmul.f32 %v1277, %v1277
        %v1346 = vmul.f32 %v1278, %v1278
        %v1347 = vmul.f32 %v1279, %v1279
        %v1348 = vmul.f32 %v1280, %v1280
        %v1349 = vmul.f32 %v1281, %v1281
        %v1350 = vmul.f32 %v1282, %v1282
        %v1351 = vmul.f32 %v1283, %v1283
        %v1352 = vmul.f32 %v1284, %v1284
        %v1353 = vmul.f32 %v1285, %v1285
        %v1354 = vmul.f32 %v1286, %v1286
        %v1355 = vmul.f32 %v1287, %v1287
        %v1356 = vmul.f32 %v1288, %v1288
        %v1357 = vmul.f32 %v1289, %v1289
        %v1358 = vmul.f32 %v1290, %v1290
        %v1359 = vmul.f32 %v1291, %v1291
        %v1360 = vmul.f32 %v1292, %v1292
        %v1361 = vmul.f32 %v1293, %v1293
        %v1362 = vmul.f32 %v1294, %v1294
        %v1363 = vmul.f32 %v1295, %v1295
        %v1364 = vmul.f32 %v1296, %v1296
        %v1365 = vmul.f32 %v1297, %v1297
        %v1366 = vmul.f32 %v1298, %v1298
        %v1367 = vsel %vm515, %v1303, 0.0
        %1368 = vadd.xlane.f32.xlu0 %v1367
        %v1369 = vpop.xlane.xlu0 %1368
        %v1370 = vsel %vm515, %v1304, 0.0
        %1371 = vadd.xlane.f32.xlu0 %v1370
        %v1372 = vpop.xlane.xlu0 %1371
        %v1373 = vsel %vm515, %v1305, 0.0
        %1374 = vadd.xlane.f32.xlu0 %v1373
        %v1375 = vpop.xlane.xlu0 %1374
        %v1376 = vsel %vm515, %v1306, 0.0
        %1377 = vadd.xlane.f32.xlu0 %v1376
        %v1378 = vpop.xlane.xlu0 %1377
        %v1379 = vsel %vm515, %v1307, 0.0
        %1380 = vadd.xlane.f32.xlu0 %v1379
        %v1381 = vpop.xlane.xlu0 %1380
        %v1382 = vsel %vm515, %v1308, 0.0
        %1383 = vadd.xlane.f32.xlu0 %v1382
        %v1384 = vpop.xlane.xlu0 %1383
        %v1385 = vsel %vm515, %v1309, 0.0
        %1386 = vadd.xlane.f32.xlu0 %v1385
        %v1387 = vpop.xlane.xlu0 %1386
        %v1388 = vsel %vm515, %v1310, 0.0
        %1389 = vadd.xlane.f32.xlu0 %v1388
        %v1390 = vpop.xlane.xlu0 %1389
        %v1391 = vsel %vm515, %v1311, 0.0
        %1392 = vadd.xlane.f32.xlu0 %v1391
        %v1393 = vpop.xlane.xlu0 %1392
        %v1394 = vsel %vm515, %v1312, 0.0
        %1395 = vadd.xlane.f32.xlu0 %v1394
        %v1396 = vpop.xlane.xlu0 %1395
        %v1397 = vsel %vm515, %v1313, 0.0
        %1398 = vadd.xlane.f32.xlu0 %v1397
        %v1399 = vpop.xlane.xlu0 %1398
        %v1400 = vsel %vm515, %v1314, 0.0
        %1401 = vadd.xlane.f32.xlu0 %v1400
        %v1402 = vpop.xlane.xlu0 %1401
        %v1403 = vsel %vm515, %v1315, 0.0
        %1404 = vadd.xlane.f32.xlu0 %v1403
        %v1405 = vpop.xlane.xlu0 %1404
        %v1406 = vsel %vm515, %v1316, 0.0
        %1407 = vadd.xlane.f32.xlu0 %v1406
        %v1408 = vpop.xlane.xlu0 %1407
        %v1409 = vsel %vm515, %v1317, 0.0
        %1410 = vadd.xlane.f32.xlu0 %v1409
        %v1411 = vpop.xlane.xlu0 %1410
        %v1412 = vsel %vm515, %v1318, 0.0
        %1413 = vadd.xlane.f32.xlu0 %v1412
        %v1414 = vpop.xlane.xlu0 %1413
        %v1415 = vsel %vm515, %v1319, 0.0
        %1416 = vadd.xlane.f32.xlu0 %v1415
        %v1417 = vpop.xlane.xlu0 %1416
        %v1418 = vsel %vm515, %v1320, 0.0
        %1419 = vadd.xlane.f32.xlu0 %v1418
        %v1420 = vpop.xlane.xlu0 %1419
        %v1421 = vsel %vm515, %v1321, 0.0
        %1422 = vadd.xlane.f32.xlu0 %v1421
        %v1423 = vpop.xlane.xlu0 %1422
        %v1424 = vsel %vm515, %v1322, 0.0
        %1425 = vadd.xlane.f32.xlu0 %v1424
        %v1426 = vpop.xlane.xlu0 %1425
        %v1427 = vsel %vm515, %v1323, 0.0
        %1428 = vadd.xlane.f32.xlu0 %v1427
        %v1429 = vpop.xlane.xlu0 %1428
        %v1430 = vsel %vm515, %v1324, 0.0
        %1431 = vadd.xlane.f32.xlu0 %v1430
        %v1432 = vpop.xlane.xlu0 %1431
        %v1433 = vsel %vm515, %v1325, 0.0
        %1434 = vadd.xlane.f32.xlu0 %v1433
        %v1435 = vpop.xlane.xlu0 %1434
        %v1436 = vsel %vm515, %v1326, 0.0
        %1437 = vadd.xlane.f32.xlu0 %v1436
        %v1438 = vpop.xlane.xlu0 %1437
        %v1439 = vsel %vm515, %v1327, 0.0
        %1440 = vadd.xlane.f32.xlu0 %v1439
        %v1441 = vpop.xlane.xlu0 %1440
        %v1442 = vsel %vm515, %v1328, 0.0
        %1443 = vadd.xlane.f32.xlu0 %v1442
        %v1444 = vpop.xlane.xlu0 %1443
        %v1445 = vsel %vm515, %v1329, 0.0
        %1446 = vadd.xlane.f32.xlu0 %v1445
        %v1447 = vpop.xlane.xlu0 %1446
        %v1448 = vsel %vm515, %v1330, 0.0
        %1449 = vadd.xlane.f32.xlu0 %v1448
        %v1450 = vpop.xlane.xlu0 %1449
        %v1451 = vsel %vm515, %v1331, 0.0
        %1452 = vadd.xlane.f32.xlu0 %v1451
        %v1453 = vpop.xlane.xlu0 %1452
        %v1454 = vsel %vm515, %v1332, 0.0
        %1455 = vadd.xlane.f32.xlu0 %v1454
        %v1456 = vpop.xlane.xlu0 %1455
        %v1457 = vsel %vm515, %v1333, 0.0
        %1458 = vadd.xlane.f32.xlu0 %v1457
        %v1459 = vpop.xlane.xlu0 %1458
        %v1460 = vsel %vm515, %v1334, 0.0
        %1461 = vadd.xlane.f32.xlu0 %v1460
        %v1462 = vpop.xlane.xlu0 %1461
        %v1463 = vsel %vm515, %v1335, 0.0
        %1464 = vadd.xlane.f32.xlu0 %v1463
        %v1465 = vpop.xlane.xlu0 %1464
        %v1466 = vsel %vm515, %v1336, 0.0
        %1467 = vadd.xlane.f32.xlu0 %v1466
        %v1468 = vpop.xlane.xlu0 %1467
        %v1469 = vsel %vm515, %v1337, 0.0
        %1470 = vadd.xlane.f32.xlu0 %v1469
        %v1471 = vpop.xlane.xlu0 %1470
        %v1472 = vsel %vm515, %v1338, 0.0
        %1473 = vadd.xlane.f32.xlu0 %v1472
        %v1474 = vpop.xlane.xlu0 %1473
        %v1475 = vsel %vm515, %v1339, 0.0
        %1476 = vadd.xlane.f32.xlu0 %v1475
        %v1477 = vpop.xlane.xlu0 %1476
        %v1478 = vsel %vm515, %v1340, 0.0
        %1479 = vadd.xlane.f32.xlu0 %v1478
        %v1480 = vpop.xlane.xlu0 %1479
        %v1481 = vsel %vm515, %v1341, 0.0
        %1482 = vadd.xlane.f32.xlu0 %v1481
        %v1483 = vpop.xlane.xlu0 %1482
        %v1484 = vsel %vm515, %v1342, 0.0
        %1485 = vadd.xlane.f32.xlu0 %v1484
        %v1486 = vpop.xlane.xlu0 %1485
        %v1487 = vsel %vm515, %v1343, 0.0
        %1488 = vadd.xlane.f32.xlu0 %v1487
        %v1489 = vpop.xlane.xlu0 %1488
        %v1490 = vsel %vm515, %v1344, 0.0
        %1491 = vadd.xlane.f32.xlu0 %v1490
        %v1492 = vpop.xlane.xlu0 %1491
        %v1493 = vsel %vm515, %v1345, 0.0
        %1494 = vadd.xlane.f32.xlu0 %v1493
        %v1495 = vpop.xlane.xlu0 %1494
        %v1496 = vsel %vm515, %v1346, 0.0
        %1497 = vadd.xlane.f32.xlu0 %v1496
        %v1498 = vpop.xlane.xlu0 %1497
        %v1499 = vsel %vm515, %v1347, 0.0
        %1500 = vadd.xlane.f32.xlu0 %v1499
        %v1501 = vpop.xlane.xlu0 %1500
        %v1502 = vsel %vm515, %v1348, 0.0
        %1503 = vadd.xlane.f32.xlu0 %v1502
        %v1504 = vpop.xlane.xlu0 %1503
        %v1505 = vsel %vm515, %v1349, 0.0
        %1506 = vadd.xlane.f32.xlu0 %v1505
        %v1507 = vpop.xlane.xlu0 %1506
        %v1508 = vsel %vm515, %v1350, 0.0
        %1509 = vadd.xlane.f32.xlu0 %v1508
        %v1510 = vpop.xlane.xlu0 %1509
        %v1511 = vsel %vm515, %v1351, 0.0
        %1512 = vadd.xlane.f32.xlu0 %v1511
        %v1513 = vpop.xlane.xlu0 %1512
        %v1514 = vsel %vm515, %v1352, 0.0
        %1515 = vadd.xlane.f32.xlu0 %v1514
        %v1516 = vpop.xlane.xlu0 %1515
        %v1517 = vsel %vm515, %v1353, 0.0
        %1518 = vadd.xlane.f32.xlu0 %v1517
        %v1519 = vpop.xlane.xlu0 %1518
        %v1520 = vsel %vm515, %v1354, 0.0
        %1521 = vadd.xlane.f32.xlu0 %v1520
        %v1522 = vpop.xlane.xlu0 %1521
        %v1523 = vsel %vm515, %v1355, 0.0
        %1524 = vadd.xlane.f32.xlu0 %v1523
        %v1525 = vpop.xlane.xlu0 %1524
        %v1526 = vsel %vm515, %v1356, 0.0
        %1527 = vadd.xlane.f32.xlu0 %v1526
        %v1528 = vpop.xlane.xlu0 %1527
        %v1529 = vsel %vm515, %v1357, 0.0
        %1530 = vadd.xlane.f32.xlu0 %v1529
        %v1531 = vpop.xlane.xlu0 %1530
        %v1532 = vsel %vm515, %v1358, 0.0
        %1533 = vadd.xlane.f32.xlu0 %v1532
        %v1534 = vpop.xlane.xlu0 %1533
        %v1535 = vsel %vm515, %v1359, 0.0
        %1536 = vadd.xlane.f32.xlu0 %v1535
        %v1537 = vpop.xlane.xlu0 %1536
        %v1538 = vsel %vm515, %v1360, 0.0
        %1539 = vadd.xlane.f32.xlu0 %v1538
        %v1540 = vpop.xlane.xlu0 %1539
        %v1541 = vsel %vm515, %v1361, 0.0
        %1542 = vadd.xlane.f32.xlu0 %v1541
        %v1543 = vpop.xlane.xlu0 %1542
        %v1544 = vsel %vm515, %v1362, 0.0
        %1545 = vadd.xlane.f32.xlu0 %v1544
        %v1546 = vpop.xlane.xlu0 %1545
        %v1547 = vsel %vm515, %v1363, 0.0
        %1548 = vadd.xlane.f32.xlu0 %v1547
        %v1549 = vpop.xlane.xlu0 %1548
        %v1550 = vsel %vm515, %v1364, 0.0
        %1551 = vadd.xlane.f32.xlu0 %v1550
        %v1552 = vpop.xlane.xlu0 %1551
        %v1553 = vsel %vm515, %v1365, 0.0
        %1554 = vadd.xlane.f32.xlu0 %v1553
        %v1555 = vpop.xlane.xlu0 %1554
        %v1556 = vsel %vm515, %v1366, 0.0
        %1557 = vadd.xlane.f32.xlu0 %v1556
        %v1558 = vpop.xlane.xlu0 %1557
        %v1560 = vsel %vm515, %v1235, 0
        %v1563 = vsel %vm515, %v1236, 0
        %v1566 = vsel %vm515, %v1237, 0
        %v1569 = vsel %vm515, %v1238, 0
        %v1572 = vsel %vm515, %v1239, 0
        %v1575 = vsel %vm515, %v1240, 0
        %v1578 = vsel %vm515, %v1241, 0
        %v1581 = vsel %vm515, %v1242, 0
        %v1584 = vsel %vm515, %v1243, 0
        %v1587 = vsel %vm515, %v1244, 0
        %v1590 = vsel %vm515, %v1245, 0
        %v1593 = vsel %vm515, %v1246, 0
        %v1596 = vsel %vm515, %v1247, 0
        %v1599 = vsel %vm515, %v1248, 0
        %v1602 = vsel %vm515, %v1249, 0
        %v1605 = vsel %vm515, %v1250, 0
        %v1608 = vsel %vm515, %v1251, 0
        %v1611 = vsel %vm515, %v1252, 0
        %v1614 = vsel %vm515, %v1253, 0
        %v1617 = vsel %vm515, %v1254, 0
        %v1620 = vsel %vm515, %v1255, 0
        %v1623 = vsel %vm515, %v1256, 0
        %v1626 = vsel %vm515, %v1257, 0
        %v1629 = vsel %vm515, %v1258, 0
        %v1632 = vsel %vm515, %v1259, 0
        %v1635 = vsel %vm515, %v1260, 0
        %v1638 = vsel %vm515, %v1261, 0
        %v1641 = vsel %vm515, %v1262, 0
        %v1644 = vsel %vm515, %v1263, 0
        %v1647 = vsel %vm515, %v1264, 0
        %v1650 = vsel %vm515, %v1265, 0
        %v1653 = vsel %vm515, %v1266, 0
        %v1656 = vsel %vm515, %v1267, 0
        %v1659 = vsel %vm515, %v1268, 0
        %v1662 = vsel %vm515, %v1269, 0
        %v1665 = vsel %vm515, %v1270, 0
        %v1668 = vsel %vm515, %v1271, 0
        %v1671 = vsel %vm515, %v1272, 0
        %v1674 = vsel %vm515, %v1273, 0
        %v1677 = vsel %vm515, %v1274, 0
        %v1680 = vsel %vm515, %v1275, 0
        %v1683 = vsel %vm515, %v1276, 0
        %v1686 = vsel %vm515, %v1277, 0
        %v1689 = vsel %vm515, %v1278, 0
        %v1692 = vsel %vm515, %v1279, 0
        %v1695 = vsel %vm515, %v1280, 0
        %v1698 = vsel %vm515, %v1281, 0
        %v1701 = vsel %vm515, %v1282, 0
        %v1704 = vsel %vm515, %v1283, 0
        %v1707 = vsel %vm515, %v1284, 0
        %v1710 = vsel %vm515, %v1285, 0
        %v1713 = vsel %vm515, %v1286, 0
        %v1716 = vsel %vm515, %v1287, 0
        %v1719 = vsel %vm515, %v1288, 0
        %v1722 = vsel %vm515, %v1289, 0
        %v1725 = vsel %vm515, %v1290, 0
        %v1728 = vsel %vm515, %v1291, 0
        %v1731 = vsel %vm515, %v1292, 0
        %v1734 = vsel %vm515, %v1293, 0
        %v1737 = vsel %vm515, %v1294, 0
        %v1740 = vsel %vm515, %v1295, 0
        %v1743 = vsel %vm515, %v1296, 0
        %v1746 = vsel %vm515, %v1297, 0
        %v1749 = vsel %vm515, %v1298, 0
        %v1752 = vsel %vm515, %v1299, 0
        %v1755 = vsel %vm515, %v1300, 0
        %v1758 = vsel %vm515, %v1301, 0
        %v1761 = vsel %vm515, %v1302, 0
        %1763 = vmatprep.subr.mxu0 0.0
        %1764 = vmatpush1.xpose.msra.mxu0 %v1752
        %1765 = vmatprep.subr.mxu0 0.0
        %1766 = vmatpush1.xpose.msra.mxu0 %v1755
        %1767 = vmatprep.subr.mxu0 0.0
        %1768 = vmatpush1.xpose.msra.mxu0 %v1758
        %1769 = vmatprep.subr.mxu0 0.0
        %1770 = vmatpush1.xpose.msra.mxu0 %v1761
        %1771 = vmatprep.subr.mxu0 0.0
        %1772 = vmatpush1.xpose.msra.mxu0 0.0
        %1773 = vmatprep.subr.mxu0 0.0
        %1774 = vmatpush1.xpose.msra.mxu0 0.0
        %1775 = vmatprep.subr.mxu0 0.0
        %1776 = vmatpush1.xpose.msra.mxu0 0.0
        %1777 = vmatprep.subr.mxu0 0.0
        %1778 = vmatpush1.xpose.msra.mxu0 0.0
        %1779 = vmatprep.subr.mxu0 0.0
        %1780 = vmatpush1.xpose.msra.mxu0 0.0
        %1781 = vmatprep.subr.mxu0 0.0
        %1782 = vmatpush1.xpose.msra.mxu0 0.0
        %1783 = vmatprep.subr.mxu0 0.0
        %1784 = vmatpush1.xpose.msra.mxu0 0.0
        %1785 = vmatprep.subr.mxu0 0.0
        %1786 = vmatpush1.xpose.msra.mxu0 0.0
        %1787 = vmatprep.subr.mxu0 0.0
        %1788 = vmatpush1.xpose.msra.mxu0 0.0
        %1789 = vmatprep.subr.mxu0 0.0
        %1790 = vmatpush1.xpose.msra.mxu0 0.0
        %1791 = vmatprep.subr.mxu0 0.0
        %1792 = vmatpush1.xpose.msra.mxu0 0.0
        %1793 = vmatprep.subr.mxu0 0.0
        %1794 = vmatpush1.xpose.msra.mxu0 0.0
        %1795 = vmatprep.subr.mxu0 0.0
        %1796 = vmatpush1.xpose.msra.mxu0 0.0
        %1797 = vmatprep.subr.mxu0 0.0
        %1798 = vmatpush1.xpose.msra.mxu0 0.0
        %1799 = vmatprep.subr.mxu0 0.0
        %1800 = vmatpush1.xpose.msra.mxu0 0.0
        %1801 = vmatprep.subr.mxu0 0.0
        %1802 = vmatpush1.xpose.msra.mxu0 0.0
        %1803 = vmatprep.subr.mxu0 0.0
        %1804 = vmatpush1.xpose.msra.mxu0 0.0
        %1805 = vmatprep.subr.mxu0 0.0
        %1806 = vmatpush1.xpose.msra.mxu0 0.0
        %1807 = vmatprep.subr.mxu0 0.0
        %1808 = vmatpush1.xpose.msra.mxu0 0.0
        %1809 = vmatprep.subr.mxu0 0.0
        %1810 = vmatpush1.xpose.msra.mxu0 0.0
        %1811 = vmatprep.subr.mxu0 0.0
        %1812 = vmatpush1.xpose.msra.mxu0 0.0
        %1813 = vmatprep.subr.mxu0 0.0
        %1814 = vmatpush1.xpose.msra.mxu0 0.0
        %1815 = vmatprep.subr.mxu0 0.0
        %1816 = vmatpush1.xpose.msra.mxu0 0.0
        %1817 = vmatprep.subr.mxu0 0.0
        %1818 = vmatpush1.xpose.msra.mxu0 0.0
        %1819 = vmatprep.subr.mxu0 0.0
        %1820 = vmatpush1.xpose.msra.mxu0 0.0
        %1821 = vmatprep.subr.mxu0 0.0
        %1822 = vmatpush1.xpose.msra.mxu0 0.0
        %1823 = vmatprep.subr.mxu0 0.0
        %1824 = vmatpush1.xpose.msra.mxu0 0.0
        %1825 = vmatprep.subr.mxu0 0.0
        %1826 = vmatpush1.xpose.msra.mxu0 0.0
        %1827 = vmatprep.mubr.f32.mxu0 0.0
        %1828 = vmatmul.mubr.f32.gmra.mrb[0].mxu0 %v1560
        %v1829 = vpop.f32.mrb[0].mxu0
        %v1830 = vadd.f32 0.0, %v1829
        %v1831 = vpop.f32.mrb[0].mxu0
        %1832 = vmatprep.mubr.f32.mxu0 0.0
        %1833 = vmatmul.mubr.f32.gmra.mrb[0].mxu0 %v1563
        %v1834 = vpop.f32.mrb[0].mxu0
        %v1835 = vadd.f32 0.0, %v1834
        %v1836 = vpop.f32.mrb[0].mxu0
        %1837 = vmatprep.mubr.f32.mxu0 0.0
        %1838 = vmatmul.mubr.f32.gmra.mrb[0].mxu0 %v1566
        %v1839 = vpop.f32.mrb[0].mxu0
        %v1840 = vadd.f32 0.0, %v1839
        %v1841 = vpop.f32.mrb[0].mxu0
        %1842 = vmatprep.mubr.f32.mxu0 0.0
        %1843 = vmatmul.mubr.f32.gmra.mrb[0].mxu0 %v1569
        %v1844 = vpop.f32.mrb[0].mxu0
        %v1845 = vadd.f32 0.0, %v1844
        %v1846 = vpop.f32.mrb[0].mxu0
        %1847 = vmatprep.mubr.f32.mxu0 0.0
        %1848 = vmatmul.mubr.f32.gmra.mrb[0].mxu0 %v1572
        %v1849 = vpop.f32.mrb[0].mxu0
        %v1850 = vadd.f32 0.0, %v1849
        %v1851 = vpop.f32.mrb[0].mxu0
        %1852 = vmatprep.mubr.f32.mxu0 0.0
        %1853 = vmatmul.mubr.f32.gmra.mrb[0].mxu0 %v1575
        %v1854 = vpop.f32.mrb[0].mxu0
        %v1855 = vadd.f32 0.0, %v1854
        %v1856 = vpop.f32.mrb[0].mxu0
        %1857 = vmatprep.mubr.f32.mxu0 0.0
        %1858 = vmatmul.mubr.f32.gmra.mrb[0].mxu0 %v1578
        %v1859 = vpop.f32.mrb[0].mxu0
        %v1860 = vadd.f32 0.0, %v1859
        %v1861 = vpop.f32.mrb[0].mxu0
        %1862 = vmatprep.mubr.f32.mxu0 0.0
        %1863 = vmatmul.mubr.f32.gmra.mrb[0].mxu0 %v1581
        %v1864 = vpop.f32.mrb[0].mxu0
        %v1865 = vadd.f32 0.0, %v1864
        %v1866 = vpop.f32.mrb[0].mxu0
        %1867 = vmatprep.mubr.f32.mxu0 0.0
        %1868 = vmatmul.mubr.f32.gmra.mrb[0].mxu0 %v1584
        %v1869 = vpop.f32.mrb[0].mxu0
        %v1870 = vadd.f32 0.0, %v1869
        %v1871 = vpop.f32.mrb[0].mxu0
        %1872 = vmatprep.mubr.f32.mxu0 0.0
        %1873 = vmatmul.mubr.f32.gmra.mrb[0].mxu0 %v1587
        %v1874 = vpop.f32.mrb[0].mxu0
        %v1875 = vadd.f32 0.0, %v1874
        %v1876 = vpop.f32.mrb[0].mxu0
        %1877 = vmatprep.mubr.f32.mxu0 0.0
        %1878 = vmatmul.mubr.f32.gmra.mrb[0].mxu0 %v1590
        %v1879 = vpop.f32.mrb[0].mxu0
        %v1880 = vadd.f32 0.0, %v1879
        %v1881 = vpop.f32.mrb[0].mxu0
        %1882 = vmatprep.mubr.f32.mxu0 0.0
        %1883 = vmatmul.mubr.f32.gmra.mrb[0].mxu0 %v1593
        %v1884 = vpop.f32.mrb[0].mxu0
        %v1885 = vadd.f32 0.0, %v1884
        %v1886 = vpop.f32.mrb[0].mxu0
        %1887 = vmatprep.mubr.f32.mxu0 0.0
        %1888 = vmatmul.mubr.f32.gmra.mrb[0].mxu0 %v1596
        %v1889 = vpop.f32.mrb[0].mxu0
        %v1890 = vadd.f32 0.0, %v1889
        %v1891 = vpop.f32.mrb[0].mxu0
        %1892 = vmatprep.mubr.f32.mxu0 0.0
        %1893 = vmatmul.mubr.f32.gmra.mrb[0].mxu0 %v1599
        %v1894 = vpop.f32.mrb[0].mxu0
        %v1895 = vadd.f32 0.0, %v1894
        %v1896 = vpop.f32.mrb[0].mxu0
        %1897 = vmatprep.mubr.f32.mxu0 0.0
        %1898 = vmatmul.mubr.f32.gmra.mrb[0].mxu0 %v1602
        %v1899 = vpop.f32.mrb[0].mxu0
        %v1900 = vadd.f32 0.0, %v1899
        %v1901 = vpop.f32.mrb[0].mxu0
        %1902 = vmatprep.mubr.f32.mxu0 0.0
        %1903 = vmatmul.mubr.f32.gmra.mrb[0].mxu0 %v1605
        %v1904 = vpop.f32.mrb[0].mxu0
        %v1905 = vadd.f32 0.0, %v1904
        %v1906 = vpop.f32.mrb[0].mxu0
        %1907 = vmatprep.mubr.f32.mxu0 0.0
        %1908 = vmatmul.mubr.f32.gmra.mrb[0].mxu0 %v1608
        %v1909 = vpop.f32.mrb[0].mxu0
        %v1910 = vadd.f32 0.0, %v1909
        %v1911 = vpop.f32.mrb[0].mxu0
        %1912 = vmatprep.mubr.f32.mxu0 0.0
        %1913 = vmatmul.mubr.f32.gmra.mrb[0].mxu0 %v1611
        %v1914 = vpop.f32.mrb[0].mxu0
        %v1915 = vadd.f32 0.0, %v1914
        %v1916 = vpop.f32.mrb[0].mxu0
        %1917 = vmatprep.mubr.f32.mxu0 0.0
        %1918 = vmatmul.mubr.f32.gmra.mrb[0].mxu0 %v1614
        %v1919 = vpop.f32.mrb[0].mxu0
        %v1920 = vadd.f32 0.0, %v1919
        %v1921 = vpop.f32.mrb[0].mxu0
        %1922 = vmatprep.mubr.f32.mxu0 0.0
        %1923 = vmatmul.mubr.f32.gmra.mrb[0].mxu0 %v1617
        %v1924 = vpop.f32.mrb[0].mxu0
        %v1925 = vadd.f32 0.0, %v1924
        %v1926 = vpop.f32.mrb[0].mxu0
        %1927 = vmatprep.mubr.f32.mxu0 0.0
        %1928 = vmatmul.mubr.f32.gmra.mrb[0].mxu0 %v1620
        %v1929 = vpop.f32.mrb[0].mxu0
        %v1930 = vadd.f32 0.0, %v1929
        %v1931 = vpop.f32.mrb[0].mxu0
        %1932 = vmatprep.mubr.f32.mxu0 0.0
        %1933 = vmatmul.mubr.f32.gmra.mrb[0].mxu0 %v1623
        %v1934 = vpop.f32.mrb[0].mxu0
        %v1935 = vadd.f32 0.0, %v1934
        %v1936 = vpop.f32.mrb[0].mxu0
        %1937 = vmatprep.mubr.f32.mxu0 0.0
        %1938 = vmatmul.mubr.f32.gmra.mrb[0].mxu0 %v1626
        %v1939 = vpop.f32.mrb[0].mxu0
        %v1940 = vadd.f32 0.0, %v1939
        %v1941 = vpop.f32.mrb[0].mxu0
        %1942 = vmatprep.mubr.f32.mxu0 0.0
        %1943 = vmatmul.mubr.f32.gmra.mrb[0].mxu0 %v1629
        %v1944 = vpop.f32.mrb[0].mxu0
        %v1945 = vadd.f32 0.0, %v1944
        %v1946 = vpop.f32.mrb[0].mxu0
        %1947 = vmatprep.mubr.f32.mxu0 0.0
        %1948 = vmatmul.mubr.f32.gmra.mrb[0].mxu0 %v1632
        %v1949 = vpop.f32.mrb[0].mxu0
        %v1950 = vadd.f32 0.0, %v1949
        %v1951 = vpop.f32.mrb[0].mxu0
        %1952 = vmatprep.mubr.f32.mxu0 0.0
        %1953 = vmatmul.mubr.f32.gmra.mrb[0].mxu0 %v1635
        %v1954 = vpop.f32.mrb[0].mxu0
        %v1955 = vadd.f32 0.0, %v1954
        %v1956 = vpop.f32.mrb[0].mxu0
        %1957 = vmatprep.mubr.f32.mxu0 0.0
        %1958 = vmatmul.mubr.f32.gmra.mrb[0].mxu0 %v1638
        %v1959 = vpop.f32.mrb[0].mxu0
        %v1960 = vadd.f32 0.0, %v1959
        %v1961 = vpop.f32.mrb[0].mxu0
        %1962 = vmatprep.mubr.f32.mxu0 0.0
        %1963 = vmatmul.mubr.f32.gmra.mrb[0].mxu0 %v1641
        %v1964 = vpop.f32.mrb[0].mxu0
        %v1965 = vadd.f32 0.0, %v1964
        %v1966 = vpop.f32.mrb[0].mxu0
        %1967 = vmatprep.mubr.f32.mxu0 0.0
        %1968 = vmatmul.mubr.f32.gmra.mrb[0].mxu0 %v1644
        %v1969 = vpop.f32.mrb[0].mxu0
        %v1970 = vadd.f32 0.0, %v1969
        %v1971 = vpop.f32.mrb[0].mxu0
        %1972 = vmatprep.mubr.f32.mxu0 0.0
        %1973 = vmatmul.mubr.f32.gmra.mrb[0].mxu0 %v1647
        %v1974 = vpop.f32.mrb[0].mxu0
        %v1975 = vadd.f32 0.0, %v1974
        %v1976 = vpop.f32.mrb[0].mxu0
        %1977 = vmatprep.mubr.f32.mxu0 0.0
        %1978 = vmatmul.mubr.f32.gmra.mrb[0].mxu0 %v1650
        %v1979 = vpop.f32.mrb[0].mxu0
        %v1980 = vadd.f32 0.0, %v1979
        %v1981 = vpop.f32.mrb[0].mxu0
        %1982 = vmatprep.mubr.f32.mxu0 0.0
        %1983 = vmatmul.mubr.f32.gmra.mrb[0].mxu0 %v1653
        %v1984 = vpop.f32.mrb[0].mxu0
        %v1985 = vadd.f32 0.0, %v1984
        %v1986 = vpop.f32.mrb[0].mxu0
        %1987 = vmatprep.mubr.f32.mxu0 0.0
        %1988 = vmatmul.mubr.f32.gmra.mrb[0].mxu0 %v1656
        %v1989 = vpop.f32.mrb[0].mxu0
        %v1990 = vadd.f32 0.0, %v1989
        %v1991 = vpop.f32.mrb[0].mxu0
        %1992 = vmatprep.mubr.f32.mxu0 0.0
        %1993 = vmatmul.mubr.f32.gmra.mrb[0].mxu0 %v1659
        %v1994 = vpop.f32.mrb[0].mxu0
        %v1995 = vadd.f32 0.0, %v1994
        %v1996 = vpop.f32.mrb[0].mxu0
        %1997 = vmatprep.mubr.f32.mxu0 0.0
        %1998 = vmatmul.mubr.f32.gmra.mrb[0].mxu0 %v1662
        %v1999 = vpop.f32.mrb[0].mxu0
        %v2000 = vadd.f32 0.0, %v1999
        %v2001 = vpop.f32.mrb[0].mxu0
        %2002 = vmatprep.mubr.f32.mxu0 0.0
        %2003 = vmatmul.mubr.f32.gmra.mrb[0].mxu0 %v1665
        %v2004 = vpop.f32.mrb[0].mxu0
        %v2005 = vadd.f32 0.0, %v2004
        %v2006 = vpop.f32.mrb[0].mxu0
        %2007 = vmatprep.mubr.f32.mxu0 0.0
        %2008 = vmatmul.mubr.f32.gmra.mrb[0].mxu0 %v1668
        %v2009 = vpop.f32.mrb[0].mxu0
        %v2010 = vadd.f32 0.0, %v2009
        %v2011 = vpop.f32.mrb[0].mxu0
        %2012 = vmatprep.mubr.f32.mxu0 0.0
        %2013 = vmatmul.mubr.f32.gmra.mrb[0].mxu0 %v1671
        %v2014 = vpop.f32.mrb[0].mxu0
        %v2015 = vadd.f32 0.0, %v2014
        %v2016 = vpop.f32.mrb[0].mxu0
        %2017 = vmatprep.mubr.f32.mxu0 0.0
        %2018 = vmatmul.mubr.f32.gmra.mrb[0].mxu0 %v1674
        %v2019 = vpop.f32.mrb[0].mxu0
        %v2020 = vadd.f32 0.0, %v2019
        %v2021 = vpop.f32.mrb[0].mxu0
        %2022 = vmatprep.mubr.f32.mxu0 0.0
        %2023 = vmatmul.mubr.f32.gmra.mrb[0].mxu0 %v1677
        %v2024 = vpop.f32.mrb[0].mxu0
        %v2025 = vadd.f32 0.0, %v2024
        %v2026 = vpop.f32.mrb[0].mxu0
        %2027 = vmatprep.mubr.f32.mxu0 0.0
        %2028 = vmatmul.mubr.f32.gmra.mrb[0].mxu0 %v1680
        %v2029 = vpop.f32.mrb[0].mxu0
        %v2030 = vadd.f32 0.0, %v2029
        %v2031 = vpop.f32.mrb[0].mxu0
        %2032 = vmatprep.mubr.f32.mxu0 0.0
        %2033 = vmatmul.mubr.f32.gmra.mrb[0].mxu0 %v1683
        %v2034 = vpop.f32.mrb[0].mxu0
        %v2035 = vadd.f32 0.0, %v2034
        %v2036 = vpop.f32.mrb[0].mxu0
        %2037 = vmatprep.mubr.f32.mxu0 0.0
        %2038 = vmatmul.mubr.f32.gmra.mrb[0].mxu0 %v1686
        %v2039 = vpop.f32.mrb[0].mxu0
        %v2040 = vadd.f32 0.0, %v2039
        %v2041 = vpop.f32.mrb[0].mxu0
        %2042 = vmatprep.mubr.f32.mxu0 0.0
        %2043 = vmatmul.mubr.f32.gmra.mrb[0].mxu0 %v1689
        %v2044 = vpop.f32.mrb[0].mxu0
        %v2045 = vadd.f32 0.0, %v2044
        %v2046 = vpop.f32.mrb[0].mxu0
        %2047 = vmatprep.mubr.f32.mxu0 0.0
        %2048 = vmatmul.mubr.f32.gmra.mrb[0].mxu0 %v1692
        %v2049 = vpop.f32.mrb[0].mxu0
        %v2050 = vadd.f32 0.0, %v2049
        %v2051 = vpop.f32.mrb[0].mxu0
        %2052 = vmatprep.mubr.f32.mxu0 0.0
        %2053 = vmatmul.mubr.f32.gmra.mrb[0].mxu0 %v1695
        %v2054 = vpop.f32.mrb[0].mxu0
        %v2055 = vadd.f32 0.0, %v2054
        %v2056 = vpop.f32.mrb[0].mxu0
        %2057 = vmatprep.mubr.f32.mxu0 0.0
        %2058 = vmatmul.mubr.f32.gmra.mrb[0].mxu0 %v1698
        %v2059 = vpop.f32.mrb[0].mxu0
        %v2060 = vadd.f32 0.0, %v2059
        %v2061 = vpop.f32.mrb[0].mxu0
        %2062 = vmatprep.mubr.f32.mxu0 0.0
        %2063 = vmatmul.mubr.f32.gmra.mrb[0].mxu0 %v1701
        %v2064 = vpop.f32.mrb[0].mxu0
        %v2065 = vadd.f32 0.0, %v2064
        %v2066 = vpop.f32.mrb[0].mxu0
        %2067 = vmatprep.mubr.f32.mxu0 0.0
        %2068 = vmatmul.mubr.f32.gmra.mrb[0].mxu0 %v1704
        %v2069 = vpop.f32.mrb[0].mxu0
        %v2070 = vadd.f32 0.0, %v2069
        %v2071 = vpop.f32.mrb[0].mxu0
        %2072 = vmatprep.mubr.f32.mxu0 0.0
        %2073 = vmatmul.mubr.f32.gmra.mrb[0].mxu0 %v1707
        %v2074 = vpop.f32.mrb[0].mxu0
        %v2075 = vadd.f32 0.0, %v2074
        %v2076 = vpop.f32.mrb[0].mxu0
        %2077 = vmatprep.mubr.f32.mxu0 0.0
        %2078 = vmatmul.mubr.f32.gmra.mrb[0].mxu0 %v1710
        %v2079 = vpop.f32.mrb[0].mxu0
        %v2080 = vadd.f32 0.0, %v2079
        %v2081 = vpop.f32.mrb[0].mxu0
        %2082 = vmatprep.mubr.f32.mxu0 0.0
        %2083 = vmatmul.mubr.f32.gmra.mrb[0].mxu0 %v1713
        %v2084 = vpop.f32.mrb[0].mxu0
        %v2085 = vadd.f32 0.0, %v2084
        %v2086 = vpop.f32.mrb[0].mxu0
        %2087 = vmatprep.mubr.f32.mxu0 0.0
        %2088 = vmatmul.mubr.f32.gmra.mrb[0].mxu0 %v1716
        %v2089 = vpop.f32.mrb[0].mxu0
        %v2090 = vadd.f32 0.0, %v2089
        %v2091 = vpop.f32.mrb[0].mxu0
        %2092 = vmatprep.mubr.f32.mxu0 0.0
        %2093 = vmatmul.mubr.f32.gmra.mrb[0].mxu0 %v1719
        %v2094 = vpop.f32.mrb[0].mxu0
        %v2095 = vadd.f32 0.0, %v2094
        %v2096 = vpop.f32.mrb[0].mxu0
        %2097 = vmatprep.mubr.f32.mxu0 0.0
        %2098 = vmatmul.mubr.f32.gmra.mrb[0].mxu0 %v1722
        %v2099 = vpop.f32.mrb[0].mxu0
        %v2100 = vadd.f32 0.0, %v2099
        %v2101 = vpop.f32.mrb[0].mxu0
        %2102 = vmatprep.mubr.f32.mxu0 0.0
        %2103 = vmatmul.mubr.f32.gmra.mrb[0].mxu0 %v1725
        %v2104 = vpop.f32.mrb[0].mxu0
        %v2105 = vadd.f32 0.0, %v2104
        %v2106 = vpop.f32.mrb[0].mxu0
        %2107 = vmatprep.mubr.f32.mxu0 0.0
        %2108 = vmatmul.mubr.f32.gmra.mrb[0].mxu0 %v1728
        %v2109 = vpop.f32.mrb[0].mxu0
        %v2110 = vadd.f32 0.0, %v2109
        %v2111 = vpop.f32.mrb[0].mxu0
        %2112 = vmatprep.mubr.f32.mxu0 0.0
        %2113 = vmatmul.mubr.f32.gmra.mrb[0].mxu0 %v1731
        %v2114 = vpop.f32.mrb[0].mxu0
        %v2115 = vadd.f32 0.0, %v2114
        %v2116 = vpop.f32.mrb[0].mxu0
        %2117 = vmatprep.mubr.f32.mxu0 0.0
        %2118 = vmatmul.mubr.f32.gmra.mrb[0].mxu0 %v1734
        %v2119 = vpop.f32.mrb[0].mxu0
        %v2120 = vadd.f32 0.0, %v2119
        %v2121 = vpop.f32.mrb[0].mxu0
        %2122 = vmatprep.mubr.f32.mxu0 0.0
        %2123 = vmatmul.mubr.f32.gmra.mrb[0].mxu0 %v1737
        %v2124 = vpop.f32.mrb[0].mxu0
        %v2125 = vadd.f32 0.0, %v2124
        %v2126 = vpop.f32.mrb[0].mxu0
        %2127 = vmatprep.mubr.f32.mxu0 0.0
        %2128 = vmatmul.mubr.f32.gmra.mrb[0].mxu0 %v1740
        %v2129 = vpop.f32.mrb[0].mxu0
        %v2130 = vadd.f32 0.0, %v2129
        %v2131 = vpop.f32.mrb[0].mxu0
        %2132 = vmatprep.mubr.f32.mxu0 0.0
        %2133 = vmatmul.mubr.f32.gmra.mrb[0].mxu0 %v1743
        %v2134 = vpop.f32.mrb[0].mxu0
        %v2135 = vadd.f32 0.0, %v2134
        %v2136 = vpop.f32.mrb[0].mxu0
        %2137 = vmatprep.mubr.f32.mxu0 0.0
        %2138 = vmatmul.mubr.f32.gmra.mrb[0].mxu0 %v1746
        %v2139 = vpop.f32.mrb[0].mxu0
        %v2140 = vadd.f32 0.0, %v2139
        %v2141 = vpop.f32.mrb[0].mxu0
        %2142 = vmatprep.mubr.f32.mxu0 0.0
        %2143 = vmatmul.mubr.f32.gmra.mrb[0].mxu0 %v1749
        %v2144 = vpop.f32.mrb[0].mxu0
        %v2145 = vadd.f32 0.0, %v2144
        %v2146 = vpop.f32.mrb[0].mxu0
        %2147 = vdwg.mxu0
        %v2148 = vld [vmem:[%s5] sm:$0x1]
        %v2149 = vmul.f32 %v1830, 2.0
        %v2150 = vmul.f32 %v1835, 2.0
        %v2151 = vmul.f32 %v1840, 2.0
        %v2152 = vmul.f32 %v1845, 2.0
        %v2153 = vmul.f32 %v1850, 2.0
        %v2154 = vmul.f32 %v1855, 2.0
        %v2155 = vmul.f32 %v1860, 2.0
        %v2156 = vmul.f32 %v1865, 2.0
        %v2157 = vmul.f32 %v1870, 2.0
        %v2158 = vmul.f32 %v1875, 2.0
        %v2159 = vmul.f32 %v1880, 2.0
        %v2160 = vmul.f32 %v1885, 2.0
        %v2161 = vmul.f32 %v1890, 2.0
        %v2162 = vmul.f32 %v1895, 2.0
        %v2163 = vmul.f32 %v1900, 2.0
        %v2164 = vmul.f32 %v1905, 2.0
        %v2165 = vmul.f32 %v1910, 2.0
        %v2166 = vmul.f32 %v1915, 2.0
        %v2167 = vmul.f32 %v1920, 2.0
        %v2168 = vmul.f32 %v1925, 2.0
        %v2169 = vmul.f32 %v1930, 2.0
        %v2170 = vmul.f32 %v1935, 2.0
        %v2171 = vmul.f32 %v1940, 2.0
        %v2172 = vmul.f32 %v1945, 2.0
        %v2173 = vmul.f32 %v1950, 2.0
        %v2174 = vmul.f32 %v1955, 2.0
        %v2175 = vmul.f32 %v1960, 2.0
        %v2176 = vmul.f32 %v1965, 2.0
        %v2177 = vmul.f32 %v1970, 2.0
        %v2178 = vmul.f32 %v1975, 2.0
        %v2179 = vmul.f32 %v1980, 2.0
        %v2180 = vmul.f32 %v1985, 2.0
        %v2181 = vmul.f32 %v1990, 2.0
        %v2182 = vmul.f32 %v1995, 2.0
        %v2183 = vmul.f32 %v2000, 2.0
        %v2184 = vmul.f32 %v2005, 2.0
        %v2185 = vmul.f32 %v2010, 2.0
        %v2186 = vmul.f32 %v2015, 2.0
        %v2187 = vmul.f32 %v2020, 2.0
        %v2188 = vmul.f32 %v2025, 2.0
        %v2189 = vmul.f32 %v2030, 2.0
        %v2190 = vmul.f32 %v2035, 2.0
        %v2191 = vmul.f32 %v2040, 2.0
        %v2192 = vmul.f32 %v2045, 2.0
        %v2193 = vmul.f32 %v2050, 2.0
        %v2194 = vmul.f32 %v2055, 2.0
        %v2195 = vmul.f32 %v2060, 2.0
        %v2196 = vmul.f32 %v2065, 2.0
        %v2197 = vmul.f32 %v2070, 2.0
        %v2198 = vmul.f32 %v2075, 2.0
        %v2199 = vmul.f32 %v2080, 2.0
        %v2200 = vmul.f32 %v2085, 2.0
        %v2201 = vmul.f32 %v2090, 2.0
        %v2202 = vmul.f32 %v2095, 2.0
        %v2203 = vmul.f32 %v2100, 2.0
        %v2204 = vmul.f32 %v2105, 2.0
        %v2205 = vmul.f32 %v2110, 2.0
        %v2206 = vmul.f32 %v2115, 2.0
        %v2207 = vmul.f32 %v2120, 2.0
        %v2208 = vmul.f32 %v2125, 2.0
        %v2209 = vmul.f32 %v2130, 2.0
        %v2210 = vmul.f32 %v2135, 2.0
        %v2211 = vmul.f32 %v2140, 2.0
        %v2212 = vmul.f32 %v2145, 2.0
        %v2213 = vsub.f32 %v1369, %v2149
        %v2214 = vsub.f32 %v1372, %v2150
        %v2215 = vsub.f32 %v1375, %v2151
        %v2216 = vsub.f32 %v1378, %v2152
        %v2217 = vsub.f32 %v1381, %v2153
        %v2218 = vsub.f32 %v1384, %v2154
        %v2219 = vsub.f32 %v1387, %v2155
        %v2220 = vsub.f32 %v1390, %v2156
        %v2221 = vsub.f32 %v1393, %v2157
        %v2222 = vsub.f32 %v1396, %v2158
        %v2223 = vsub.f32 %v1399, %v2159
        %v2224 = vsub.f32 %v1402, %v2160
        %v2225 = vsub.f32 %v1405, %v2161
        %v2226 = vsub.f32 %v1408, %v2162
        %v2227 = vsub.f32 %v1411, %v2163
        %v2228 = vsub.f32 %v1414, %v2164
        %v2229 = vsub.f32 %v1417, %v2165
        %v2230 = vsub.f32 %v1420, %v2166
        %v2231 = vsub.f32 %v1423, %v2167
        %v2232 = vsub.f32 %v1426, %v2168
        %v2233 = vsub.f32 %v1429, %v2169
        %v2234 = vsub.f32 %v1432, %v2170
        %v2235 = vsub.f32 %v1435, %v2171
        %v2236 = vsub.f32 %v1438, %v2172
        %v2237 = vsub.f32 %v1441, %v2173
        %v2238 = vsub.f32 %v1444, %v2174
        %v2239 = vsub.f32 %v1447, %v2175
        %v2240 = vsub.f32 %v1450, %v2176
        %v2241 = vsub.f32 %v1453, %v2177
        %v2242 = vsub.f32 %v1456, %v2178
        %v2243 = vsub.f32 %v1459, %v2179
        %v2244 = vsub.f32 %v1462, %v2180
        %v2245 = vsub.f32 %v1465, %v2181
        %v2246 = vsub.f32 %v1468, %v2182
        %v2247 = vsub.f32 %v1471, %v2183
        %v2248 = vsub.f32 %v1474, %v2184
        %v2249 = vsub.f32 %v1477, %v2185
        %v2250 = vsub.f32 %v1480, %v2186
        %v2251 = vsub.f32 %v1483, %v2187
        %v2252 = vsub.f32 %v1486, %v2188
        %v2253 = vsub.f32 %v1489, %v2189
        %v2254 = vsub.f32 %v1492, %v2190
        %v2255 = vsub.f32 %v1495, %v2191
        %v2256 = vsub.f32 %v1498, %v2192
        %v2257 = vsub.f32 %v1501, %v2193
        %v2258 = vsub.f32 %v1504, %v2194
        %v2259 = vsub.f32 %v1507, %v2195
        %v2260 = vsub.f32 %v1510, %v2196
        %v2261 = vsub.f32 %v1513, %v2197
        %v2262 = vsub.f32 %v1516, %v2198
        %v2263 = vsub.f32 %v1519, %v2199
        %v2264 = vsub.f32 %v1522, %v2200
        %v2265 = vsub.f32 %v1525, %v2201
        %v2266 = vsub.f32 %v1528, %v2202
        %v2267 = vsub.f32 %v1531, %v2203
        %v2268 = vsub.f32 %v1534, %v2204
        %v2269 = vsub.f32 %v1537, %v2205
        %v2270 = vsub.f32 %v1540, %v2206
        %v2271 = vsub.f32 %v1543, %v2207
        %v2272 = vsub.f32 %v1546, %v2208
        %v2273 = vsub.f32 %v1549, %v2209
        %v2274 = vsub.f32 %v1552, %v2210
        %v2275 = vsub.f32 %v1555, %v2211
        %v2276 = vsub.f32 %v1558, %v2212
        %v2277 = vld [vmem:[%s6] sm:$0x1]
        %v2279 = vlaneseq
        %v2280 = vshrl.u32 %v2279, 7
        %v2281 = vsub.s32 0, %v2280
        %v2282 = vrot.slane %v2277, %v2281
        %v2284 = vadd.f32 %v2213, %v2282
        %v2285 = vadd.f32 %v2214, %v2282
        %v2286 = vadd.f32 %v2215, %v2282
        %v2287 = vadd.f32 %v2216, %v2282
        %v2288 = vadd.f32 %v2217, %v2282
        %v2289 = vadd.f32 %v2218, %v2282
        %v2290 = vadd.f32 %v2219, %v2282
        %v2291 = vadd.f32 %v2220, %v2282
        %v2292 = vadd.f32 %v2221, %v2282
        %v2293 = vadd.f32 %v2222, %v2282
        %v2294 = vadd.f32 %v2223, %v2282
        %v2295 = vadd.f32 %v2224, %v2282
        %v2296 = vadd.f32 %v2225, %v2282
        %v2297 = vadd.f32 %v2226, %v2282
        %v2298 = vadd.f32 %v2227, %v2282
        %v2299 = vadd.f32 %v2228, %v2282
        %v2300 = vadd.f32 %v2229, %v2282
        %v2301 = vadd.f32 %v2230, %v2282
        %v2302 = vadd.f32 %v2231, %v2282
        %v2303 = vadd.f32 %v2232, %v2282
        %v2304 = vadd.f32 %v2233, %v2282
        %v2305 = vadd.f32 %v2234, %v2282
        %v2306 = vadd.f32 %v2235, %v2282
        %v2307 = vadd.f32 %v2236, %v2282
        %v2308 = vadd.f32 %v2237, %v2282
        %v2309 = vadd.f32 %v2238, %v2282
        %v2310 = vadd.f32 %v2239, %v2282
        %v2311 = vadd.f32 %v2240, %v2282
        %v2312 = vadd.f32 %v2241, %v2282
        %v2313 = vadd.f32 %v2242, %v2282
        %v2314 = vadd.f32 %v2243, %v2282
        %v2315 = vadd.f32 %v2244, %v2282
        %v2316 = vadd.f32 %v2245, %v2282
        %v2317 = vadd.f32 %v2246, %v2282
        %v2318 = vadd.f32 %v2247, %v2282
        %v2319 = vadd.f32 %v2248, %v2282
        %v2320 = vadd.f32 %v2249, %v2282
        %v2321 = vadd.f32 %v2250, %v2282
        %v2322 = vadd.f32 %v2251, %v2282
        %v2323 = vadd.f32 %v2252, %v2282
        %v2324 = vadd.f32 %v2253, %v2282
        %v2325 = vadd.f32 %v2254, %v2282
        %v2326 = vadd.f32 %v2255, %v2282
        %v2327 = vadd.f32 %v2256, %v2282
        %v2328 = vadd.f32 %v2257, %v2282
        %v2329 = vadd.f32 %v2258, %v2282
        %v2330 = vadd.f32 %v2259, %v2282
        %v2331 = vadd.f32 %v2260, %v2282
        %v2332 = vadd.f32 %v2261, %v2282
        %v2333 = vadd.f32 %v2262, %v2282
        %v2334 = vadd.f32 %v2263, %v2282
        %v2335 = vadd.f32 %v2264, %v2282
        %v2336 = vadd.f32 %v2265, %v2282
        %v2337 = vadd.f32 %v2266, %v2282
        %v2338 = vadd.f32 %v2267, %v2282
        %v2339 = vadd.f32 %v2268, %v2282
        %v2340 = vadd.f32 %v2269, %v2282
        %v2341 = vadd.f32 %v2270, %v2282
        %v2342 = vadd.f32 %v2271, %v2282
        %v2343 = vadd.f32 %v2272, %v2282
        %v2344 = vadd.f32 %v2273, %v2282
        %v2345 = vadd.f32 %v2274, %v2282
        %v2346 = vadd.f32 %v2275, %v2282
        %v2347 = vadd.f32 %v2276, %v2282
        %v2349 = vlaneseq
        %v2350 = vshrl.u32 %v2349, 7
        %v2351 = vsub.s32 0, %v2350
        %v2352 = vrot.slane %v2148, %v2351
        %v2354 = vmul.f32 %v2352, %v2284
        %v2355 = vmul.f32 %v2352, %v2285
        %v2356 = vmul.f32 %v2352, %v2286
        %v2357 = vmul.f32 %v2352, %v2287
        %v2358 = vmul.f32 %v2352, %v2288
        %v2359 = vmul.f32 %v2352, %v2289
        %v2360 = vmul.f32 %v2352, %v2290
        %v2361 = vmul.f32 %v2352, %v2291
        %v2362 = vmul.f32 %v2352, %v2292
        %v2363 = vmul.f32 %v2352, %v2293
        %v2364 = vmul.f32 %v2352, %v2294
        %v2365 = vmul.f32 %v2352, %v2295
        %v2366 = vmul.f32 %v2352, %v2296
        %v2367 = vmul.f32 %v2352, %v2297
        %v2368 = vmul.f32 %v2352, %v2298
        %v2369 = vmul.f32 %v2352, %v2299
        %v2370 = vmul.f32 %v2352, %v2300
        %v2371 = vmul.f32 %v2352, %v2301
        %v2372 = vmul.f32 %v2352, %v2302
        %v2373 = vmul.f32 %v2352, %v2303
        %v2374 = vmul.f32 %v2352, %v2304
        %v2375 = vmul.f32 %v2352, %v2305
        %v2376 = vmul.f32 %v2352, %v2306
        %v2377 = vmul.f32 %v2352, %v2307
        %v2378 = vmul.f32 %v2352, %v2308
        %v2379 = vmul.f32 %v2352, %v2309
        %v2380 = vmul.f32 %v2352, %v2310
        %v2381 = vmul.f32 %v2352, %v2311
        %v2382 = vmul.f32 %v2352, %v2312
        %v2383 = vmul.f32 %v2352, %v2313
        %v2384 = vmul.f32 %v2352, %v2314
        %v2385 = vmul.f32 %v2352, %v2315
        %v2386 = vmul.f32 %v2352, %v2316
        %v2387 = vmul.f32 %v2352, %v2317
        %v2388 = vmul.f32 %v2352, %v2318
        %v2389 = vmul.f32 %v2352, %v2319
        %v2390 = vmul.f32 %v2352, %v2320
        %v2391 = vmul.f32 %v2352, %v2321
        %v2392 = vmul.f32 %v2352, %v2322
        %v2393 = vmul.f32 %v2352, %v2323
        %v2394 = vmul.f32 %v2352, %v2324
        %v2395 = vmul.f32 %v2352, %v2325
        %v2396 = vmul.f32 %v2352, %v2326
        %v2397 = vmul.f32 %v2352, %v2327
        %v2398 = vmul.f32 %v2352, %v2328
        %v2399 = vmul.f32 %v2352, %v2329
        %v2400 = vmul.f32 %v2352, %v2330
        %v2401 = vmul.f32 %v2352, %v2331
        %v2402 = vmul.f32 %v2352, %v2332
        %v2403 = vmul.f32 %v2352, %v2333
        %v2404 = vmul.f32 %v2352, %v2334
        %v2405 = vmul.f32 %v2352, %v2335
        %v2406 = vmul.f32 %v2352, %v2336
        %v2407 = vmul.f32 %v2352, %v2337
        %v2408 = vmul.f32 %v2352, %v2338
        %v2409 = vmul.f32 %v2352, %v2339
        %v2410 = vmul.f32 %v2352, %v2340
        %v2411 = vmul.f32 %v2352, %v2341
        %v2412 = vmul.f32 %v2352, %v2342
        %v2413 = vmul.f32 %v2352, %v2343
        %v2414 = vmul.f32 %v2352, %v2344
        %v2415 = vmul.f32 %v2352, %v2345
        %v2416 = vmul.f32 %v2352, %v2346
        %v2417 = vmul.f32 %v2352, %v2347
        %vm2418 = vcmask 261120
        %v2419 = vsel %vm2418, %v2354, -inf
        %2420 = vmax.xlane.f32.xlu0 %v2419
        %v2421 = vpop.xlane.xlu0 %2420
        %v2422 = vsel %vm2418, %v2355, -inf
        %2423 = vmax.xlane.f32.xlu0 %v2422
        %v2424 = vpop.xlane.xlu0 %2423
        %v2425 = vsel %vm2418, %v2356, -inf
        %2426 = vmax.xlane.f32.xlu0 %v2425
        %v2427 = vpop.xlane.xlu0 %2426
        %v2428 = vsel %vm2418, %v2357, -inf
        %2429 = vmax.xlane.f32.xlu0 %v2428
        %v2430 = vpop.xlane.xlu0 %2429
        %v2431 = vsel %vm2418, %v2358, -inf
        %2432 = vmax.xlane.f32.xlu0 %v2431
        %v2433 = vpop.xlane.xlu0 %2432
        %v2434 = vsel %vm2418, %v2359, -inf
        %2435 = vmax.xlane.f32.xlu0 %v2434
        %v2436 = vpop.xlane.xlu0 %2435
        %v2437 = vsel %vm2418, %v2360, -inf
        %2438 = vmax.xlane.f32.xlu0 %v2437
        %v2439 = vpop.xlane.xlu0 %2438
        %v2440 = vsel %vm2418, %v2361, -inf
        %2441 = vmax.xlane.f32.xlu0 %v2440
        %v2442 = vpop.xlane.xlu0 %2441
        %v2443 = vsel %vm2418, %v2362, -inf
        %2444 = vmax.xlane.f32.xlu0 %v2443
        %v2445 = vpop.xlane.xlu0 %2444
        %v2446 = vsel %vm2418, %v2363, -inf
        %2447 = vmax.xlane.f32.xlu0 %v2446
        %v2448 = vpop.xlane.xlu0 %2447
        %v2449 = vsel %vm2418, %v2364, -inf
        %2450 = vmax.xlane.f32.xlu0 %v2449
        %v2451 = vpop.xlane.xlu0 %2450
        %v2452 = vsel %vm2418, %v2365, -inf
        %2453 = vmax.xlane.f32.xlu0 %v2452
        %v2454 = vpop.xlane.xlu0 %2453
        %v2455 = vsel %vm2418, %v2366, -inf
        %2456 = vmax.xlane.f32.xlu0 %v2455
        %v2457 = vpop.xlane.xlu0 %2456
        %v2458 = vsel %vm2418, %v2367, -inf
        %2459 = vmax.xlane.f32.xlu0 %v2458
        %v2460 = vpop.xlane.xlu0 %2459
        %v2461 = vsel %vm2418, %v2368, -inf
        %2462 = vmax.xlane.f32.xlu0 %v2461
        %v2463 = vpop.xlane.xlu0 %2462
        %v2464 = vsel %vm2418, %v2369, -inf
        %2465 = vmax.xlane.f32.xlu0 %v2464
        %v2466 = vpop.xlane.xlu0 %2465
        %v2467 = vsel %vm2418, %v2370, -inf
        %2468 = vmax.xlane.f32.xlu0 %v2467
        %v2469 = vpop.xlane.xlu0 %2468
        %v2470 = vsel %vm2418, %v2371, -inf
        %2471 = vmax.xlane.f32.xlu0 %v2470
        %v2472 = vpop.xlane.xlu0 %2471
        %v2473 = vsel %vm2418, %v2372, -inf
        %2474 = vmax.xlane.f32.xlu0 %v2473
        %v2475 = vpop.xlane.xlu0 %2474
        %v2476 = vsel %vm2418, %v2373, -inf
        %2477 = vmax.xlane.f32.xlu0 %v2476
        %v2478 = vpop.xlane.xlu0 %2477
        %v2479 = vsel %vm2418, %v2374, -inf
        %2480 = vmax.xlane.f32.xlu0 %v2479
        %v2481 = vpop.xlane.xlu0 %2480
        %v2482 = vsel %vm2418, %v2375, -inf
        %2483 = vmax.xlane.f32.xlu0 %v2482
        %v2484 = vpop.xlane.xlu0 %2483
        %v2485 = vsel %vm2418, %v2376, -inf
        %2486 = vmax.xlane.f32.xlu0 %v2485
        %v2487 = vpop.xlane.xlu0 %2486
        %v2488 = vsel %vm2418, %v2377, -inf
        %2489 = vmax.xlane.f32.xlu0 %v2488
        %v2490 = vpop.xlane.xlu0 %2489
        %v2491 = vsel %vm2418, %v2378, -inf
        %2492 = vmax.xlane.f32.xlu0 %v2491
        %v2493 = vpop.xlane.xlu0 %2492
        %v2494 = vsel %vm2418, %v2379, -inf
        %2495 = vmax.xlane.f32.xlu0 %v2494
        %v2496 = vpop.xlane.xlu0 %2495
        %v2497 = vsel %vm2418, %v2380, -inf
        %2498 = vmax.xlane.f32.xlu0 %v2497
        %v2499 = vpop.xlane.xlu0 %2498
        %v2500 = vsel %vm2418, %v2381, -inf
        %2501 = vmax.xlane.f32.xlu0 %v2500
        %v2502 = vpop.xlane.xlu0 %2501
        %v2503 = vsel %vm2418, %v2382, -inf
        %2504 = vmax.xlane.f32.xlu0 %v2503
        %v2505 = vpop.xlane.xlu0 %2504
        %v2506 = vsel %vm2418, %v2383, -inf
        %2507 = vmax.xlane.f32.xlu0 %v2506
        %v2508 = vpop.xlane.xlu0 %2507
        %v2509 = vsel %vm2418, %v2384, -inf
        %2510 = vmax.xlane.f32.xlu0 %v2509
        %v2511 = vpop.xlane.xlu0 %2510
        %v2512 = vsel %vm2418, %v2385, -inf
        %2513 = vmax.xlane.f32.xlu0 %v2512
        %v2514 = vpop.xlane.xlu0 %2513
        %v2515 = vsel %vm2418, %v2386, -inf
        %2516 = vmax.xlane.f32.xlu0 %v2515
        %v2517 = vpop.xlane.xlu0 %2516
        %v2518 = vsel %vm2418, %v2387, -inf
        %2519 = vmax.xlane.f32.xlu0 %v2518
        %v2520 = vpop.xlane.xlu0 %2519
        %v2521 = vsel %vm2418, %v2388, -inf
        %2522 = vmax.xlane.f32.xlu0 %v2521
        %v2523 = vpop.xlane.xlu0 %2522
        %v2524 = vsel %vm2418, %v2389, -inf
        %2525 = vmax.xlane.f32.xlu0 %v2524
        %v2526 = vpop.xlane.xlu0 %2525
        %v2527 = vsel %vm2418, %v2390, -inf
        %2528 = vmax.xlane.f32.xlu0 %v2527
        %v2529 = vpop.xlane.xlu0 %2528
        %v2530 = vsel %vm2418, %v2391, -inf
        %2531 = vmax.xlane.f32.xlu0 %v2530
        %v2532 = vpop.xlane.xlu0 %2531
        %v2533 = vsel %vm2418, %v2392, -inf
        %2534 = vmax.xlane.f32.xlu0 %v2533
        %v2535 = vpop.xlane.xlu0 %2534
        %v2536 = vsel %vm2418, %v2393, -inf
        %2537 = vmax.xlane.f32.xlu0 %v2536
        %v2538 = vpop.xlane.xlu0 %2537
        %v2539 = vsel %vm2418, %v2394, -inf
        %2540 = vmax.xlane.f32.xlu0 %v2539
        %v2541 = vpop.xlane.xlu0 %2540
        %v2542 = vsel %vm2418, %v2395, -inf
        %2543 = vmax.xlane.f32.xlu0 %v2542
        %v2544 = vpop.xlane.xlu0 %2543
        %v2545 = vsel %vm2418, %v2396, -inf
        %2546 = vmax.xlane.f32.xlu0 %v2545
        %v2547 = vpop.xlane.xlu0 %2546
        %v2548 = vsel %vm2418, %v2397, -inf
        %2549 = vmax.xlane.f32.xlu0 %v2548
        %v2550 = vpop.xlane.xlu0 %2549
        %v2551 = vsel %vm2418, %v2398, -inf
        %2552 = vmax.xlane.f32.xlu0 %v2551
        %v2553 = vpop.xlane.xlu0 %2552
        %v2554 = vsel %vm2418, %v2399, -inf
        %2555 = vmax.xlane.f32.xlu0 %v2554
        %v2556 = vpop.xlane.xlu0 %2555
        %v2557 = vsel %vm2418, %v2400, -inf
        %2558 = vmax.xlane.f32.xlu0 %v2557
        %v2559 = vpop.xlane.xlu0 %2558
        %v2560 = vsel %vm2418, %v2401, -inf
        %2561 = vmax.xlane.f32.xlu0 %v2560
        %v2562 = vpop.xlane.xlu0 %2561
        %v2563 = vsel %vm2418, %v2402, -inf
        %2564 = vmax.xlane.f32.xlu0 %v2563
        %v2565 = vpop.xlane.xlu0 %2564
        %v2566 = vsel %vm2418, %v2403, -inf
        %2567 = vmax.xlane.f32.xlu0 %v2566
        %v2568 = vpop.xlane.xlu0 %2567
        %v2569 = vsel %vm2418, %v2404, -inf
        %2570 = vmax.xlane.f32.xlu0 %v2569
        %v2571 = vpop.xlane.xlu0 %2570
        %v2572 = vsel %vm2418, %v2405, -inf
        %2573 = vmax.xlane.f32.xlu0 %v2572
        %v2574 = vpop.xlane.xlu0 %2573
        %v2575 = vsel %vm2418, %v2406, -inf
        %2576 = vmax.xlane.f32.xlu0 %v2575
        %v2577 = vpop.xlane.xlu0 %2576
        %v2578 = vsel %vm2418, %v2407, -inf
        %2579 = vmax.xlane.f32.xlu0 %v2578
        %v2580 = vpop.xlane.xlu0 %2579
        %v2581 = vsel %vm2418, %v2408, -inf
        %2582 = vmax.xlane.f32.xlu0 %v2581
        %v2583 = vpop.xlane.xlu0 %2582
        %v2584 = vsel %vm2418, %v2409, -inf
        %2585 = vmax.xlane.f32.xlu0 %v2584
        %v2586 = vpop.xlane.xlu0 %2585
        %v2587 = vsel %vm2418, %v2410, -inf
        %2588 = vmax.xlane.f32.xlu0 %v2587
        %v2589 = vpop.xlane.xlu0 %2588
        %v2590 = vsel %vm2418, %v2411, -inf
        %2591 = vmax.xlane.f32.xlu0 %v2590
        %v2592 = vpop.xlane.xlu0 %2591
        %v2593 = vsel %vm2418, %v2412, -inf
        %2594 = vmax.xlane.f32.xlu0 %v2593
        %v2595 = vpop.xlane.xlu0 %2594
        %v2596 = vsel %vm2418, %v2413, -inf
        %2597 = vmax.xlane.f32.xlu0 %v2596
        %v2598 = vpop.xlane.xlu0 %2597
        %v2599 = vsel %vm2418, %v2414, -inf
        %2600 = vmax.xlane.f32.xlu0 %v2599
        %v2601 = vpop.xlane.xlu0 %2600
        %v2602 = vsel %vm2418, %v2415, -inf
        %2603 = vmax.xlane.f32.xlu0 %v2602
        %v2604 = vpop.xlane.xlu0 %2603
        %v2605 = vsel %vm2418, %v2416, -inf
        %2606 = vmax.xlane.f32.xlu0 %v2605
        %v2607 = vpop.xlane.xlu0 %2606
        %v2608 = vsel %vm2418, %v2417, -inf
        %2609 = vmax.xlane.f32.xlu0 %v2608
        %v2610 = vpop.xlane.xlu0 %2609
        %v2611 = vsub.f32 %v2354, %v2421
        %v2612 = vsub.f32 %v2355, %v2424
        %v2613 = vsub.f32 %v2356, %v2427
        %v2614 = vsub.f32 %v2357, %v2430
        %v2615 = vsub.f32 %v2358, %v2433
        %v2616 = vsub.f32 %v2359, %v2436
        %v2617 = vsub.f32 %v2360, %v2439
        %v2618 = vsub.f32 %v2361, %v2442
        %v2619 = vsub.f32 %v2362, %v2445
        %v2620 = vsub.f32 %v2363, %v2448
        %v2621 = vsub.f32 %v2364, %v2451
        %v2622 = vsub.f32 %v2365, %v2454
        %v2623 = vsub.f32 %v2366, %v2457
        %v2624 = vsub.f32 %v2367, %v2460
        %v2625 = vsub.f32 %v2368, %v2463
        %v2626 = vsub.f32 %v2369, %v2466
        %v2627 = vsub.f32 %v2370, %v2469
        %v2628 = vsub.f32 %v2371, %v2472
        %v2629 = vsub.f32 %v2372, %v2475
        %v2630 = vsub.f32 %v2373, %v2478
        %v2631 = vsub.f32 %v2374, %v2481
        %v2632 = vsub.f32 %v2375, %v2484
        %v2633 = vsub.f32 %v2376, %v2487
        %v2634 = vsub.f32 %v2377, %v2490
        %v2635 = vsub.f32 %v2378, %v2493
        %v2636 = vsub.f32 %v2379, %v2496
        %v2637 = vsub.f32 %v2380, %v2499
        %v2638 = vsub.f32 %v2381, %v2502
        %v2639 = vsub.f32 %v2382, %v2505
        %v2640 = vsub.f32 %v2383, %v2508
        %v2641 = vsub.f32 %v2384, %v2511
        %v2642 = vsub.f32 %v2385, %v2514
        %v2643 = vsub.f32 %v2386, %v2517
        %v2644 = vsub.f32 %v2387, %v2520
        %v2645 = vsub.f32 %v2388, %v2523
        %v2646 = vsub.f32 %v2389, %v2526
        %v2647 = vsub.f32 %v2390, %v2529
        %v2648 = vsub.f32 %v2391, %v2532
        %v2649 = vsub.f32 %v2392, %v2535
        %v2650 = vsub.f32 %v2393, %v2538
        %v2651 = vsub.f32 %v2394, %v2541
        %v2652 = vsub.f32 %v2395, %v2544
        %v2653 = vsub.f32 %v2396, %v2547
        %v2654 = vsub.f32 %v2397, %v2550
        %v2655 = vsub.f32 %v2398, %v2553
        %v2656 = vsub.f32 %v2399, %v2556
        %v2657 = vsub.f32 %v2400, %v2559
        %v2658 = vsub.f32 %v2401, %v2562
        %v2659 = vsub.f32 %v2402, %v2565
        %v2660 = vsub.f32 %v2403, %v2568
        %v2661 = vsub.f32 %v2404, %v2571
        %v2662 = vsub.f32 %v2405, %v2574
        %v2663 = vsub.f32 %v2406, %v2577
        %v2664 = vsub.f32 %v2407, %v2580
        %v2665 = vsub.f32 %v2408, %v2583
        %v2666 = vsub.f32 %v2409, %v2586
        %v2667 = vsub.f32 %v2410, %v2589
        %v2668 = vsub.f32 %v2411, %v2592
        %v2669 = vsub.f32 %v2412, %v2595
        %v2670 = vsub.f32 %v2413, %v2598
        %v2671 = vsub.f32 %v2414, %v2601
        %v2672 = vsub.f32 %v2415, %v2604
        %v2673 = vsub.f32 %v2416, %v2607
        %v2674 = vsub.f32 %v2417, %v2610
        %v2675 = vmul.f32 %v2611, 1.442695
        %v2676 = vpow.pop %v2675
        %v2677 = vmul.f32 %v2612, 1.442695
        %v2678 = vpow.pop %v2677
        %v2679 = vmul.f32 %v2613, 1.442695
        %v2680 = vpow.pop %v2679
        %v2681 = vmul.f32 %v2614, 1.442695
        %v2682 = vpow.pop %v2681
        %v2683 = vmul.f32 %v2615, 1.442695
        %v2684 = vpow.pop %v2683
        %v2685 = vmul.f32 %v2616, 1.442695
        %v2686 = vpow.pop %v2685
        %v2687 = vmul.f32 %v2617, 1.442695
        %v2688 = vpow.pop %v2687
        %v2689 = vmul.f32 %v2618, 1.442695
        %v2690 = vpow.pop %v2689
        %v2691 = vmul.f32 %v2619, 1.442695
        %v2692 = vpow.pop %v2691
        %v2693 = vmul.f32 %v2620, 1.442695
        %v2694 = vpow.pop %v2693
        %v2695 = vmul.f32 %v2621, 1.442695
        %v2696 = vpow.pop %v2695
        %v2697 = vmul.f32 %v2622, 1.442695
        %v2698 = vpow.pop %v2697
        %v2699 = vmul.f32 %v2623, 1.442695
        %v2700 = vpow.pop %v2699
        %v2701 = vmul.f32 %v2624, 1.442695
        %v2702 = vpow.pop %v2701
        %v2703 = vmul.f32 %v2625, 1.442695
        %v2704 = vpow.pop %v2703
        %v2705 = vmul.f32 %v2626, 1.442695
        %v2706 = vpow.pop %v2705
        %v2707 = vmul.f32 %v2627, 1.442695
        %v2708 = vpow.pop %v2707
        %v2709 = vmul.f32 %v2628, 1.442695
        %v2710 = vpow.pop %v2709
        %v2711 = vmul.f32 %v2629, 1.442695
        %v2712 = vpow.pop %v2711
        %v2713 = vmul.f32 %v2630, 1.442695
        %v2714 = vpow.pop %v2713
        %v2715 = vmul.f32 %v2631, 1.442695
        %v2716 = vpow.pop %v2715
        %v2717 = vmul.f32 %v2632, 1.442695
        %v2718 = vpow.pop %v2717
        %v2719 = vmul.f32 %v2633, 1.442695
        %v2720 = vpow.pop %v2719
        %v2721 = vmul.f32 %v2634, 1.442695
        %v2722 = vpow.pop %v2721
        %v2723 = vmul.f32 %v2635, 1.442695
        %v2724 = vpow.pop %v2723
        %v2725 = vmul.f32 %v2636, 1.442695
        %v2726 = vpow.pop %v2725
        %v2727 = vmul.f32 %v2637, 1.442695
        %v2728 = vpow.pop %v2727
        %v2729 = vmul.f32 %v2638, 1.442695
        %v2730 = vpow.pop %v2729
        %v2731 = vmul.f32 %v2639, 1.442695
        %v2732 = vpow.pop %v2731
        %v2733 = vmul.f32 %v2640, 1.442695
        %v2734 = vpow.pop %v2733
        %v2735 = vmul.f32 %v2641, 1.442695
        %v2736 = vpow.pop %v2735
        %v2737 = vmul.f32 %v2642, 1.442695
        %v2738 = vpow.pop %v2737
        %v2739 = vmul.f32 %v2643, 1.442695
        %v2740 = vpow.pop %v2739
        %v2741 = vmul.f32 %v2644, 1.442695
        %v2742 = vpow.pop %v2741
        %v2743 = vmul.f32 %v2645, 1.442695
        %v2744 = vpow.pop %v2743
        %v2745 = vmul.f32 %v2646, 1.442695
        %v2746 = vpow.pop %v2745
        %v2747 = vmul.f32 %v2647, 1.442695
        %v2748 = vpow.pop %v2747
        %v2749 = vmul.f32 %v2648, 1.442695
        %v2750 = vpow.pop %v2749
        %v2751 = vmul.f32 %v2649, 1.442695
        %v2752 = vpow.pop %v2751
        %v2753 = vmul.f32 %v2650, 1.442695
        %v2754 = vpow.pop %v2753
        %v2755 = vmul.f32 %v2651, 1.442695
        %v2756 = vpow.pop %v2755
        %v2757 = vmul.f32 %v2652, 1.442695
        %v2758 = vpow.pop %v2757
        %v2759 = vmul.f32 %v2653, 1.442695
        %v2760 = vpow.pop %v2759
        %v2761 = vmul.f32 %v2654, 1.442695
        %v2762 = vpow.pop %v2761
        %v2763 = vmul.f32 %v2655, 1.442695
        %v2764 = vpow.pop %v2763
        %v2765 = vmul.f32 %v2656, 1.442695
        %v2766 = vpow.pop %v2765
        %v2767 = vmul.f32 %v2657, 1.442695
        %v2768 = vpow.pop %v2767
        %v2769 = vmul.f32 %v2658, 1.442695
        %v2770 = vpow.pop %v2769
        %v2771 = vmul.f32 %v2659, 1.442695
        %v2772 = vpow.pop %v2771
        %v2773 = vmul.f32 %v2660, 1.442695
        %v2774 = vpow.pop %v2773
        %v2775 = vmul.f32 %v2661, 1.442695
        %v2776 = vpow.pop %v2775
        %v2777 = vmul.f32 %v2662, 1.442695
        %v2778 = vpow.pop %v2777
        %v2779 = vmul.f32 %v2663, 1.442695
        %v2780 = vpow.pop %v2779
        %v2781 = vmul.f32 %v2664, 1.442695
        %v2782 = vpow.pop %v2781
        %v2783 = vmul.f32 %v2665, 1.442695
        %v2784 = vpow.pop %v2783
        %v2785 = vmul.f32 %v2666, 1.442695
        %v2786 = vpow.pop %v2785
        %v2787 = vmul.f32 %v2667, 1.442695
        %v2788 = vpow.pop %v2787
        %v2789 = vmul.f32 %v2668, 1.442695
        %v2790 = vpow.pop %v2789
        %v2791 = vmul.f32 %v2669, 1.442695
        %v2792 = vpow.pop %v2791
        %v2793 = vmul.f32 %v2670, 1.442695
        %v2794 = vpow.pop %v2793
        %v2795 = vmul.f32 %v2671, 1.442695
        %v2796 = vpow.pop %v2795
        %v2797 = vmul.f32 %v2672, 1.442695
        %v2798 = vpow.pop %v2797
        %v2799 = vmul.f32 %v2673, 1.442695
        %v2800 = vpow.pop %v2799
        %v2801 = vmul.f32 %v2674, 1.442695
        %v2802 = vpow.pop %v2801
        %v2803 = vsel %vm2418, %v2676, 0.0
        %2804 = vadd.xlane.f32.xlu0 %v2803
        %v2805 = vpop.xlane.xlu0 %2804
        %v2806 = vsel %vm2418, %v2678, 0.0
        %2807 = vadd.xlane.f32.xlu0 %v2806
        %v2808 = vpop.xlane.xlu0 %2807
        %v2809 = vsel %vm2418, %v2680, 0.0
        %2810 = vadd.xlane.f32.xlu0 %v2809
        %v2811 = vpop.xlane.xlu0 %2810
        %v2812 = vsel %vm2418, %v2682, 0.0
        %2813 = vadd.xlane.f32.xlu0 %v2812
        %v2814 = vpop.xlane.xlu0 %2813
        %v2815 = vsel %vm2418, %v2684, 0.0
        %2816 = vadd.xlane.f32.xlu0 %v2815
        %v2817 = vpop.xlane.xlu0 %2816
        %v2818 = vsel %vm2418, %v2686, 0.0
        %2819 = vadd.xlane.f32.xlu0 %v2818
        %v2820 = vpop.xlane.xlu0 %2819
        %v2821 = vsel %vm2418, %v2688, 0.0
        %2822 = vadd.xlane.f32.xlu0 %v2821
        %v2823 = vpop.xlane.xlu0 %2822
        %v2824 = vsel %vm2418, %v2690, 0.0
        %2825 = vadd.xlane.f32.xlu0 %v2824
        %v2826 = vpop.xlane.xlu0 %2825
        %v2827 = vsel %vm2418, %v2692, 0.0
        %2828 = vadd.xlane.f32.xlu0 %v2827
        %v2829 = vpop.xlane.xlu0 %2828
        %v2830 = vsel %vm2418, %v2694, 0.0
        %2831 = vadd.xlane.f32.xlu0 %v2830
        %v2832 = vpop.xlane.xlu0 %2831
        %v2833 = vsel %vm2418, %v2696, 0.0
        %2834 = vadd.xlane.f32.xlu0 %v2833
        %v2835 = vpop.xlane.xlu0 %2834
        %v2836 = vsel %vm2418, %v2698, 0.0
        %2837 = vadd.xlane.f32.xlu0 %v2836
        %v2838 = vpop.xlane.xlu0 %2837
        %v2839 = vsel %vm2418, %v2700, 0.0
        %2840 = vadd.xlane.f32.xlu0 %v2839
        %v2841 = vpop.xlane.xlu0 %2840
        %v2842 = vsel %vm2418, %v2702, 0.0
        %2843 = vadd.xlane.f32.xlu0 %v2842
        %v2844 = vpop.xlane.xlu0 %2843
        %v2845 = vsel %vm2418, %v2704, 0.0
        %2846 = vadd.xlane.f32.xlu0 %v2845
        %v2847 = vpop.xlane.xlu0 %2846
        %v2848 = vsel %vm2418, %v2706, 0.0
        %2849 = vadd.xlane.f32.xlu0 %v2848
        %v2850 = vpop.xlane.xlu0 %2849
        %v2851 = vsel %vm2418, %v2708, 0.0
        %2852 = vadd.xlane.f32.xlu0 %v2851
        %v2853 = vpop.xlane.xlu0 %2852
        %v2854 = vsel %vm2418, %v2710, 0.0
        %2855 = vadd.xlane.f32.xlu0 %v2854
        %v2856 = vpop.xlane.xlu0 %2855
        %v2857 = vsel %vm2418, %v2712, 0.0
        %2858 = vadd.xlane.f32.xlu0 %v2857
        %v2859 = vpop.xlane.xlu0 %2858
        %v2860 = vsel %vm2418, %v2714, 0.0
        %2861 = vadd.xlane.f32.xlu0 %v2860
        %v2862 = vpop.xlane.xlu0 %2861
        %v2863 = vsel %vm2418, %v2716, 0.0
        %2864 = vadd.xlane.f32.xlu0 %v2863
        %v2865 = vpop.xlane.xlu0 %2864
        %v2866 = vsel %vm2418, %v2718, 0.0
        %2867 = vadd.xlane.f32.xlu0 %v2866
        %v2868 = vpop.xlane.xlu0 %2867
        %v2869 = vsel %vm2418, %v2720, 0.0
        %2870 = vadd.xlane.f32.xlu0 %v2869
        %v2871 = vpop.xlane.xlu0 %2870
        %v2872 = vsel %vm2418, %v2722, 0.0
        %2873 = vadd.xlane.f32.xlu0 %v2872
        %v2874 = vpop.xlane.xlu0 %2873
        %v2875 = vsel %vm2418, %v2724, 0.0
        %2876 = vadd.xlane.f32.xlu0 %v2875
        %v2877 = vpop.xlane.xlu0 %2876
        %v2878 = vsel %vm2418, %v2726, 0.0
        %2879 = vadd.xlane.f32.xlu0 %v2878
        %v2880 = vpop.xlane.xlu0 %2879
        %v2881 = vsel %vm2418, %v2728, 0.0
        %2882 = vadd.xlane.f32.xlu0 %v2881
        %v2883 = vpop.xlane.xlu0 %2882
        %v2884 = vsel %vm2418, %v2730, 0.0
        %2885 = vadd.xlane.f32.xlu0 %v2884
        %v2886 = vpop.xlane.xlu0 %2885
        %v2887 = vsel %vm2418, %v2732, 0.0
        %2888 = vadd.xlane.f32.xlu0 %v2887
        %v2889 = vpop.xlane.xlu0 %2888
        %v2890 = vsel %vm2418, %v2734, 0.0
        %2891 = vadd.xlane.f32.xlu0 %v2890
        %v2892 = vpop.xlane.xlu0 %2891
        %v2893 = vsel %vm2418, %v2736, 0.0
        %2894 = vadd.xlane.f32.xlu0 %v2893
        %v2895 = vpop.xlane.xlu0 %2894
        %v2896 = vsel %vm2418, %v2738, 0.0
        %2897 = vadd.xlane.f32.xlu0 %v2896
        %v2898 = vpop.xlane.xlu0 %2897
        %v2899 = vsel %vm2418, %v2740, 0.0
        %2900 = vadd.xlane.f32.xlu0 %v2899
        %v2901 = vpop.xlane.xlu0 %2900
        %v2902 = vsel %vm2418, %v2742, 0.0
        %2903 = vadd.xlane.f32.xlu0 %v2902
        %v2904 = vpop.xlane.xlu0 %2903
        %v2905 = vsel %vm2418, %v2744, 0.0
        %2906 = vadd.xlane.f32.xlu0 %v2905
        %v2907 = vpop.xlane.xlu0 %2906
        %v2908 = vsel %vm2418, %v2746, 0.0
        %2909 = vadd.xlane.f32.xlu0 %v2908
        %v2910 = vpop.xlane.xlu0 %2909
        %v2911 = vsel %vm2418, %v2748, 0.0
        %2912 = vadd.xlane.f32.xlu0 %v2911
        %v2913 = vpop.xlane.xlu0 %2912
        %v2914 = vsel %vm2418, %v2750, 0.0
        %2915 = vadd.xlane.f32.xlu0 %v2914
        %v2916 = vpop.xlane.xlu0 %2915
        %v2917 = vsel %vm2418, %v2752, 0.0
        %2918 = vadd.xlane.f32.xlu0 %v2917
        %v2919 = vpop.xlane.xlu0 %2918
        %v2920 = vsel %vm2418, %v2754, 0.0
        %2921 = vadd.xlane.f32.xlu0 %v2920
        %v2922 = vpop.xlane.xlu0 %2921
        %v2923 = vsel %vm2418, %v2756, 0.0
        %2924 = vadd.xlane.f32.xlu0 %v2923
        %v2925 = vpop.xlane.xlu0 %2924
        %v2926 = vsel %vm2418, %v2758, 0.0
        %2927 = vadd.xlane.f32.xlu0 %v2926
        %v2928 = vpop.xlane.xlu0 %2927
        %v2929 = vsel %vm2418, %v2760, 0.0
        %2930 = vadd.xlane.f32.xlu0 %v2929
        %v2931 = vpop.xlane.xlu0 %2930
        %v2932 = vsel %vm2418, %v2762, 0.0
        %2933 = vadd.xlane.f32.xlu0 %v2932
        %v2934 = vpop.xlane.xlu0 %2933
        %v2935 = vsel %vm2418, %v2764, 0.0
        %2936 = vadd.xlane.f32.xlu0 %v2935
        %v2937 = vpop.xlane.xlu0 %2936
        %v2938 = vsel %vm2418, %v2766, 0.0
        %2939 = vadd.xlane.f32.xlu0 %v2938
        %v2940 = vpop.xlane.xlu0 %2939
        %v2941 = vsel %vm2418, %v2768, 0.0
        %2942 = vadd.xlane.f32.xlu0 %v2941
        %v2943 = vpop.xlane.xlu0 %2942
        %v2944 = vsel %vm2418, %v2770, 0.0
        %2945 = vadd.xlane.f32.xlu0 %v2944
        %v2946 = vpop.xlane.xlu0 %2945
        %v2947 = vsel %vm2418, %v2772, 0.0
        %2948 = vadd.xlane.f32.xlu0 %v2947
        %v2949 = vpop.xlane.xlu0 %2948
        %v2950 = vsel %vm2418, %v2774, 0.0
        %2951 = vadd.xlane.f32.xlu0 %v2950
        %v2952 = vpop.xlane.xlu0 %2951
        %v2953 = vsel %vm2418, %v2776, 0.0
        %2954 = vadd.xlane.f32.xlu0 %v2953
        %v2955 = vpop.xlane.xlu0 %2954
        %v2956 = vsel %vm2418, %v2778, 0.0
        %2957 = vadd.xlane.f32.xlu0 %v2956
        %v2958 = vpop.xlane.xlu0 %2957
        %v2959 = vsel %vm2418, %v2780, 0.0
        %2960 = vadd.xlane.f32.xlu0 %v2959
        %v2961 = vpop.xlane.xlu0 %2960
        %v2962 = vsel %vm2418, %v2782, 0.0
        %2963 = vadd.xlane.f32.xlu0 %v2962
        %v2964 = vpop.xlane.xlu0 %2963
        %v2965 = vsel %vm2418, %v2784, 0.0
        %2966 = vadd.xlane.f32.xlu0 %v2965
        %v2967 = vpop.xlane.xlu0 %2966
        %v2968 = vsel %vm2418, %v2786, 0.0
        %2969 = vadd.xlane.f32.xlu0 %v2968
        %v2970 = vpop.xlane.xlu0 %2969
        %v2971 = vsel %vm2418, %v2788, 0.0
        %2972 = vadd.xlane.f32.xlu0 %v2971
        %v2973 = vpop.xlane.xlu0 %2972
        %v2974 = vsel %vm2418, %v2790, 0.0
        %2975 = vadd.xlane.f32.xlu0 %v2974
        %v2976 = vpop.xlane.xlu0 %2975
        %v2977 = vsel %vm2418, %v2792, 0.0
        %2978 = vadd.xlane.f32.xlu0 %v2977
        %v2979 = vpop.xlane.xlu0 %2978
        %v2980 = vsel %vm2418, %v2794, 0.0
        %2981 = vadd.xlane.f32.xlu0 %v2980
        %v2982 = vpop.xlane.xlu0 %2981
        %v2983 = vsel %vm2418, %v2796, 0.0
        %2984 = vadd.xlane.f32.xlu0 %v2983
        %v2985 = vpop.xlane.xlu0 %2984
        %v2986 = vsel %vm2418, %v2798, 0.0
        %2987 = vadd.xlane.f32.xlu0 %v2986
        %v2988 = vpop.xlane.xlu0 %2987
        %v2989 = vsel %vm2418, %v2800, 0.0
        %2990 = vadd.xlane.f32.xlu0 %v2989
        %v2991 = vpop.xlane.xlu0 %2990
        %v2992 = vsel %vm2418, %v2802, 0.0
        %2993 = vadd.xlane.f32.xlu0 %v2992
        %v2994 = vpop.xlane.xlu0 %2993
        %v2995 = vrcp.pop %v2805
        %v2996 = vrcp.pop %v2808
        %v2997 = vrcp.pop %v2811
        %v2998 = vrcp.pop %v2814
        %v2999 = vrcp.pop %v2817
        %v3000 = vrcp.pop %v2820
        %v3001 = vrcp.pop %v2823
        %v3002 = vrcp.pop %v2826
        %v3003 = vrcp.pop %v2829
        %v3004 = vrcp.pop %v2832
        %v3005 = vrcp.pop %v2835
        %v3006 = vrcp.pop %v2838
        %v3007 = vrcp.pop %v2841
        %v3008 = vrcp.pop %v2844
        %v3009 = vrcp.pop %v2847
        %v3010 = vrcp.pop %v2850
        %v3011 = vrcp.pop %v2853
        %v3012 = vrcp.pop %v2856
        %v3013 = vrcp.pop %v2859
        %v3014 = vrcp.pop %v2862
        %v3015 = vrcp.pop %v2865
        %v3016 = vrcp.pop %v2868
        %v3017 = vrcp.pop %v2871
        %v3018 = vrcp.pop %v2874
        %v3019 = vrcp.pop %v2877
        %v3020 = vrcp.pop %v2880
        %v3021 = vrcp.pop %v2883
        %v3022 = vrcp.pop %v2886
        %v3023 = vrcp.pop %v2889
        %v3024 = vrcp.pop %v2892
        %v3025 = vrcp.pop %v2895
        %v3026 = vrcp.pop %v2898
        %v3027 = vrcp.pop %v2901
        %v3028 = vrcp.pop %v2904
        %v3029 = vrcp.pop %v2907
        %v3030 = vrcp.pop %v2910
        %v3031 = vrcp.pop %v2913
        %v3032 = vrcp.pop %v2916
        %v3033 = vrcp.pop %v2919
        %v3034 = vrcp.pop %v2922
        %v3035 = vrcp.pop %v2925
        %v3036 = vrcp.pop %v2928
        %v3037 = vrcp.pop %v2931
        %v3038 = vrcp.pop %v2934
        %v3039 = vrcp.pop %v2937
        %v3040 = vrcp.pop %v2940
        %v3041 = vrcp.pop %v2943
        %v3042 = vrcp.pop %v2946
        %v3043 = vrcp.pop %v2949
        %v3044 = vrcp.pop %v2952
        %v3045 = vrcp.pop %v2955
        %v3046 = vrcp.pop %v2958
        %v3047 = vrcp.pop %v2961
        %v3048 = vrcp.pop %v2964
        %v3049 = vrcp.pop %v2967
        %v3050 = vrcp.pop %v2970
        %v3051 = vrcp.pop %v2973
        %v3052 = vrcp.pop %v2976
        %v3053 = vrcp.pop %v2979
        %v3054 = vrcp.pop %v2982
        %v3055 = vrcp.pop %v2985
        %v3056 = vrcp.pop %v2988
        %v3057 = vrcp.pop %v2991
        %v3058 = vrcp.pop %v2994
        %v3059 = vmul.f32 %v2676, %v2995
        %v3060 = vmul.f32 %v2678, %v2996
        %v3061 = vmul.f32 %v2680, %v2997
        %v3062 = vmul.f32 %v2682, %v2998
        %v3063 = vmul.f32 %v2684, %v2999
        %v3064 = vmul.f32 %v2686, %v3000
        %v3065 = vmul.f32 %v2688, %v3001
        %v3066 = vmul.f32 %v2690, %v3002
        %v3067 = vmul.f32 %v2692, %v3003
        %v3068 = vmul.f32 %v2694, %v3004
        %v3069 = vmul.f32 %v2696, %v3005
        %v3070 = vmul.f32 %v2698, %v3006
        %v3071 = vmul.f32 %v2700, %v3007
        %v3072 = vmul.f32 %v2702, %v3008
        %v3073 = vmul.f32 %v2704, %v3009
        %v3074 = vmul.f32 %v2706, %v3010
        %v3075 = vmul.f32 %v2708, %v3011
        %v3076 = vmul.f32 %v2710, %v3012
        %v3077 = vmul.f32 %v2712, %v3013
        %v3078 = vmul.f32 %v2714, %v3014
        %v3079 = vmul.f32 %v2716, %v3015
        %v3080 = vmul.f32 %v2718, %v3016
        %v3081 = vmul.f32 %v2720, %v3017
        %v3082 = vmul.f32 %v2722, %v3018
        %v3083 = vmul.f32 %v2724, %v3019
        %v3084 = vmul.f32 %v2726, %v3020
        %v3085 = vmul.f32 %v2728, %v3021
        %v3086 = vmul.f32 %v2730, %v3022
        %v3087 = vmul.f32 %v2732, %v3023
        %v3088 = vmul.f32 %v2734, %v3024
        %v3089 = vmul.f32 %v2736, %v3025
        %v3090 = vmul.f32 %v2738, %v3026
        %v3091 = vmul.f32 %v2740, %v3027
        %v3092 = vmul.f32 %v2742, %v3028
        %v3093 = vmul.f32 %v2744, %v3029
        %v3094 = vmul.f32 %v2746, %v3030
        %v3095 = vmul.f32 %v2748, %v3031
        %v3096 = vmul.f32 %v2750, %v3032
        %v3097 = vmul.f32 %v2752, %v3033
        %v3098 = vmul.f32 %v2754, %v3034
        %v3099 = vmul.f32 %v2756, %v3035
        %v3100 = vmul.f32 %v2758, %v3036
        %v3101 = vmul.f32 %v2760, %v3037
        %v3102 = vmul.f32 %v2762, %v3038
        %v3103 = vmul.f32 %v2764, %v3039
        %v3104 = vmul.f32 %v2766, %v3040
        %v3105 = vmul.f32 %v2768, %v3041
        %v3106 = vmul.f32 %v2770, %v3042
        %v3107 = vmul.f32 %v2772, %v3043
        %v3108 = vmul.f32 %v2774, %v3044
        %v3109 = vmul.f32 %v2776, %v3045
        %v3110 = vmul.f32 %v2778, %v3046
        %v3111 = vmul.f32 %v2780, %v3047
        %v3112 = vmul.f32 %v2782, %v3048
        %v3113 = vmul.f32 %v2784, %v3049
        %v3114 = vmul.f32 %v2786, %v3050
        %v3115 = vmul.f32 %v2788, %v3051
        %v3116 = vmul.f32 %v2790, %v3052
        %v3117 = vmul.f32 %v2792, %v3053
        %v3118 = vmul.f32 %v2794, %v3054
        %v3119 = vmul.f32 %v2796, %v3055
        %v3120 = vmul.f32 %v2798, %v3056
        %v3121 = vmul.f32 %v2800, %v3057
        %v3122 = vmul.f32 %v2802, %v3058
        %3123 = vxpose.xlu0.b32.start [1/16] %v3059, 128
        %3124 = vxpose.xlu0.b32.cont [2/16] %v3060, 128
        %3125 = vxpose.xlu0.b32.cont [3/16] %v3061, 128
        %3126 = vxpose.xlu0.b32.cont [4/16] %v3062, 128
        %3127 = vxpose.xlu0.b32.cont [5/16] %v3063, 128
        %3128 = vxpose.xlu0.b32.cont [6/16] %v3064, 128
        %3129 = vxpose.xlu0.b32.cont [7/16] %v3065, 128
        %3130 = vxpose.xlu0.b32.cont [8/16] %v3066, 128
        %3131 = vxpose.xlu0.b32.cont [9/16] %v3067, 128
        %3132 = vxpose.xlu0.b32.cont [10/16] %v3068, 128
        %3133 = vxpose.xlu0.b32.cont [11/16] %v3069, 128
        %3134 = vxpose.xlu0.b32.cont [12/16] %v3070, 128
        %3135 = vxpose.xlu0.b32.cont [13/16] %v3071, 128
        %3136 = vxpose.xlu0.b32.cont [14/16] %v3072, 128
        %3137 = vxpose.xlu0.b32.cont [15/16] %v3073, 128
        %3138 = vxpose.xlu0.b32.end [16/16] %v3074, 128
        %v3139 = vpop.trf.xlu0
        %v3140 = vpop.trf.xlu0
        %v3141 = vpop.trf.xlu0
        %v3142 = vpop.trf.xlu0
        %v3143 = vpop.trf.xlu0
        %v3144 = vpop.trf.xlu0
        %v3145 = vpop.trf.xlu0
        %v3146 = vpop.trf.xlu0
        %v3147 = vpop.trf.xlu0
        %v3148 = vpop.trf.xlu0
        %v3149 = vpop.trf.xlu0
        %v3150 = vpop.trf.xlu0
        %v3151 = vpop.trf.xlu0
        %v3152 = vpop.trf.xlu0
        %v3153 = vpop.trf.xlu0
        %v3154 = vpop.trf.xlu0
        %3155 = vxpose.xlu0.b32.start [1/16] %v3075, 128
        %3156 = vxpose.xlu0.b32.cont [2/16] %v3076, 128
        %3157 = vxpose.xlu0.b32.cont [3/16] %v3077, 128
        %3158 = vxpose.xlu0.b32.cont [4/16] %v3078, 128
        %3159 = vxpose.xlu0.b32.cont [5/16] %v3079, 128
        %3160 = vxpose.xlu0.b32.cont [6/16] %v3080, 128
        %3161 = vxpose.xlu0.b32.cont [7/16] %v3081, 128
        %3162 = vxpose.xlu0.b32.cont [8/16] %v3082, 128
        %3163 = vxpose.xlu0.b32.cont [9/16] %v3083, 128
        %3164 = vxpose.xlu0.b32.cont [10/16] %v3084, 128
        %3165 = vxpose.xlu0.b32.cont [11/16] %v3085, 128
        %3166 = vxpose.xlu0.b32.cont [12/16] %v3086, 128
        %3167 = vxpose.xlu0.b32.cont [13/16] %v3087, 128
        %3168 = vxpose.xlu0.b32.cont [14/16] %v3088, 128
        %3169 = vxpose.xlu0.b32.cont [15/16] %v3089, 128
        %3170 = vxpose.xlu0.b32.end [16/16] %v3090, 128
        %v3171 = vpop.trf.xlu0
        %v3172 = vpop.trf.xlu0
        %v3173 = vpop.trf.xlu0
        %v3174 = vpop.trf.xlu0
        %v3175 = vpop.trf.xlu0
        %v3176 = vpop.trf.xlu0
        %v3177 = vpop.trf.xlu0
        %v3178 = vpop.trf.xlu0
        %v3179 = vpop.trf.xlu0
        %v3180 = vpop.trf.xlu0
        %v3181 = vpop.trf.xlu0
        %v3182 = vpop.trf.xlu0
        %v3183 = vpop.trf.xlu0
        %v3184 = vpop.trf.xlu0
        %v3185 = vpop.trf.xlu0
        %v3186 = vpop.trf.xlu0
        %3187 = vxpose.xlu0.b32.start [1/16] %v3091, 128
        %3188 = vxpose.xlu0.b32.cont [2/16] %v3092, 128
        %3189 = vxpose.xlu0.b32.cont [3/16] %v3093, 128
        %3190 = vxpose.xlu0.b32.cont [4/16] %v3094, 128
        %3191 = vxpose.xlu0.b32.cont [5/16] %v3095, 128
        %3192 = vxpose.xlu0.b32.cont [6/16] %v3096, 128
        %3193 = vxpose.xlu0.b32.cont [7/16] %v3097, 128
        %3194 = vxpose.xlu0.b32.cont [8/16] %v3098, 128
        %3195 = vxpose.xlu0.b32.cont [9/16] %v3099, 128
        %3196 = vxpose.xlu0.b32.cont [10/16] %v3100, 128
        %3197 = vxpose.xlu0.b32.cont [11/16] %v3101, 128
        %3198 = vxpose.xlu0.b32.cont [12/16] %v3102, 128
        %3199 = vxpose.xlu0.b32.cont [13/16] %v3103, 128
        %3200 = vxpose.xlu0.b32.cont [14/16] %v3104, 128
        %3201 = vxpose.xlu0.b32.cont [15/16] %v3105, 128
        %3202 = vxpose.xlu0.b32.end [16/16] %v3106, 128
        %v3203 = vpop.trf.xlu0
        %v3204 = vpop.trf.xlu0
        %v3205 = vpop.trf.xlu0
        %v3206 = vpop.trf.xlu0
        %v3207 = vpop.trf.xlu0
        %v3208 = vpop.trf.xlu0
        %v3209 = vpop.trf.xlu0
        %v3210 = vpop.trf.xlu0
        %v3211 = vpop.trf.xlu0
        %v3212 = vpop.trf.xlu0
        %v3213 = vpop.trf.xlu0
        %v3214 = vpop.trf.xlu0
        %v3215 = vpop.trf.xlu0
        %v3216 = vpop.trf.xlu0
        %v3217 = vpop.trf.xlu0
        %v3218 = vpop.trf.xlu0
        %3219 = vxpose.xlu0.b32.start [1/16] %v3107, 128
        %3220 = vxpose.xlu0.b32.cont [2/16] %v3108, 128
        %3221 = vxpose.xlu0.b32.cont [3/16] %v3109, 128
        %3222 = vxpose.xlu0.b32.cont [4/16] %v3110, 128
        %3223 = vxpose.xlu0.b32.cont [5/16] %v3111, 128
        %3224 = vxpose.xlu0.b32.cont [6/16] %v3112, 128
        %3225 = vxpose.xlu0.b32.cont [7/16] %v3113, 128
        %3226 = vxpose.xlu0.b32.cont [8/16] %v3114, 128
        %3227 = vxpose.xlu0.b32.cont [9/16] %v3115, 128
        %3228 = vxpose.xlu0.b32.cont [10/16] %v3116, 128
        %3229 = vxpose.xlu0.b32.cont [11/16] %v3117, 128
        %3230 = vxpose.xlu0.b32.cont [12/16] %v3118, 128
        %3231 = vxpose.xlu0.b32.cont [13/16] %v3119, 128
        %3232 = vxpose.xlu0.b32.cont [14/16] %v3120, 128
        %3233 = vxpose.xlu0.b32.cont [15/16] %v3121, 128
        %3234 = vxpose.xlu0.b32.end [16/16] %v3122, 128
        %v3235 = vpop.trf.xlu0
        %v3236 = vpop.trf.xlu0
        %v3237 = vpop.trf.xlu0
        %v3238 = vpop.trf.xlu0
        %v3239 = vpop.trf.xlu0
        %v3240 = vpop.trf.xlu0
        %v3241 = vpop.trf.xlu0
        %v3242 = vpop.trf.xlu0
        %v3243 = vpop.trf.xlu0
        %v3244 = vpop.trf.xlu0
        %v3245 = vpop.trf.xlu0
        %v3246 = vpop.trf.xlu0
        %v3247 = vpop.trf.xlu0
        %v3248 = vpop.trf.xlu0
        %v3249 = vpop.trf.xlu0
        %v3250 = vpop.trf.xlu0
        %3251 = vmatprep.subr.mxu0 0.0
        %3252 = vmatpush1.msra.mxu0 %v1235
        %3253 = vmatprep.subr.mxu0 0.0
        %3254 = vmatpush1.msra.mxu0 %v1236
        %3255 = vmatprep.subr.mxu0 0.0
        %3256 = vmatpush1.msra.mxu0 %v1237
        %3257 = vmatprep.subr.mxu0 0.0
        %3258 = vmatpush1.msra.mxu0 %v1238
        %3259 = vmatprep.subr.mxu0 0.0
        %3260 = vmatpush1.msra.mxu0 %v1239
        %3261 = vmatprep.subr.mxu0 0.0
        %3262 = vmatpush1.msra.mxu0 %v1240
        %3263 = vmatprep.subr.mxu0 0.0
        %3264 = vmatpush1.msra.mxu0 %v1241
        %3265 = vmatprep.subr.mxu0 0.0
        %3266 = vmatpush1.msra.mxu0 %v1242
        %3267 = vmatprep.subr.mxu0 0.0
        %3268 = vmatpush1.msra.mxu0 %v1243
        %3269 = vmatprep.subr.mxu0 0.0
        %3270 = vmatpush1.msra.mxu0 %v1244
        %3271 = vmatprep.subr.mxu0 0.0
        %3272 = vmatpush1.msra.mxu0 %v1245
        %3273 = vmatprep.subr.mxu0 0.0
        %3274 = vmatpush1.msra.mxu0 %v1246
        %3275 = vmatprep.subr.mxu0 0.0
        %3276 = vmatpush1.msra.mxu0 %v1247
        %3277 = vmatprep.subr.mxu0 0.0
        %3278 = vmatpush1.msra.mxu0 %v1248
        %3279 = vmatprep.subr.mxu0 0.0
        %3280 = vmatpush1.msra.mxu0 %v1249
        %3281 = vmatprep.subr.mxu0 0.0
        %3282 = vmatpush1.msra.mxu0 %v1250
        %3283 = vmatprep.subr.mxu0 0.0
        %3284 = vmatpush1.msra.mxu0 %v1251
        %3285 = vmatprep.subr.mxu0 0.0
        %3286 = vmatpush1.msra.mxu0 %v1252
        %3287 = vmatprep.subr.mxu0 0.0
        %3288 = vmatpush1.msra.mxu0 %v1253
        %3289 = vmatprep.subr.mxu0 0.0
        %3290 = vmatpush1.msra.mxu0 %v1254
        %3291 = vmatprep.subr.mxu0 0.0
        %3292 = vmatpush1.msra.mxu0 %v1255
        %3293 = vmatprep.subr.mxu0 0.0
        %3294 = vmatpush1.msra.mxu0 %v1256
        %3295 = vmatprep.subr.mxu0 0.0
        %3296 = vmatpush1.msra.mxu0 %v1257
        %3297 = vmatprep.subr.mxu0 0.0
        %3298 = vmatpush1.msra.mxu0 %v1258
        %3299 = vmatprep.subr.mxu0 0.0
        %3300 = vmatpush1.msra.mxu0 %v1259
        %3301 = vmatprep.subr.mxu0 0.0
        %3302 = vmatpush1.msra.mxu0 %v1260
        %3303 = vmatprep.subr.mxu0 0.0
        %3304 = vmatpush1.msra.mxu0 %v1261
        %3305 = vmatprep.subr.mxu0 0.0
        %3306 = vmatpush1.msra.mxu0 %v1262
        %3307 = vmatprep.subr.mxu0 0.0
        %3308 = vmatpush1.msra.mxu0 %v1263
        %3309 = vmatprep.subr.mxu0 0.0
        %3310 = vmatpush1.msra.mxu0 %v1264
        %3311 = vmatprep.subr.mxu0 0.0
        %3312 = vmatpush1.msra.mxu0 %v1265
        %3313 = vmatprep.subr.mxu0 0.0
        %3314 = vmatpush1.msra.mxu0 %v1266
        %3315 = vmatprep.mubr.f32.mxu0 %v3171
        %3316 = vmatmul.mubr.f32.gmra.mrb[0].mxu0 %v3139
        %v3317 = vpop.f32.mrb[0].mxu0
        %v3318 = vadd.f32 0.0, %v3317
        %v3319 = vpop.f32.mrb[0].mxu0
        %3320 = vmatprep.mubr.f32.mxu0 %v3172
        %3321 = vmatmul.mubr.f32.gmra.mrb[0].mxu0 %v3140
        %v3322 = vpop.f32.mrb[0].mxu0
        %v3323 = vadd.f32 0.0, %v3322
        %v3324 = vpop.f32.mrb[0].mxu0
        %3325 = vmatprep.mubr.f32.mxu0 %v3173
        %3326 = vmatmul.mubr.f32.gmra.mrb[0].mxu0 %v3141
        %v3327 = vpop.f32.mrb[0].mxu0
        %v3328 = vadd.f32 0.0, %v3327
        %v3329 = vpop.f32.mrb[0].mxu0
        %3330 = vmatprep.mubr.f32.mxu0 %v3174
        %3331 = vmatmul.mubr.f32.gmra.mrb[0].mxu0 %v3142
        %v3332 = vpop.f32.mrb[0].mxu0
        %v3333 = vadd.f32 0.0, %v3332
        %v3334 = vpop.f32.mrb[0].mxu0
        %3335 = vdwg.mxu0
        %3336 = vmatprep.subr.mxu0 0.0
        %3337 = vmatpush1.msra.mxu0 %v1267
        %3338 = vmatprep.subr.mxu0 0.0
        %3339 = vmatpush1.msra.mxu0 %v1268
        %3340 = vmatprep.subr.mxu0 0.0
        %3341 = vmatpush1.msra.mxu0 %v1269
        %3342 = vmatprep.subr.mxu0 0.0
        %3343 = vmatpush1.msra.mxu0 %v1270
        %3344 = vmatprep.subr.mxu0 0.0
        %3345 = vmatpush1.msra.mxu0 %v1271
        %3346 = vmatprep.subr.mxu0 0.0
        %3347 = vmatpush1.msra.mxu0 %v1272
        %3348 = vmatprep.subr.mxu0 0.0
        %3349 = vmatpush1.msra.mxu0 %v1273
        %3350 = vmatprep.subr.mxu0 0.0
        %3351 = vmatpush1.msra.mxu0 %v1274
        %3352 = vmatprep.subr.mxu0 0.0
        %3353 = vmatpush1.msra.mxu0 %v1275
        %3354 = vmatprep.subr.mxu0 0.0
        %3355 = vmatpush1.msra.mxu0 %v1276
        %3356 = vmatprep.subr.mxu0 0.0
        %3357 = vmatpush1.msra.mxu0 %v1277
        %3358 = vmatprep.subr.mxu0 0.0
        %3359 = vmatpush1.msra.mxu0 %v1278
        %3360 = vmatprep.subr.mxu0 0.0
        %3361 = vmatpush1.msra.mxu0 %v1279
        %3362 = vmatprep.subr.mxu0 0.0
        %3363 = vmatpush1.msra.mxu0 %v1280
        %3364 = vmatprep.subr.mxu0 0.0
        %3365 = vmatpush1.msra.mxu0 %v1281
        %3366 = vmatprep.subr.mxu0 0.0
        %3367 = vmatpush1.msra.mxu0 %v1282
        %3368 = vmatprep.subr.mxu0 0.0
        %3369 = vmatpush1.msra.mxu0 %v1283
        %3370 = vmatprep.subr.mxu0 0.0
        %3371 = vmatpush1.msra.mxu0 %v1284
        %3372 = vmatprep.subr.mxu0 0.0
        %3373 = vmatpush1.msra.mxu0 %v1285
        %3374 = vmatprep.subr.mxu0 0.0
        %3375 = vmatpush1.msra.mxu0 %v1286
        %3376 = vmatprep.subr.mxu0 0.0
        %3377 = vmatpush1.msra.mxu0 %v1287
        %3378 = vmatprep.subr.mxu0 0.0
        %3379 = vmatpush1.msra.mxu0 %v1288
        %3380 = vmatprep.subr.mxu0 0.0
        %3381 = vmatpush1.msra.mxu0 %v1289
        %3382 = vmatprep.subr.mxu0 0.0
        %3383 = vmatpush1.msra.mxu0 %v1290
        %3384 = vmatprep.subr.mxu0 0.0
        %3385 = vmatpush1.msra.mxu0 %v1291
        %3386 = vmatprep.subr.mxu0 0.0
        %3387 = vmatpush1.msra.mxu0 %v1292
        %3388 = vmatprep.subr.mxu0 0.0
        %3389 = vmatpush1.msra.mxu0 %v1293
        %3390 = vmatprep.subr.mxu0 0.0
        %3391 = vmatpush1.msra.mxu0 %v1294
        %3392 = vmatprep.subr.mxu0 0.0
        %3393 = vmatpush1.msra.mxu0 %v1295
        %3394 = vmatprep.subr.mxu0 0.0
        %3395 = vmatpush1.msra.mxu0 %v1296
        %3396 = vmatprep.subr.mxu0 0.0
        %3397 = vmatpush1.msra.mxu0 %v1297
        %3398 = vmatprep.subr.mxu0 0.0
        %3399 = vmatpush1.msra.mxu0 %v1298
        %3400 = vmatprep.mubr.f32.mxu0 %v3235
        %3401 = vmatmul.mubr.f32.gmra.mrb[0].mxu0 %v3203
        %v3402 = vpop.f32.mrb[0].mxu0
        %v3403 = vadd.f32 %v3318, %v3402
        %v3404 = vpop.f32.mrb[0].mxu0
        %3405 = vmatprep.mubr.f32.mxu0 %v3236
        %3406 = vmatmul.mubr.f32.gmra.mrb[0].mxu0 %v3204
        %v3407 = vpop.f32.mrb[0].mxu0
        %v3408 = vadd.f32 %v3323, %v3407
        %v3409 = vpop.f32.mrb[0].mxu0
        %3410 = vmatprep.mubr.f32.mxu0 %v3237
        %3411 = vmatmul.mubr.f32.gmra.mrb[0].mxu0 %v3205
        %v3412 = vpop.f32.mrb[0].mxu0
        %v3413 = vadd.f32 %v3328, %v3412
        %v3414 = vpop.f32.mrb[0].mxu0
        %3415 = vmatprep.mubr.f32.mxu0 %v3238
        %3416 = vmatmul.mubr.f32.gmra.mrb[0].mxu0 %v3206
        %v3417 = vpop.f32.mrb[0].mxu0
        %v3418 = vadd.f32 %v3333, %v3417
        %v3419 = vpop.f32.mrb[0].mxu0
        %3420 = vdwg.mxu0
        %v3421 = vld [vmem:[%s362] sm:$0xff]
        %v3422 = vld [vmem:[%s362 + $0x8] sm:$0xff]
        %v3423 = vld [vmem:[%s362 + $0x10] sm:$0xff]
        %v3424 = vld [vmem:[%s362 + $0x18] sm:$0xff]
        %v3425 = vadd.f32 %v3421, %v3403
        %v3426 = vadd.f32 %v3422, %v3408
        %v3427 = vadd.f32 %v3423, %v3413
        %v3428 = vadd.f32 %v3424, %v3418
        %3429 = vst.msk [vmem:[%s362] sm:$0xff] %vm515, %v3425
        %3430 = vst.msk [vmem:[%s362 + $0x8] sm:$0xff] %vm515, %v3426
        %3431 = vst.msk [vmem:[%s362 + $0x10] sm:$0xff] %vm515, %v3427
        %3432 = vst.msk [vmem:[%s362 + $0x18] sm:$0xff] %vm515, %v3428
        %v3433 = vld [vmem:[%s365] sm:$0x1]
        %v3434 = vsel %vm2418, %v3059, 0.0
        %v3435 = vsel %vm2418, %v3060, 0.0
        %v3436 = vadd.f32 %v3434, %v3435
        %v3437 = vsel %vm2418, %v3061, 0.0
        %v3438 = vadd.f32 %v3436, %v3437
        %v3439 = vsel %vm2418, %v3062, 0.0
        %v3440 = vadd.f32 %v3438, %v3439
        %v3441 = vsel %vm2418, %v3063, 0.0
        %v3442 = vadd.f32 %v3440, %v3441
        %v3443 = vsel %vm2418, %v3064, 0.0
        %v3444 = vadd.f32 %v3442, %v3443
        %v3445 = vsel %vm2418, %v3065, 0.0
        %v3446 = vadd.f32 %v3444, %v3445
        %v3447 = vsel %vm2418, %v3066, 0.0
        %v3448 = vadd.f32 %v3446, %v3447
        %v3449 = vsel %vm2418, %v3067, 0.0
        %v3450 = vadd.f32 %v3448, %v3449
        %v3451 = vsel %vm2418, %v3068, 0.0
        %v3452 = vadd.f32 %v3450, %v3451
        %v3453 = vsel %vm2418, %v3069, 0.0
        %v3454 = vadd.f32 %v3452, %v3453
        %v3455 = vsel %vm2418, %v3070, 0.0
        %v3456 = vadd.f32 %v3454, %v3455
        %v3457 = vsel %vm2418, %v3071, 0.0
        %v3458 = vadd.f32 %v3456, %v3457
        %v3459 = vsel %vm2418, %v3072, 0.0
        %v3460 = vadd.f32 %v3458, %v3459
        %v3461 = vsel %vm2418, %v3073, 0.0
        %v3462 = vadd.f32 %v3460, %v3461
        %v3463 = vsel %vm2418, %v3074, 0.0
        %v3464 = vadd.f32 %v3462, %v3463
        %v3465 = vsel %vm2418, %v3075, 0.0
        %v3466 = vadd.f32 %v3464, %v3465
        %v3467 = vsel %vm2418, %v3076, 0.0
        %v3468 = vadd.f32 %v3466, %v3467
        %v3469 = vsel %vm2418, %v3077, 0.0
        %v3470 = vadd.f32 %v3468, %v3469
        %v3471 = vsel %vm2418, %v3078, 0.0
        %v3472 = vadd.f32 %v3470, %v3471
        %v3473 = vsel %vm2418, %v3079, 0.0
        %v3474 = vadd.f32 %v3472, %v3473
        %v3475 = vsel %vm2418, %v3080, 0.0
        %v3476 = vadd.f32 %v3474, %v3475
        %v3477 = vsel %vm2418, %v3081, 0.0
        %v3478 = vadd.f32 %v3476, %v3477
        %v3479 = vsel %vm2418, %v3082, 0.0
        %v3480 = vadd.f32 %v3478, %v3479
        %v3481 = vsel %vm2418, %v3083, 0.0
        %v3482 = vadd.f32 %v3480, %v3481
        %v3483 = vsel %vm2418, %v3084, 0.0
        %v3484 = vadd.f32 %v3482, %v3483
        %v3485 = vsel %vm2418, %v3085, 0.0
        %v3486 = vadd.f32 %v3484, %v3485
        %v3487 = vsel %vm2418, %v3086, 0.0
        %v3488 = vadd.f32 %v3486, %v3487
        %v3489 = vsel %vm2418, %v3087, 0.0
        %v3490 = vadd.f32 %v3488, %v3489
        %v3491 = vsel %vm2418, %v3088, 0.0
        %v3492 = vadd.f32 %v3490, %v3491
        %v3493 = vsel %vm2418, %v3089, 0.0
        %v3494 = vadd.f32 %v3492, %v3493
        %v3495 = vsel %vm2418, %v3090, 0.0
        %v3496 = vadd.f32 %v3494, %v3495
        %v3497 = vsel %vm2418, %v3091, 0.0
        %v3498 = vadd.f32 %v3496, %v3497
        %v3499 = vsel %vm2418, %v3092, 0.0
        %v3500 = vadd.f32 %v3498, %v3499
        %v3501 = vsel %vm2418, %v3093, 0.0
        %v3502 = vadd.f32 %v3500, %v3501
        %v3503 = vsel %vm2418, %v3094, 0.0
        %v3504 = vadd.f32 %v3502, %v3503
        %v3505 = vsel %vm2418, %v3095, 0.0
        %v3506 = vadd.f32 %v3504, %v3505
        %v3507 = vsel %vm2418, %v3096, 0.0
        %v3508 = vadd.f32 %v3506, %v3507
        %v3509 = vsel %vm2418, %v3097, 0.0
        %v3510 = vadd.f32 %v3508, %v3509
        %v3511 = vsel %vm2418, %v3098, 0.0
        %v3512 = vadd.f32 %v3510, %v3511
        %v3513 = vsel %vm2418, %v3099, 0.0
        %v3514 = vadd.f32 %v3512, %v3513
        %v3515 = vsel %vm2418, %v3100, 0.0
        %v3516 = vadd.f32 %v3514, %v3515
        %v3517 = vsel %vm2418, %v3101, 0.0
        %v3518 = vadd.f32 %v3516, %v3517
        %v3519 = vsel %vm2418, %v3102, 0.0
        %v3520 = vadd.f32 %v3518, %v3519
        %v3521 = vsel %vm2418, %v3103, 0.0
        %v3522 = vadd.f32 %v3520, %v3521
        %v3523 = vsel %vm2418, %v3104, 0.0
        %v3524 = vadd.f32 %v3522, %v3523
        %v3525 = vsel %vm2418, %v3105, 0.0
        %v3526 = vadd.f32 %v3524, %v3525
        %v3527 = vsel %vm2418, %v3106, 0.0
        %v3528 = vadd.f32 %v3526, %v3527
        %v3529 = vsel %vm2418, %v3107, 0.0
        %v3530 = vadd.f32 %v3528, %v3529
        %v3531 = vsel %vm2418, %v3108, 0.0
        %v3532 = vadd.f32 %v3530, %v3531
        %v3533 = vsel %vm2418, %v3109, 0.0
        %v3534 = vadd.f32 %v3532, %v3533
        %v3535 = vsel %vm2418, %v3110, 0.0
        %v3536 = vadd.f32 %v3534, %v3535
        %v3537 = vsel %vm2418, %v3111, 0.0
        %v3538 = vadd.f32 %v3536, %v3537
        %v3539 = vsel %vm2418, %v3112, 0.0
        %v3540 = vadd.f32 %v3538, %v3539
        %v3541 = vsel %vm2418, %v3113, 0.0
        %v3542 = vadd.f32 %v3540, %v3541
        %v3543 = vsel %vm2418, %v3114, 0.0
        %v3544 = vadd.f32 %v3542, %v3543
        %v3545 = vsel %vm2418, %v3115, 0.0
        %v3546 = vadd.f32 %v3544, %v3545
        %v3547 = vsel %vm2418, %v3116, 0.0
        %v3548 = vadd.f32 %v3546, %v3547
        %v3549 = vsel %vm2418, %v3117, 0.0
        %v3550 = vadd.f32 %v3548, %v3549
        %v3551 = vsel %vm2418, %v3118, 0.0
        %v3552 = vadd.f32 %v3550, %v3551
        %v3553 = vsel %vm2418, %v3119, 0.0
        %v3554 = vadd.f32 %v3552, %v3553
        %v3555 = vsel %vm2418, %v3120, 0.0
        %v3556 = vadd.f32 %v3554, %v3555
        %v3557 = vsel %vm2418, %v3121, 0.0
        %v3558 = vadd.f32 %v3556, %v3557
        %v3559 = vsel %vm2418, %v3122, 0.0
        %v3560 = vadd.f32 %v3558, %v3559
        %v3561 = vrot.slane %v3560, 4
        %v3562 = vadd.f32 %v3560, %v3561
        %v3563 = vrot.slane %v3562, 2
        %v3564 = vadd.f32 %v3562, %v3563
        %v3565 = vrot.slane %v3564, 1
        %v3566 = vadd.f32 %v3564, %v3565
        %v3567 = vadd.f32 %v3433, %v3566
        %vm3568 = vcmask 253952
        %3569 = vst.msk [vmem:[%s365] sm:$0x1] %vm3568, %v3567
        %p3570 = scmp.lt.s32.totalorder %s24, 1
        %s3571 = scalar_select %p3570, %s24, 1
        %s3572 = smul.addr %s3571, 4
        %s3573 = smul.addr %s3572, 8
        %s3574 = scalar_lea.vmem %s7, %s3573
        %p3575 = scmp.lt.s32.totalorder %s24, 1
        %s3576 = scalar_select %p3575, %s24, 1
        %s3577 = scalar_lea.vmem %s8, %s3576
        // Predicated region
        $region76: #{enc_module_forward.4} parent=66 // pred_check
          %p3578 = pneg %p204
        $region77: #{enc_module_forward.4} parent=66 // pred_check_branch
          %3580 = sbr.rel (%p3578) target = $region79
        $region78: #{enc_module_forward.4} parent=66 // pred_region
          _
        $region79: #{enc_module_forward.4} parent=66 // pred_fallthru
          _
        // Predicated region
        $region80: #{enc_module_forward.4} parent=66 // pred_check
          %p3581 = pneg %p230
        $region81: #{enc_module_forward.4} parent=66 // pred_check_branch
          %3583 = sbr.rel (%p3581) target = $region83
        $region82: #{enc_module_forward.4} parent=66 // pred_region
          _
        $region83: #{enc_module_forward.4} parent=66 // pred_fallthru
          _
      $region67: #{enc_module_forward.4} parent=5 // pred_fallthru
        _
      %p3584 = scmp.le.s32.totalorder 2, %s15
      // Predicated region
      $region84: #{enc_module_forward.4} parent=5 // pred_check
        %p3585 = pneg %p3584
      $region85: #{enc_module_forward.4} parent=5 // pred_check_branch
        %3587 = sbr.rel (%p3585) target = $region87
      $region86: #{enc_module_forward.4} parent=5 // pred_region
        %s3588 = ssub.s32 %s15, 2
        // Predicated region
        $region88: #{enc_module_forward.4} parent=86 // pred_check
          %p3589 = pneg %p210
        $region89: #{enc_module_forward.4} parent=86 // pred_check_branch
          %3591 = sbr.rel (%p3589) target = $region91
        $region90: #{enc_module_forward.4} parent=86 // pred_region
          %p3592 = scmp.lt.s32.totalorder %s26, 1
          %s3593 = scalar_select %p3592, %s26, 1
          %s3594 = smul.addr %s3593, 4
          %s3595 = smul.addr %s3594, 8
          %s3596 = scalar_lea.vmem %s7, %s3595
        $region91: #{enc_module_forward.4} parent=86 // pred_fallthru
          _
        // Predicated region
        $region92: #{enc_module_forward.4} parent=86 // pred_check
          %p3597 = pneg %p236
        $region93: #{enc_module_forward.4} parent=86 // pred_check_branch
          %3599 = sbr.rel (%p3597) target = $region95
        $region94: #{enc_module_forward.4} parent=86 // pred_region
          %p3600 = scmp.lt.s32.totalorder %s26, 1
          %s3601 = scalar_select %p3600, %s26, 1
          %s3602 = scalar_lea.vmem %s8, %s3601
        $region95: #{enc_module_forward.4} parent=86 // pred_fallthru
          _
      $region87: #{enc_module_forward.4} parent=5 // pred_fallthru
        _
    $region6: #{enc_module_forward.4} parent=1 // loop_footer
      %s19 = sadd.s32 1, %s15
    $region7: #{enc_module_forward.4} parent=1 // loop_footer_branch
      %14 = sbr.rel target = $region3
    $region8: #{enc_module_forward.4} parent=1 // loop_exit
      _

</llo_original>
